<compile_context>
chip_gen: v7x
topology: tpu7x:2x2x1
jax: 0.10.0
libtpu: 0.0.40
codegen_flags: <defaults>
</compile_context>

<pallas_src>
import jax
import jax.numpy as jnp
from jax.experimental import pallas as pl
from jax.experimental.pallas import tpu as pltpu

IN_DIM = 28 * 28        # 784
HID = 400
LAT = 20

IN_PAD = 896            # 7 * 128  lane-dense padded image dim
HID_PAD = 512           # 4 * 128  lane-dense padded hidden dim
LAT_PAD = 128           # mu / logvar each occupy one full 128-lane tile
ENC_PAD = 2 * LAT_PAD   # fused [mu || logvar] projection width


def vae_kernel(x_ref, eps_ref,
               w1_ref, b1_ref,
               wenc_ref, benc_ref,
               w3_ref, b3_ref,
               w4_ref, b4_ref,
               out_ref, enc_ref):
    x = x_ref[...]                                                  # (tb, 784)

    # ---- encoder layer 1: relu(x @ W1 + b1), HID padded to 512 lanes ----
    h = jnp.dot(x, w1_ref[...], preferred_element_type=jnp.float32) + b1_ref[...]
    h = jnp.maximum(h, 0.0)                                         # (tb, 512)

    # ---- fused mu/logvar projection: single MXU matmul -> (tb, 256) ----
    y = jnp.dot(h, wenc_ref[...], preferred_element_type=jnp.float32) + benc_ref[...]
    enc_ref[...] = y                                                # lane-dense store

    mu_p = y[:, :LAT_PAD]                                           # (tb, 128), lanes 0:20 valid
    logvar_p = y[:, LAT_PAD:]                                       # (tb, 128), lanes 0:20 valid

    # ---- reparametrize on padded 128-lane tiles ----
    # padded lanes: logvar==0 -> exp==1, eps==0, mu==0  =>  z padded lanes == 0
    z = eps_ref[...] * jnp.exp(0.5 * logvar_p) + mu_p               # (tb, 128)

    # ---- decoder: tanh(relu(z @ W3 + b3) @ W4 + b4) ----
    h2 = jnp.dot(z, w3_ref[...], preferred_element_type=jnp.float32) + b3_ref[...]
    h2 = jnp.maximum(h2, 0.0)                                       # (tb, 512)
    out = jnp.tanh(jnp.dot(h2, w4_ref[...], preferred_element_type=jnp.float32)
                   + b4_ref[...])                                   # (tb, 896)
    out_ref[...] = out


def _pad_params(p):
    """Zero-pad weights to lane-dense shapes; fuse the mu/logvar projection."""
    w1 = jnp.zeros((IN_DIM, HID_PAD), jnp.float32).at[:, :HID].set(p["w1"])
    b1 = jnp.zeros((1, HID_PAD), jnp.float32).at[:, :HID].set(p["b1"])
    wenc = (jnp.zeros((HID_PAD, ENC_PAD), jnp.float32)
            .at[:HID, :LAT].set(p["w21"])
            .at[:HID, LAT_PAD:LAT_PAD + LAT].set(p["w22"]))
    benc = (jnp.zeros((1, ENC_PAD), jnp.float32)
            .at[:, :LAT].set(p["b21"])
            .at[:, LAT_PAD:LAT_PAD + LAT].set(p["b22"]))
    w3 = jnp.zeros((LAT_PAD, HID_PAD), jnp.float32).at[:LAT, :HID].set(p["w3"])
    b3 = jnp.zeros((1, HID_PAD), jnp.float32).at[:, :HID].set(p["b3"])
    w4 = jnp.zeros((HID_PAD, IN_PAD), jnp.float32).at[:HID, :IN_DIM].set(p["w4"])
    b4 = jnp.zeros((1, IN_PAD), jnp.float32).at[:, :IN_DIM].set(p["b4"])
    return w1, b1, wenc, benc, w3, b3, w4, b4


def vae_forward(x, eps, params, *, max_tb=256):
    B = x.shape[0]

    # Batch tiling: tb <= 256 (MXU-friendly, VMEM-safe on v7x's 64 MiB),
    # remainder rows zero-padded (results for them are sliced off below).
    B8 = ((B + 7) // 8) * 8
    tb = min(max_tb, B8)
    Bp = ((B8 + tb - 1) // tb) * tb
    grid = (Bp // tb,)

    x_p = jnp.zeros((Bp, IN_DIM), jnp.float32).at[:B].set(x)
    eps_p = jnp.zeros((Bp, LAT_PAD), jnp.float32).at[:B, :LAT].set(eps)

    w1, b1, wenc, benc, w3, b3, w4, b4 = _pad_params(params)

    def rep(shape):
        # Grid-invariant (weight) block: full array, same block every step.
        return pl.BlockSpec(shape, lambda i: (0, 0))

    in_specs = [
        pl.BlockSpec((tb, IN_DIM), lambda i: (i, 0)),    # x
        pl.BlockSpec((tb, LAT_PAD), lambda i: (i, 0)),   # eps (padded)
        rep((IN_DIM, HID_PAD)), rep((1, HID_PAD)),       # W1, b1
        rep((HID_PAD, ENC_PAD)), rep((1, ENC_PAD)),      # fused W21||W22, b21||b22
        rep((LAT_PAD, HID_PAD)), rep((1, HID_PAD)),      # W3, b3
        rep((HID_PAD, IN_PAD)), rep((1, IN_PAD)),        # W4, b4
    ]
    out_specs = (
        pl.BlockSpec((tb, IN_PAD), lambda i: (i, 0)),    # padded reconstruction
        pl.BlockSpec((tb, ENC_PAD), lambda i: (i, 0)),   # packed [mu || logvar]
    )
    out_shape = (
        jax.ShapeDtypeStruct((Bp, IN_PAD), jnp.float32),
        jax.ShapeDtypeStruct((Bp, ENC_PAD), jnp.float32),
    )

    flops = 2 * Bp * (IN_DIM * HID_PAD + HID_PAD * ENC_PAD
                      + LAT_PAD * HID_PAD + HID_PAD * IN_PAD)
    transcendentals = Bp * (IN_PAD + LAT_PAD)            # tanh + exp
    weight_bytes = 4 * (IN_DIM * HID_PAD + HID_PAD
                        + HID_PAD * ENC_PAD + ENC_PAD
                        + LAT_PAD * HID_PAD + HID_PAD
                        + HID_PAD * IN_PAD + IN_PAD)
    bytes_accessed = 4 * Bp * (IN_DIM + LAT_PAD + IN_PAD + ENC_PAD) + weight_bytes

    out_p, enc_p = pl.pallas_call(
        vae_kernel,
        out_shape=out_shape,
        grid=grid,
        in_specs=in_specs,
        out_specs=out_specs,
        compiler_params=pltpu.CompilerParams(
            dimension_semantics=("parallel",)),
        cost_estimate=pl.CostEstimate(
            flops=flops,
            transcendentals=transcendentals,
            bytes_accessed=bytes_accessed),
    )(x_p, eps_p, w1, b1, wenc, benc, w3, b3, w4, b4)

    out = out_p[:B, :IN_DIM]
    mu = enc_p[:B, :LAT]
    logvar = enc_p[:B, LAT_PAD:LAT_PAD + LAT]
    return out, mu, logvar


def init_params(key):
    """Deterministic init mimicking nn.Linear's uniform(-1/sqrt(fan_in), ...)."""
    def linear(key, fan_in, fan_out):
        kw, kb = jax.random.split(key)
        bound = 1.0 / jnp.sqrt(fan_in)
        w = jax.random.uniform(kw, (fan_in, fan_out), jnp.float32, -bound, bound)
        b = jax.random.uniform(kb, (1, fan_out), jnp.float32, -bound, bound)
        return w, b

    k1, k2, k3, k4, k5 = jax.random.split(key, 5)
    p = {}
    p["w1"], p["b1"] = linear(k1, IN_DIM, HID)
    p["w21"], p["b21"] = linear(k2, HID, LAT)
    p["w22"], p["b22"] = linear(k3, HID, LAT)
    p["w3"], p["b3"] = linear(k4, LAT, HID)
    p["w4"], p["b4"] = linear(k5, HID, IN_DIM)
    return p


def reference_forward(x, eps, p):
    """Pure-JAX reference matching the PyTorch module semantics."""
    h = jnp.maximum(x @ p["w1"] + p["b1"], 0.0)
    mu = h @ p["w21"] + p["b21"]
    logvar = h @ p["w22"] + p["b22"]
    z = eps * jnp.exp(0.5 * logvar) + mu
    h2 = jnp.maximum(z @ p["w3"] + p["b3"], 0.0)
    out = jnp.tanh(h2 @ p["w4"] + p["b4"])
    return out, mu, logvar


if __name__ == "__main__":
    key = jax.random.PRNGKey(0)
    k_param, k_x, k_eps = jax.random.split(key, 3)

    B = 8
    params = init_params(k_param)
    x = jax.random.uniform(k_x, (B, IN_DIM), jnp.float32)   # flattened 28x28 images
    # TODO(synk): torch.FloatTensor(...).normal_() has no in-kernel equivalent here;
    # eps ~ N(0,1) is drawn deterministically in JAX and passed to the kernel.
    eps = jax.random.normal(k_eps, (B, LAT), jnp.float32)

    out, mu, logvar = vae_forward(x, eps, params)
    jax.block_until_ready((out, mu, logvar))

    out_r, mu_r, lv_r = reference_forward(x, eps, params)
    assert out.shape == (B, IN_DIM) and mu.shape == (B, LAT) and logvar.shape == (B, LAT)
    assert jnp.allclose(out, out_r, atol=1e-4, rtol=1e-4)
    assert jnp.allclose(mu, mu_r, atol=1e-4, rtol=1e-4)
    assert jnp.allclose(logvar, lv_r, atol=1e-4, rtol=1e-4)

    print("KERNEL_OK")
</pallas_src>

<mosaic_0001>
module attributes {stable_mosaic.version = 11 : i64} {
  func.func @vae_kernel(%arg0: i32, %arg1: memref<8x784xf32, #tpu.memory_space<vmem>>, %arg2: memref<8x128xf32, #tpu.memory_space<vmem>>, %arg3: memref<784x512xf32, #tpu.memory_space<vmem>>, %arg4: memref<1x512xf32, #tpu.memory_space<vmem>>, %arg5: memref<512x256xf32, #tpu.memory_space<vmem>>, %arg6: memref<1x256xf32, #tpu.memory_space<vmem>>, %arg7: memref<128x512xf32, #tpu.memory_space<vmem>>, %arg8: memref<1x512xf32, #tpu.memory_space<vmem>>, %arg9: memref<512x896xf32, #tpu.memory_space<vmem>>, %arg10: memref<1x896xf32, #tpu.memory_space<vmem>>, %arg11: memref<8x896xf32, #tpu.memory_space<vmem>>, %arg12: memref<8x256xf32, #tpu.memory_space<vmem>>) attributes {dimension_semantics = [#tpu.dimension_semantics<parallel>], iteration_bounds = array<i64: 1>, scalar_prefetch = 0 : i64, scratch_operands = 0 : i64, tpu.core_type = #tpu.core_type<tc>, window_params = [{transform_indices = @transform_0, window_bounds = array<i64: 8, 784>}, {transform_indices = @transform_1, window_bounds = array<i64: 8, 128>}, {pipeline_mode = #tpu.pipeline_mode<synchronous>, transform_indices = @transform_2, window_bounds = array<i64: 784, 512>}, {pipeline_mode = #tpu.pipeline_mode<synchronous>, transform_indices = @transform_3, window_bounds = array<i64: 1, 512>}, {pipeline_mode = #tpu.pipeline_mode<synchronous>, transform_indices = @transform_4, window_bounds = array<i64: 512, 256>}, {pipeline_mode = #tpu.pipeline_mode<synchronous>, transform_indices = @transform_5, window_bounds = array<i64: 1, 256>}, {pipeline_mode = #tpu.pipeline_mode<synchronous>, transform_indices = @transform_6, window_bounds = array<i64: 128, 512>}, {pipeline_mode = #tpu.pipeline_mode<synchronous>, transform_indices = @transform_7, window_bounds = array<i64: 1, 512>}, {pipeline_mode = #tpu.pipeline_mode<synchronous>, transform_indices = @transform_8, window_bounds = array<i64: 512, 896>}, {pipeline_mode = #tpu.pipeline_mode<synchronous>, transform_indices = @transform_9, window_bounds = array<i64: 1, 896>}, {transform_indices = @transform_10, window_bounds = array<i64: 8, 896>}, {transform_indices = @transform_11, window_bounds = array<i64: 8, 256>}]} {
    %c0 = arith.constant 0 : index
    %c0_0 = arith.constant 0 : index
    %0 = vector.load %arg1[%c0, %c0_0] : memref<8x784xf32, #tpu.memory_space<vmem>>, vector<8x784xf32>
    %c0_1 = arith.constant 0 : index
    %c0_2 = arith.constant 0 : index
    %1 = vector.load %arg3[%c0_1, %c0_2] : memref<784x512xf32, #tpu.memory_space<vmem>>, vector<784x512xf32>
    %cst = arith.constant dense<0.000000e+00> : vector<8x512xf32>
    %2 = tpu.matmul %0, %1, %cst {dimension_numbers = #tpu.dot_dimension_numbers<[1], [0], [0], [1], [0, 0, 1, 1], [], []>} : vector<8x784xf32>, vector<784x512xf32>, vector<8x512xf32> -> vector<8x512xf32>
    %c0_3 = arith.constant 0 : index
    %c0_4 = arith.constant 0 : index
    %3 = vector.load %arg4[%c0_3, %c0_4] : memref<1x512xf32, #tpu.memory_space<vmem>>, vector<1x512xf32>
    %4 = vector.broadcast %3 : vector<1x512xf32> to vector<8x512xf32>
    %5 = arith.addf %2, %4 : vector<8x512xf32>
    %cst_5 = arith.constant 0.000000e+00 : f32
    %6 = vector.broadcast %cst_5 : f32 to vector<8x512xf32>
    %7 = arith.maximumf %5, %6 : vector<8x512xf32>
    %c0_6 = arith.constant 0 : index
    %c0_7 = arith.constant 0 : index
    %8 = vector.load %arg5[%c0_6, %c0_7] : memref<512x256xf32, #tpu.memory_space<vmem>>, vector<512x256xf32>
    %cst_8 = arith.constant dense<0.000000e+00> : vector<8x256xf32>
    %9 = tpu.matmul %7, %8, %cst_8 {dimension_numbers = #tpu.dot_dimension_numbers<[1], [0], [0], [1], [0, 0, 1, 1], [], []>} : vector<8x512xf32>, vector<512x256xf32>, vector<8x256xf32> -> vector<8x256xf32>
    %c0_9 = arith.constant 0 : index
    %c0_10 = arith.constant 0 : index
    %10 = vector.load %arg6[%c0_9, %c0_10] : memref<1x256xf32, #tpu.memory_space<vmem>>, vector<1x256xf32>
    %11 = vector.broadcast %10 : vector<1x256xf32> to vector<8x256xf32>
    %12 = arith.addf %9, %11 : vector<8x256xf32>
    %c0_11 = arith.constant 0 : index
    %c0_12 = arith.constant 0 : index
    %13 = vector.load %arg12[%c0_11, %c0_12] : memref<8x256xf32, #tpu.memory_space<vmem>>, vector<8x256xf32>
    tpu.vector_store %arg12[%c0_11, %c0_12], %12 {strides = array<i32>} : memref<8x256xf32, #tpu.memory_space<vmem>>, vector<8x256xf32>,
    %14 = vector.extract_strided_slice %12 {offsets = [0, 0], sizes = [8, 128], strides = [1, 1]} : vector<8x256xf32> to vector<8x128xf32>
    %15 = vector.extract_strided_slice %12 {offsets = [0, 128], sizes = [8, 128], strides = [1, 1]} : vector<8x256xf32> to vector<8x128xf32>
    %c0_13 = arith.constant 0 : index
    %c0_14 = arith.constant 0 : index
    %16 = vector.load %arg2[%c0_13, %c0_14] : memref<8x128xf32, #tpu.memory_space<vmem>>, vector<8x128xf32>
    %cst_15 = arith.constant 5.000000e-01 : f32
    %17 = vector.broadcast %cst_15 : f32 to vector<8x128xf32>
    %18 = arith.mulf %17, %15 : vector<8x128xf32>
    %19 = math.exp %18 : vector<8x128xf32>
    %20 = arith.mulf %16, %19 : vector<8x128xf32>
    %21 = arith.addf %20, %14 : vector<8x128xf32>
    %c0_16 = arith.constant 0 : index
    %c0_17 = arith.constant 0 : index
    %22 = vector.load %arg7[%c0_16, %c0_17] : memref<128x512xf32, #tpu.memory_space<vmem>>, vector<128x512xf32>
    %cst_18 = arith.constant dense<0.000000e+00> : vector<8x512xf32>
    %23 = tpu.matmul %21, %22, %cst_18 {dimension_numbers = #tpu.dot_dimension_numbers<[1], [0], [0], [1], [0, 0, 1, 1], [], []>} : vector<8x128xf32>, vector<128x512xf32>, vector<8x512xf32> -> vector<8x512xf32>
    %c0_19 = arith.constant 0 : index
    %c0_20 = arith.constant 0 : index
    %24 = vector.load %arg8[%c0_19, %c0_20] : memref<1x512xf32, #tpu.memory_space<vmem>>, vector<1x512xf32>
    %25 = vector.broadcast %24 : vector<1x512xf32> to vector<8x512xf32>
    %26 = arith.addf %23, %25 : vector<8x512xf32>
    %cst_21 = arith.constant 0.000000e+00 : f32
    %27 = vector.broadcast %cst_21 : f32 to vector<8x512xf32>
    %28 = arith.maximumf %26, %27 : vector<8x512xf32>
    %c0_22 = arith.constant 0 : index
    %c0_23 = arith.constant 0 : index
    %29 = vector.load %arg9[%c0_22, %c0_23] : memref<512x896xf32, #tpu.memory_space<vmem>>, vector<512x896xf32>
    %cst_24 = arith.constant dense<0.000000e+00> : vector<8x896xf32>
    %30 = tpu.matmul %28, %29, %cst_24 {dimension_numbers = #tpu.dot_dimension_numbers<[1], [0], [0], [1], [0, 0, 1, 1], [], []>} : vector<8x512xf32>, vector<512x896xf32>, vector<8x896xf32> -> vector<8x896xf32>
    %c0_25 = arith.constant 0 : index
    %c0_26 = arith.constant 0 : index
    %31 = vector.load %arg10[%c0_25, %c0_26] : memref<1x896xf32, #tpu.memory_space<vmem>>, vector<1x896xf32>
    %32 = vector.broadcast %31 : vector<1x896xf32> to vector<8x896xf32>
    %33 = arith.addf %30, %32 : vector<8x896xf32>
    %34 = math.tanh %33 : vector<8x896xf32>
    %c0_27 = arith.constant 0 : index
    %c0_28 = arith.constant 0 : index
    %35 = vector.load %arg11[%c0_27, %c0_28] : memref<8x896xf32, #tpu.memory_space<vmem>>, vector<8x896xf32>
    tpu.vector_store %arg11[%c0_27, %c0_28], %34 {strides = array<i32>} : memref<8x896xf32, #tpu.memory_space<vmem>>, vector<8x896xf32>,
    return
  }
  func.func @transform_0(%arg0: i32) -> (i32, i32) {
    %c0_i32 = arith.constant 0 : i32
    %c0_i32_0 = arith.constant 0 : i32
    return %arg0, %c0_i32 : i32, i32
  }
  func.func @transform_1(%arg0: i32) -> (i32, i32) {
    %c0_i32 = arith.constant 0 : i32
    %c0_i32_0 = arith.constant 0 : i32
    return %arg0, %c0_i32 : i32, i32
  }
  func.func @transform_2(%arg0: i32) -> (i32, i32) {
    %c0_i32 = arith.constant 0 : i32
    %c0_i32_0 = arith.constant 0 : i32
    %c0_i32_1 = arith.constant 0 : i32
    return %c0_i32, %c0_i32_0 : i32, i32
  }
  func.func @transform_3(%arg0: i32) -> (i32, i32) {
    %c0_i32 = arith.constant 0 : i32
    %c0_i32_0 = arith.constant 0 : i32
    %c0_i32_1 = arith.constant 0 : i32
    return %c0_i32, %c0_i32_0 : i32, i32
  }
  func.func @transform_4(%arg0: i32) -> (i32, i32) {
    %c0_i32 = arith.constant 0 : i32
    %c0_i32_0 = arith.constant 0 : i32
    %c0_i32_1 = arith.constant 0 : i32
    return %c0_i32, %c0_i32_0 : i32, i32
  }
  func.func @transform_5(%arg0: i32) -> (i32, i32) {
    %c0_i32 = arith.constant 0 : i32
    %c0_i32_0 = arith.constant 0 : i32
    %c0_i32_1 = arith.constant 0 : i32
    return %c0_i32, %c0_i32_0 : i32, i32
  }
  func.func @transform_6(%arg0: i32) -> (i32, i32) {
    %c0_i32 = arith.constant 0 : i32
    %c0_i32_0 = arith.constant 0 : i32
    %c0_i32_1 = arith.constant 0 : i32
    return %c0_i32, %c0_i32_0 : i32, i32
  }
  func.func @transform_7(%arg0: i32) -> (i32, i32) {
    %c0_i32 = arith.constant 0 : i32
    %c0_i32_0 = arith.constant 0 : i32
    %c0_i32_1 = arith.constant 0 : i32
    return %c0_i32, %c0_i32_0 : i32, i32
  }
  func.func @transform_8(%arg0: i32) -> (i32, i32) {
    %c0_i32 = arith.constant 0 : i32
    %c0_i32_0 = arith.constant 0 : i32
    %c0_i32_1 = arith.constant 0 : i32
    return %c0_i32, %c0_i32_0 : i32, i32
  }
  func.func @transform_9(%arg0: i32) -> (i32, i32) {
    %c0_i32 = arith.constant 0 : i32
    %c0_i32_0 = arith.constant 0 : i32
    %c0_i32_1 = arith.constant 0 : i32
    return %c0_i32, %c0_i32_0 : i32, i32
  }
  func.func @transform_10(%arg0: i32) -> (i32, i32) {
    %c0_i32 = arith.constant 0 : i32
    %c0_i32_0 = arith.constant 0 : i32
    return %arg0, %c0_i32 : i32, i32
  }
  func.func @transform_11(%arg0: i32) -> (i32, i32) {
    %c0_i32 = arith.constant 0 : i32
    %c0_i32_0 = arith.constant 0 : i32
    return %arg0, %c0_i32 : i32, i32
  }
}

</mosaic_0001>

<llo_original>
// kernel: tpu_custom_call.1
$region0: #{tpu_custom_call.1}
  #allocation0 [shape = 'u32[]', space=smem, size = 0x4, offset = 0x4, fixed_abs, tag = 'smem constant byte address 0x4 - core index']
  #allocation1 [shape = 'u32[144,128]{1,0:T(1,128)}', space=vmem, size = 0x12000, scoped, tag = 'internal scratch']
  %s0 = inlined_call_operand.hbm [shape: f32[8,784], index: 0, kind: input, shape index: {}]
  %s1 = inlined_call_operand.hbm [shape: f32[8,128], index: 1, kind: input, shape index: {}]
  %s2 = inlined_call_operand.hbm [shape: f32[784,512], index: 2, kind: input, shape index: {}]
  %s3 = inlined_call_operand.hbm [shape: f32[1,512], index: 3, kind: input, shape index: {}]
  %s4 = inlined_call_operand.hbm [shape: f32[512,256], index: 4, kind: input, shape index: {}]
  %s5 = inlined_call_operand.hbm [shape: f32[1,256], index: 5, kind: input, shape index: {}]
  %s6 = inlined_call_operand.hbm [shape: f32[128,512], index: 6, kind: input, shape index: {}]
  %s7 = inlined_call_operand.hbm [shape: f32[1,512], index: 7, kind: input, shape index: {}]
  %s8 = inlined_call_operand.hbm [shape: f32[512,896], index: 8, kind: input, shape index: {}]
  %s9 = inlined_call_operand.hbm [shape: f32[1,896], index: 9, kind: input, shape index: {}]
  %s10 = inlined_call_operand.hbm [shape: f32[8,896], index: 10, kind: output, shape index: {0}]
  %s11 = inlined_call_operand.hbm [shape: f32[8,256], index: 11, kind: output, shape index: {1}]
  %12 = xla_tuple %s10, %s11
  %s13 = sld [smem:[#allocation0]]
  $region98: #{tpu_custom_call.1} parent=0
    _
  %s15 = ssub.s32 1, %s13
  %s16 = scalar_select 0, %s15, %s13
  $region1: #{tpu_custom_call.1} parent=0
    #allocation2 [shape = 'u8[28672]{0}', space=vmem, size = 0x7000, scoped, tag = 'input window, operand 0, single buffered']
    #allocation3 [shape = 's32[1]{0}', space=sflag, size = 0x4, scoped, tag = 'scoped memory for tpu_custom_call.1']
    #allocation4 [shape = 's32[1]{0}', space=sflag, size = 0x4, scoped, tag = 'scoped memory for tpu_custom_call.1']
    #allocation5 [shape = 'u8[4096]{0}', space=vmem, size = 0x1000, scoped, tag = 'input window, operand 1, single buffered']
    #allocation6 [shape = 's32[1]{0}', space=sflag, size = 0x4, scoped, tag = 'scoped memory for tpu_custom_call.1']
    #allocation7 [shape = 'u8[1605632]{0}', space=vmem, size = 0x188000, scoped, tag = 'input window, operand 2, single buffered']
    #allocation8 [shape = 'u8[2048]{0}', space=vmem, size = 0x800, scoped, tag = 'input window, operand 3, single buffered']
    #allocation9 [shape = 's32[1]{0}', space=sflag, size = 0x4, scoped, tag = 'scoped memory for tpu_custom_call.1']
    #allocation10 [shape = 'u8[524288]{0}', space=vmem, size = 0x80000, scoped, tag = 'input window, operand 4, single buffered']
    #allocation11 [shape = 'u8[1024]{0}', space=vmem, size = 0x400, scoped, tag = 'input window, operand 5, single buffered']
    #allocation12 [shape = 's32[1]{0}', space=sflag, size = 0x4, scoped, tag = 'scoped memory for tpu_custom_call.1']
    #allocation13 [shape = 'u8[262144]{0}', space=vmem, size = 0x40000, scoped, tag = 'input window, operand 6, single buffered']
    #allocation14 [shape = 'u8[2048]{0}', space=vmem, size = 0x800, scoped, tag = 'input window, operand 7, single buffered']
    #allocation15 [shape = 's32[1]{0}', space=sflag, size = 0x4, scoped, tag = 'scoped memory for tpu_custom_call.1']
    #allocation16 [shape = 'u8[1835008]{0}', space=vmem, size = 0x1c0000, scoped, tag = 'input window, operand 8, single buffered']
    #allocation17 [shape = 'u8[3584]{0}', space=vmem, size = 0x1000, scoped, tag = 'input window, operand 9, single buffered']
    #allocation18 [shape = 's32[1]{0}', space=sflag, size = 0x4, scoped, tag = 'scoped memory for tpu_custom_call.1']
    #allocation19 [shape = 'u8[28672]{0}', space=vmem, size = 0x7000, scoped, tag = 'output window, operand 0, single buffered']
    #allocation20 [shape = 'u8[8192]{0}', space=vmem, size = 0x2000, scoped, tag = 'output window, operand 1, single buffered']
    #allocation21 [shape = 's32[1]{0}', space=sflag, size = 0x4, scoped, tag = 'scoped memory for tpu_custom_call.1']
    %17 = vsyncpa [#allocation3], 0
    %18 = vsyncpa [#allocation6], 0
    %19 = vsyncpa [#allocation9], 0
    %20 = vsyncpa [#allocation12], 0
    %21 = vsyncpa [#allocation15], 0
    %22 = vsyncpa [#allocation18], 0
    %23 = vsyncpa [#allocation4], 0
    %24 = vsyncpa [#allocation21], 0
    // Predicated region
    $region2: #{tpu_custom_call.1} parent=1 // pred_check
      _
    $region3: #{tpu_custom_call.1} parent=1 // pred_check_branch
      %26 = sbr.rel (0) target = $region5
    $region4: #{tpu_custom_call.1} parent=1 // pred_region
      %s28 = ssub.s32 896, 896
      %29 = vsyncadd [#allocation3], %s28
      %s31 = sshll.u32 [#allocation2], 4
      %s32 = int_to_ptr.vmem [resolvable:$true] %s31
      %34 = dma.hbm_to_vmem [thread:$0]  %s0, 896, %s32, [#allocation3]
    $region5: #{tpu_custom_call.1} parent=1 // pred_fallthru
      _
    // Predicated region
    $region6: #{tpu_custom_call.1} parent=1 // pred_check
      _
    $region7: #{tpu_custom_call.1} parent=1 // pred_check_branch
      %36 = sbr.rel (0) target = $region9
    $region8: #{tpu_custom_call.1} parent=1 // pred_region
      %s38 = ssub.s32 128, 128
      %39 = vsyncadd [#allocation6], %s38
      %s41 = sshll.u32 [#allocation5], 4
      %s42 = int_to_ptr.vmem [resolvable:$true] %s41
      %44 = dma.hbm_to_vmem [thread:$0]  %s1, 128, %s42, [#allocation6]
    $region9: #{tpu_custom_call.1} parent=1 // pred_fallthru
      _
    // Predicated region
    $region10: #{tpu_custom_call.1} parent=1 // pred_check
      _
    $region11: #{tpu_custom_call.1} parent=1 // pred_check_branch
      %46 = sbr.rel (0) target = $region13
    $region12: #{tpu_custom_call.1} parent=1 // pred_region
      %s48 = ssub.s32 50176, 50176
      %49 = vsyncadd [#allocation6], %s48
      %s50 = sshll.u32 [#allocation7], 4
      %s51 = int_to_ptr.vmem [resolvable:$true] %s50
      %56 = dma.hbm_to_vmem [thread:$0]  %s2, 50176, %s51, [#allocation6], 512, 512, 32
    $region13: #{tpu_custom_call.1} parent=1 // pred_fallthru
      _
    // Predicated region
    $region14: #{tpu_custom_call.1} parent=1 // pred_check
      _
    $region15: #{tpu_custom_call.1} parent=1 // pred_check_branch
      %58 = sbr.rel (0) target = $region17
    $region16: #{tpu_custom_call.1} parent=1 // pred_region
      %s60 = ssub.s32 64, 64
      %61 = vsyncadd [#allocation9], %s60
      %s63 = sshll.u32 [#allocation8], 4
      %s64 = int_to_ptr.vmem [resolvable:$true] %s63
      %66 = dma.hbm_to_vmem [thread:$0]  %s3, 64, %s64, [#allocation9]
    $region17: #{tpu_custom_call.1} parent=1 // pred_fallthru
      _
    // Predicated region
    $region18: #{tpu_custom_call.1} parent=1 // pred_check
      _
    $region19: #{tpu_custom_call.1} parent=1 // pred_check_branch
      %68 = sbr.rel (0) target = $region21
    $region20: #{tpu_custom_call.1} parent=1 // pred_region
      %s70 = ssub.s32 16384, 16384
      %71 = vsyncadd [#allocation9], %s70
      %s72 = sshll.u32 [#allocation10], 4
      %s73 = int_to_ptr.vmem [resolvable:$true] %s72
      %78 = dma.hbm_to_vmem [thread:$0]  %s4, 16384, %s73, [#allocation9], 256, 256, 16
    $region21: #{tpu_custom_call.1} parent=1 // pred_fallthru
      _
    // Predicated region
    $region22: #{tpu_custom_call.1} parent=1 // pred_check
      _
    $region23: #{tpu_custom_call.1} parent=1 // pred_check_branch
      %80 = sbr.rel (0) target = $region25
    $region24: #{tpu_custom_call.1} parent=1 // pred_region
      %s82 = ssub.s32 32, 32
      %83 = vsyncadd [#allocation12], %s82
      %s85 = sshll.u32 [#allocation11], 4
      %s86 = int_to_ptr.vmem [resolvable:$true] %s85
      %88 = dma.hbm_to_vmem [thread:$0]  %s5, 32, %s86, [#allocation12]
    $region25: #{tpu_custom_call.1} parent=1 // pred_fallthru
      _
    // Predicated region
    $region26: #{tpu_custom_call.1} parent=1 // pred_check
      _
    $region27: #{tpu_custom_call.1} parent=1 // pred_check_branch
      %90 = sbr.rel (0) target = $region29
    $region28: #{tpu_custom_call.1} parent=1 // pred_region
      %s92 = ssub.s32 8192, 8192
      %93 = vsyncadd [#allocation12], %s92
      %s94 = sshll.u32 [#allocation13], 4
      %s95 = int_to_ptr.vmem [resolvable:$true] %s94
      %100 = dma.hbm_to_vmem [thread:$0]  %s6, 8192, %s95, [#allocation12], 512, 512, 32
    $region29: #{tpu_custom_call.1} parent=1 // pred_fallthru
      _
    // Predicated region
    $region30: #{tpu_custom_call.1} parent=1 // pred_check
      _
    $region31: #{tpu_custom_call.1} parent=1 // pred_check_branch
      %102 = sbr.rel (0) target = $region33
    $region32: #{tpu_custom_call.1} parent=1 // pred_region
      %s104 = ssub.s32 64, 64
      %105 = vsyncadd [#allocation15], %s104
      %s107 = sshll.u32 [#allocation14], 4
      %s108 = int_to_ptr.vmem [resolvable:$true] %s107
      %110 = dma.hbm_to_vmem [thread:$0]  %s7, 64, %s108, [#allocation15]
    $region33: #{tpu_custom_call.1} parent=1 // pred_fallthru
      _
    // Predicated region
    $region34: #{tpu_custom_call.1} parent=1 // pred_check
      _
    $region35: #{tpu_custom_call.1} parent=1 // pred_check_branch
      %112 = sbr.rel (0) target = $region37
    $region36: #{tpu_custom_call.1} parent=1 // pred_region
      %s114 = ssub.s32 57344, 57344
      %115 = vsyncadd [#allocation15], %s114
      %s116 = sshll.u32 [#allocation16], 4
      %s117 = int_to_ptr.vmem [resolvable:$true] %s116
      %122 = dma.hbm_to_vmem [thread:$0]  %s8, 57344, %s117, [#allocation15], 896, 896, 56
    $region37: #{tpu_custom_call.1} parent=1 // pred_fallthru
      _
    // Predicated region
    $region38: #{tpu_custom_call.1} parent=1 // pred_check
      _
    $region39: #{tpu_custom_call.1} parent=1 // pred_check_branch
      %124 = sbr.rel (0) target = $region41
    $region40: #{tpu_custom_call.1} parent=1 // pred_region
      %s126 = ssub.s32 112, 112
      %127 = vsyncadd [#allocation18], %s126
      %s129 = sshll.u32 [#allocation17], 4
      %s130 = int_to_ptr.vmem [resolvable:$true] %s129
      %132 = dma.hbm_to_vmem [thread:$0]  %s9, 112, %s130, [#allocation18]
    $region41: #{tpu_custom_call.1} parent=1 // pred_fallthru
      _
    // Predicated region
    $region42: #{tpu_custom_call.1} parent=1 // pred_check
      _
    $region43: #{tpu_custom_call.1} parent=1 // pred_check_branch
      %134 = sbr.rel (0) target = $region45
    $region44: #{tpu_custom_call.1} parent=1 // pred_region
      %135 = dma.done [#allocation3], 896
    $region45: #{tpu_custom_call.1} parent=1 // pred_fallthru
      _
    // Predicated region
    $region46: #{tpu_custom_call.1} parent=1 // pred_check
      _
    $region47: #{tpu_custom_call.1} parent=1 // pred_check_branch
      %137 = sbr.rel (0) target = $region49
    $region48: #{tpu_custom_call.1} parent=1 // pred_region
      %138 = dma.done [#allocation6], 128
    $region49: #{tpu_custom_call.1} parent=1 // pred_fallthru
      _
    // Predicated region
    $region50: #{tpu_custom_call.1} parent=1 // pred_check
      _
    $region51: #{tpu_custom_call.1} parent=1 // pred_check_branch
      %140 = sbr.rel (0) target = $region53
    $region52: #{tpu_custom_call.1} parent=1 // pred_region
      %141 = dma.done [#allocation6], 50176
    $region53: #{tpu_custom_call.1} parent=1 // pred_fallthru
      _
    // Predicated region
    $region54: #{tpu_custom_call.1} parent=1 // pred_check
      _
    $region55: #{tpu_custom_call.1} parent=1 // pred_check_branch
      %143 = sbr.rel (0) target = $region57
    $region56: #{tpu_custom_call.1} parent=1 // pred_region
      %144 = dma.done [#allocation9], 64
    $region57: #{tpu_custom_call.1} parent=1 // pred_fallthru
      _
    // Predicated region
    $region58: #{tpu_custom_call.1} parent=1 // pred_check
      _
    $region59: #{tpu_custom_call.1} parent=1 // pred_check_branch
      %146 = sbr.rel (0) target = $region61
    $region60: #{tpu_custom_call.1} parent=1 // pred_region
      %147 = dma.done [#allocation9], 16384
    $region61: #{tpu_custom_call.1} parent=1 // pred_fallthru
      _
    // Predicated region
    $region62: #{tpu_custom_call.1} parent=1 // pred_check
      _
    $region63: #{tpu_custom_call.1} parent=1 // pred_check_branch
      %149 = sbr.rel (0) target = $region65
    $region64: #{tpu_custom_call.1} parent=1 // pred_region
      %150 = dma.done [#allocation12], 32
    $region65: #{tpu_custom_call.1} parent=1 // pred_fallthru
      _
    // Predicated region
    $region66: #{tpu_custom_call.1} parent=1 // pred_check
      _
    $region67: #{tpu_custom_call.1} parent=1 // pred_check_branch
      %152 = sbr.rel (0) target = $region69
    $region68: #{tpu_custom_call.1} parent=1 // pred_region
      %153 = dma.done [#allocation12], 8192
    $region69: #{tpu_custom_call.1} parent=1 // pred_fallthru
      _
    // Predicated region
    $region70: #{tpu_custom_call.1} parent=1 // pred_check
      _
    $region71: #{tpu_custom_call.1} parent=1 // pred_check_branch
      %155 = sbr.rel (0) target = $region73
    $region72: #{tpu_custom_call.1} parent=1 // pred_region
      %156 = dma.done [#allocation15], 64
    $region73: #{tpu_custom_call.1} parent=1 // pred_fallthru
      _
    // Predicated region
    $region74: #{tpu_custom_call.1} parent=1 // pred_check
      _
    $region75: #{tpu_custom_call.1} parent=1 // pred_check_branch
      %158 = sbr.rel (0) target = $region77
    $region76: #{tpu_custom_call.1} parent=1 // pred_region
      %159 = dma.done [#allocation15], 57344
    $region77: #{tpu_custom_call.1} parent=1 // pred_fallthru
      _
    // Predicated region
    $region78: #{tpu_custom_call.1} parent=1 // pred_check
      _
    $region79: #{tpu_custom_call.1} parent=1 // pred_check_branch
      %161 = sbr.rel (0) target = $region81
    $region80: #{tpu_custom_call.1} parent=1 // pred_region
      %162 = dma.done [#allocation18], 112
    $region81: #{tpu_custom_call.1} parent=1 // pred_fallthru
      _
    %v163 = vld [vmem:[#allocation2] sm:$0xff]
    %v164 = vld [vmem:[#allocation2 + $0x8] sm:$0xff]
    %v165 = vld [vmem:[#allocation2 + $0x10] sm:$0xff]
    %v166 = vld [vmem:[#allocation2 + $0x18] sm:$0xff]
    %v167 = vld [vmem:[#allocation2 + $0x20] sm:$0xff]
    %v168 = vld [vmem:[#allocation2 + $0x28] sm:$0xff]
    %v169 = vld [vmem:[#allocation2 + $0x30] sm:$0xff]
    %v170 = vld [vmem:[#allocation7] sm:$0xff]
    %v171 = vld [vmem:[#allocation7 + $0x8] sm:$0xff]
    %v172 = vld [vmem:[#allocation7 + $0x10] sm:$0xff]
    %v173 = vld [vmem:[#allocation7 + $0x18] sm:$0xff]
    %v174 = vld [vmem:[#allocation7 + $0x20] sm:$0xff]
    %v175 = vld [vmem:[#allocation7 + $0x28] sm:$0xff]
    %v176 = vld [vmem:[#allocation7 + $0x30] sm:$0xff]
    %v177 = vld [vmem:[#allocation7 + $0x38] sm:$0xff]
    %v178 = vld [vmem:[#allocation7 + $0x40] sm:$0xff]
    %v179 = vld [vmem:[#allocation7 + $0x48] sm:$0xff]
    %v180 = vld [vmem:[#allocation7 + $0x50] sm:$0xff]
    %v181 = vld [vmem:[#allocation7 + $0x58] sm:$0xff]
    %v182 = vld [vmem:[#allocation7 + $0x60] sm:$0xff]
    %v183 = vld [vmem:[#allocation7 + $0x68] sm:$0xff]
    %v184 = vld [vmem:[#allocation7 + $0x70] sm:$0xff]
    %v185 = vld [vmem:[#allocation7 + $0x78] sm:$0xff]
    %v186 = vld [vmem:[#allocation7 + $0x80] sm:$0xff]
    %v187 = vld [vmem:[#allocation7 + $0x88] sm:$0xff]
    %v188 = vld [vmem:[#allocation7 + $0x90] sm:$0xff]
    %v189 = vld [vmem:[#allocation7 + $0x98] sm:$0xff]
    %v190 = vld [vmem:[#allocation7 + $0xa0] sm:$0xff]
    %v191 = vld [vmem:[#allocation7 + $0xa8] sm:$0xff]
    %v192 = vld [vmem:[#allocation7 + $0xb0] sm:$0xff]
    %v193 = vld [vmem:[#allocation7 + $0xb8] sm:$0xff]
    %v194 = vld [vmem:[#allocation7 + $0xc0] sm:$0xff]
    %v195 = vld [vmem:[#allocation7 + $0xc8] sm:$0xff]
    %v196 = vld [vmem:[#allocation7 + $0xd0] sm:$0xff]
    %v197 = vld [vmem:[#allocation7 + $0xd8] sm:$0xff]
    %v198 = vld [vmem:[#allocation7 + $0xe0] sm:$0xff]
    %v199 = vld [vmem:[#allocation7 + $0xe8] sm:$0xff]
    %v200 = vld [vmem:[#allocation7 + $0xf0] sm:$0xff]
    %v201 = vld [vmem:[#allocation7 + $0xf8] sm:$0xff]
    %v202 = vld [vmem:[#allocation7 + $0x100] sm:$0xff]
    %v203 = vld [vmem:[#allocation7 + $0x108] sm:$0xff]
    %v204 = vld [vmem:[#allocation7 + $0x110] sm:$0xff]
    %v205 = vld [vmem:[#allocation7 + $0x118] sm:$0xff]
    %v206 = vld [vmem:[#allocation7 + $0x120] sm:$0xff]
    %v207 = vld [vmem:[#allocation7 + $0x128] sm:$0xff]
    %v208 = vld [vmem:[#allocation7 + $0x130] sm:$0xff]
    %v209 = vld [vmem:[#allocation7 + $0x138] sm:$0xff]
    %v210 = vld [vmem:[#allocation7 + $0x140] sm:$0xff]
    %v211 = vld [vmem:[#allocation7 + $0x148] sm:$0xff]
    %v212 = vld [vmem:[#allocation7 + $0x150] sm:$0xff]
    %v213 = vld [vmem:[#allocation7 + $0x158] sm:$0xff]
    %v214 = vld [vmem:[#allocation7 + $0x160] sm:$0xff]
    %v215 = vld [vmem:[#allocation7 + $0x168] sm:$0xff]
    %v216 = vld [vmem:[#allocation7 + $0x170] sm:$0xff]
    %v217 = vld [vmem:[#allocation7 + $0x178] sm:$0xff]
    %v218 = vld [vmem:[#allocation7 + $0x180] sm:$0xff]
    %v219 = vld [vmem:[#allocation7 + $0x188] sm:$0xff]
    %v220 = vld [vmem:[#allocation7 + $0x190] sm:$0xff]
    %v221 = vld [vmem:[#allocation7 + $0x198] sm:$0xff]
    %v222 = vld [vmem:[#allocation7 + $0x1a0] sm:$0xff]
    %v223 = vld [vmem:[#allocation7 + $0x1a8] sm:$0xff]
    %v224 = vld [vmem:[#allocation7 + $0x1b0] sm:$0xff]
    %v225 = vld [vmem:[#allocation7 + $0x1b8] sm:$0xff]
    %v226 = vld [vmem:[#allocation7 + $0x1c0] sm:$0xff]
    %v227 = vld [vmem:[#allocation7 + $0x1c8] sm:$0xff]
    %v228 = vld [vmem:[#allocation7 + $0x1d0] sm:$0xff]
    %v229 = vld [vmem:[#allocation7 + $0x1d8] sm:$0xff]
    %v230 = vld [vmem:[#allocation7 + $0x1e0] sm:$0xff]
    %v231 = vld [vmem:[#allocation7 + $0x1e8] sm:$0xff]
    %v232 = vld [vmem:[#allocation7 + $0x1f0] sm:$0xff]
    %v233 = vld [vmem:[#allocation7 + $0x1f8] sm:$0xff]
    %v234 = vld [vmem:[#allocation7 + $0x200] sm:$0xff]
    %v235 = vld [vmem:[#allocation7 + $0x208] sm:$0xff]
    %v236 = vld [vmem:[#allocation7 + $0x210] sm:$0xff]
    %v237 = vld [vmem:[#allocation7 + $0x218] sm:$0xff]
    %v238 = vld [vmem:[#allocation7 + $0x220] sm:$0xff]
    %v239 = vld [vmem:[#allocation7 + $0x228] sm:$0xff]
    %v240 = vld [vmem:[#allocation7 + $0x230] sm:$0xff]
    %v241 = vld [vmem:[#allocation7 + $0x238] sm:$0xff]
    %v242 = vld [vmem:[#allocation7 + $0x240] sm:$0xff]
    %v243 = vld [vmem:[#allocation7 + $0x248] sm:$0xff]
    %v244 = vld [vmem:[#allocation7 + $0x250] sm:$0xff]
    %v245 = vld [vmem:[#allocation7 + $0x258] sm:$0xff]
    %v246 = vld [vmem:[#allocation7 + $0x260] sm:$0xff]
    %v247 = vld [vmem:[#allocation7 + $0x268] sm:$0xff]
    %v248 = vld [vmem:[#allocation7 + $0x270] sm:$0xff]
    %v249 = vld [vmem:[#allocation7 + $0x278] sm:$0xff]
    %v250 = vld [vmem:[#allocation7 + $0x280] sm:$0xff]
    %v251 = vld [vmem:[#allocation7 + $0x288] sm:$0xff]
    %v252 = vld [vmem:[#allocation7 + $0x290] sm:$0xff]
    %v253 = vld [vmem:[#allocation7 + $0x298] sm:$0xff]
    %v254 = vld [vmem:[#allocation7 + $0x2a0] sm:$0xff]
    %v255 = vld [vmem:[#allocation7 + $0x2a8] sm:$0xff]
    %v256 = vld [vmem:[#allocation7 + $0x2b0] sm:$0xff]
    %v257 = vld [vmem:[#allocation7 + $0x2b8] sm:$0xff]
    %v258 = vld [vmem:[#allocation7 + $0x2c0] sm:$0xff]
    %v259 = vld [vmem:[#allocation7 + $0x2c8] sm:$0xff]
    %v260 = vld [vmem:[#allocation7 + $0x2d0] sm:$0xff]
    %v261 = vld [vmem:[#allocation7 + $0x2d8] sm:$0xff]
    %v262 = vld [vmem:[#allocation7 + $0x2e0] sm:$0xff]
    %v263 = vld [vmem:[#allocation7 + $0x2e8] sm:$0xff]
    %v264 = vld [vmem:[#allocation7 + $0x2f0] sm:$0xff]
    %v265 = vld [vmem:[#allocation7 + $0x2f8] sm:$0xff]
    %v266 = vld [vmem:[#allocation7 + $0x300] sm:$0xff]
    %v267 = vld [vmem:[#allocation7 + $0x308] sm:$0xff]
    %v268 = vld [vmem:[#allocation7 + $0x310] sm:$0xff]
    %v269 = vld [vmem:[#allocation7 + $0x318] sm:$0xff]
    %v270 = vld [vmem:[#allocation7 + $0x320] sm:$0xff]
    %v271 = vld [vmem:[#allocation7 + $0x328] sm:$0xff]
    %v272 = vld [vmem:[#allocation7 + $0x330] sm:$0xff]
    %v273 = vld [vmem:[#allocation7 + $0x338] sm:$0xff]
    %v274 = vld [vmem:[#allocation7 + $0x340] sm:$0xff]
    %v275 = vld [vmem:[#allocation7 + $0x348] sm:$0xff]
    %v276 = vld [vmem:[#allocation7 + $0x350] sm:$0xff]
    %v277 = vld [vmem:[#allocation7 + $0x358] sm:$0xff]
    %v278 = vld [vmem:[#allocation7 + $0x360] sm:$0xff]
    %v279 = vld [vmem:[#allocation7 + $0x368] sm:$0xff]
    %v280 = vld [vmem:[#allocation7 + $0x370] sm:$0xff]
    %v281 = vld [vmem:[#allocation7 + $0x378] sm:$0xff]
    %v282 = vld [vmem:[#allocation7 + $0x380] sm:$0xff]
    %v283 = vld [vmem:[#allocation7 + $0x388] sm:$0xff]
    %v284 = vld [vmem:[#allocation7 + $0x390] sm:$0xff]
    %v285 = vld [vmem:[#allocation7 + $0x398] sm:$0xff]
    %v286 = vld [vmem:[#allocation7 + $0x3a0] sm:$0xff]
    %v287 = vld [vmem:[#allocation7 + $0x3a8] sm:$0xff]
    %v288 = vld [vmem:[#allocation7 + $0x3b0] sm:$0xff]
    %v289 = vld [vmem:[#allocation7 + $0x3b8] sm:$0xff]
    %v290 = vld [vmem:[#allocation7 + $0x3c0] sm:$0xff]
    %v291 = vld [vmem:[#allocation7 + $0x3c8] sm:$0xff]
    %v292 = vld [vmem:[#allocation7 + $0x3d0] sm:$0xff]
    %v293 = vld [vmem:[#allocation7 + $0x3d8] sm:$0xff]
    %v294 = vld [vmem:[#allocation7 + $0x3e0] sm:$0xff]
    %v295 = vld [vmem:[#allocation7 + $0x3e8] sm:$0xff]
    %v296 = vld [vmem:[#allocation7 + $0x3f0] sm:$0xff]
    %v297 = vld [vmem:[#allocation7 + $0x3f8] sm:$0xff]
    %v298 = vld [vmem:[#allocation7 + $0x400] sm:$0xff]
    %v299 = vld [vmem:[#allocation7 + $0x408] sm:$0xff]
    %v300 = vld [vmem:[#allocation7 + $0x410] sm:$0xff]
    %v301 = vld [vmem:[#allocation7 + $0x418] sm:$0xff]
    %v302 = vld [vmem:[#allocation7 + $0x420] sm:$0xff]
    %v303 = vld [vmem:[#allocation7 + $0x428] sm:$0xff]
    %v304 = vld [vmem:[#allocation7 + $0x430] sm:$0xff]
    %v305 = vld [vmem:[#allocation7 + $0x438] sm:$0xff]
    %v306 = vld [vmem:[#allocation7 + $0x440] sm:$0xff]
    %v307 = vld [vmem:[#allocation7 + $0x448] sm:$0xff]
    %v308 = vld [vmem:[#allocation7 + $0x450] sm:$0xff]
    %v309 = vld [vmem:[#allocation7 + $0x458] sm:$0xff]
    %v310 = vld [vmem:[#allocation7 + $0x460] sm:$0xff]
    %v311 = vld [vmem:[#allocation7 + $0x468] sm:$0xff]
    %v312 = vld [vmem:[#allocation7 + $0x470] sm:$0xff]
    %v313 = vld [vmem:[#allocation7 + $0x478] sm:$0xff]
    %v314 = vld [vmem:[#allocation7 + $0x480] sm:$0xff]
    %v315 = vld [vmem:[#allocation7 + $0x488] sm:$0xff]
    %v316 = vld [vmem:[#allocation7 + $0x490] sm:$0xff]
    %v317 = vld [vmem:[#allocation7 + $0x498] sm:$0xff]
    %v318 = vld [vmem:[#allocation7 + $0x4a0] sm:$0xff]
    %v319 = vld [vmem:[#allocation7 + $0x4a8] sm:$0xff]
    %v320 = vld [vmem:[#allocation7 + $0x4b0] sm:$0xff]
    %v321 = vld [vmem:[#allocation7 + $0x4b8] sm:$0xff]
    %v322 = vld [vmem:[#allocation7 + $0x4c0] sm:$0xff]
    %v323 = vld [vmem:[#allocation7 + $0x4c8] sm:$0xff]
    %v324 = vld [vmem:[#allocation7 + $0x4d0] sm:$0xff]
    %v325 = vld [vmem:[#allocation7 + $0x4d8] sm:$0xff]
    %v326 = vld [vmem:[#allocation7 + $0x4e0] sm:$0xff]
    %v327 = vld [vmem:[#allocation7 + $0x4e8] sm:$0xff]
    %v328 = vld [vmem:[#allocation7 + $0x4f0] sm:$0xff]
    %v329 = vld [vmem:[#allocation7 + $0x4f8] sm:$0xff]
    %v330 = vld [vmem:[#allocation7 + $0x500] sm:$0xff]
    %v331 = vld [vmem:[#allocation7 + $0x508] sm:$0xff]
    %v332 = vld [vmem:[#allocation7 + $0x510] sm:$0xff]
    %v333 = vld [vmem:[#allocation7 + $0x518] sm:$0xff]
    %v334 = vld [vmem:[#allocation7 + $0x520] sm:$0xff]
    %v335 = vld [vmem:[#allocation7 + $0x528] sm:$0xff]
    %v336 = vld [vmem:[#allocation7 + $0x530] sm:$0xff]
    %v337 = vld [vmem:[#allocation7 + $0x538] sm:$0xff]
    %v338 = vld [vmem:[#allocation7 + $0x540] sm:$0xff]
    %v339 = vld [vmem:[#allocation7 + $0x548] sm:$0xff]
    %v340 = vld [vmem:[#allocation7 + $0x550] sm:$0xff]
    %v341 = vld [vmem:[#allocation7 + $0x558] sm:$0xff]
    %v342 = vld [vmem:[#allocation7 + $0x560] sm:$0xff]
    %v343 = vld [vmem:[#allocation7 + $0x568] sm:$0xff]
    %v344 = vld [vmem:[#allocation7 + $0x570] sm:$0xff]
    %v345 = vld [vmem:[#allocation7 + $0x578] sm:$0xff]
    %v346 = vld [vmem:[#allocation7 + $0x580] sm:$0xff]
    %v347 = vld [vmem:[#allocation7 + $0x588] sm:$0xff]
    %v348 = vld [vmem:[#allocation7 + $0x590] sm:$0xff]
    %v349 = vld [vmem:[#allocation7 + $0x598] sm:$0xff]
    %v350 = vld [vmem:[#allocation7 + $0x5a0] sm:$0xff]
    %v351 = vld [vmem:[#allocation7 + $0x5a8] sm:$0xff]
    %v352 = vld [vmem:[#allocation7 + $0x5b0] sm:$0xff]
    %v353 = vld [vmem:[#allocation7 + $0x5b8] sm:$0xff]
    %v354 = vld [vmem:[#allocation7 + $0x5c0] sm:$0xff]
    %v355 = vld [vmem:[#allocation7 + $0x5c8] sm:$0xff]
    %v356 = vld [vmem:[#allocation7 + $0x5d0] sm:$0xff]
    %v357 = vld [vmem:[#allocation7 + $0x5d8] sm:$0xff]
    %v358 = vld [vmem:[#allocation7 + $0x5e0] sm:$0xff]
    %v359 = vld [vmem:[#allocation7 + $0x5e8] sm:$0xff]
    %v360 = vld [vmem:[#allocation7 + $0x5f0] sm:$0xff]
    %v361 = vld [vmem:[#allocation7 + $0x5f8] sm:$0xff]
    %v362 = vld [vmem:[#allocation7 + $0x600] sm:$0xff]
    %v363 = vld [vmem:[#allocation7 + $0x608] sm:$0xff]
    %v364 = vld [vmem:[#allocation7 + $0x610] sm:$0xff]
    %v365 = vld [vmem:[#allocation7 + $0x618] sm:$0xff]
    %v366 = vld [vmem:[#allocation7 + $0x620] sm:$0xff]
    %v367 = vld [vmem:[#allocation7 + $0x628] sm:$0xff]
    %v368 = vld [vmem:[#allocation7 + $0x630] sm:$0xff]
    %v369 = vld [vmem:[#allocation7 + $0x638] sm:$0xff]
    %v370 = vld [vmem:[#allocation7 + $0x640] sm:$0xff]
    %v371 = vld [vmem:[#allocation7 + $0x648] sm:$0xff]
    %v372 = vld [vmem:[#allocation7 + $0x650] sm:$0xff]
    %v373 = vld [vmem:[#allocation7 + $0x658] sm:$0xff]
    %v374 = vld [vmem:[#allocation7 + $0x660] sm:$0xff]
    %v375 = vld [vmem:[#allocation7 + $0x668] sm:$0xff]
    %v376 = vld [vmem:[#allocation7 + $0x670] sm:$0xff]
    %v377 = vld [vmem:[#allocation7 + $0x678] sm:$0xff]
    %v378 = vld [vmem:[#allocation7 + $0x680] sm:$0xff]
    %v379 = vld [vmem:[#allocation7 + $0x688] sm:$0xff]
    %v380 = vld [vmem:[#allocation7 + $0x690] sm:$0xff]
    %v381 = vld [vmem:[#allocation7 + $0x698] sm:$0xff]
    %v382 = vld [vmem:[#allocation7 + $0x6a0] sm:$0xff]
    %v383 = vld [vmem:[#allocation7 + $0x6a8] sm:$0xff]
    %v384 = vld [vmem:[#allocation7 + $0x6b0] sm:$0xff]
    %v385 = vld [vmem:[#allocation7 + $0x6b8] sm:$0xff]
    %v386 = vld [vmem:[#allocation7 + $0x6c0] sm:$0xff]
    %v387 = vld [vmem:[#allocation7 + $0x6c8] sm:$0xff]
    %v388 = vld [vmem:[#allocation7 + $0x6d0] sm:$0xff]
    %v389 = vld [vmem:[#allocation7 + $0x6d8] sm:$0xff]
    %v390 = vld [vmem:[#allocation7 + $0x6e0] sm:$0xff]
    %v391 = vld [vmem:[#allocation7 + $0x6e8] sm:$0xff]
    %v392 = vld [vmem:[#allocation7 + $0x6f0] sm:$0xff]
    %v393 = vld [vmem:[#allocation7 + $0x6f8] sm:$0xff]
    %v394 = vld [vmem:[#allocation7 + $0x700] sm:$0xff]
    %v395 = vld [vmem:[#allocation7 + $0x708] sm:$0xff]
    %v396 = vld [vmem:[#allocation7 + $0x710] sm:$0xff]
    %v397 = vld [vmem:[#allocation7 + $0x718] sm:$0xff]
    %v398 = vld [vmem:[#allocation7 + $0x720] sm:$0xff]
    %v399 = vld [vmem:[#allocation7 + $0x728] sm:$0xff]
    %v400 = vld [vmem:[#allocation7 + $0x730] sm:$0xff]
    %v401 = vld [vmem:[#allocation7 + $0x738] sm:$0xff]
    %v402 = vld [vmem:[#allocation7 + $0x740] sm:$0xff]
    %v403 = vld [vmem:[#allocation7 + $0x748] sm:$0xff]
    %v404 = vld [vmem:[#allocation7 + $0x750] sm:$0xff]
    %v405 = vld [vmem:[#allocation7 + $0x758] sm:$0xff]
    %v406 = vld [vmem:[#allocation7 + $0x760] sm:$0xff]
    %v407 = vld [vmem:[#allocation7 + $0x768] sm:$0xff]
    %v408 = vld [vmem:[#allocation7 + $0x770] sm:$0xff]
    %v409 = vld [vmem:[#allocation7 + $0x778] sm:$0xff]
    %v410 = vld [vmem:[#allocation7 + $0x780] sm:$0xff]
    %v411 = vld [vmem:[#allocation7 + $0x788] sm:$0xff]
    %v412 = vld [vmem:[#allocation7 + $0x790] sm:$0xff]
    %v413 = vld [vmem:[#allocation7 + $0x798] sm:$0xff]
    %v414 = vld [vmem:[#allocation7 + $0x7a0] sm:$0xff]
    %v415 = vld [vmem:[#allocation7 + $0x7a8] sm:$0xff]
    %v416 = vld [vmem:[#allocation7 + $0x7b0] sm:$0xff]
    %v417 = vld [vmem:[#allocation7 + $0x7b8] sm:$0xff]
    %v418 = vld [vmem:[#allocation7 + $0x7c0] sm:$0xff]
    %v419 = vld [vmem:[#allocation7 + $0x7c8] sm:$0xff]
    %v420 = vld [vmem:[#allocation7 + $0x7d0] sm:$0xff]
    %v421 = vld [vmem:[#allocation7 + $0x7d8] sm:$0xff]
    %v422 = vld [vmem:[#allocation7 + $0x7e0] sm:$0xff]
    %v423 = vld [vmem:[#allocation7 + $0x7e8] sm:$0xff]
    %v424 = vld [vmem:[#allocation7 + $0x7f0] sm:$0xff]
    %v425 = vld [vmem:[#allocation7 + $0x7f8] sm:$0xff]
    %v426 = vld [vmem:[#allocation7 + $0x800] sm:$0xff]
    %v427 = vld [vmem:[#allocation7 + $0x808] sm:$0xff]
    %v428 = vld [vmem:[#allocation7 + $0x810] sm:$0xff]
    %v429 = vld [vmem:[#allocation7 + $0x818] sm:$0xff]
    %v430 = vld [vmem:[#allocation7 + $0x820] sm:$0xff]
    %v431 = vld [vmem:[#allocation7 + $0x828] sm:$0xff]
    %v432 = vld [vmem:[#allocation7 + $0x830] sm:$0xff]
    %v433 = vld [vmem:[#allocation7 + $0x838] sm:$0xff]
    %v434 = vld [vmem:[#allocation7 + $0x840] sm:$0xff]
    %v435 = vld [vmem:[#allocation7 + $0x848] sm:$0xff]
    %v436 = vld [vmem:[#allocation7 + $0x850] sm:$0xff]
    %v437 = vld [vmem:[#allocation7 + $0x858] sm:$0xff]
    %v438 = vld [vmem:[#allocation7 + $0x860] sm:$0xff]
    %v439 = vld [vmem:[#allocation7 + $0x868] sm:$0xff]
    %v440 = vld [vmem:[#allocation7 + $0x870] sm:$0xff]
    %v441 = vld [vmem:[#allocation7 + $0x878] sm:$0xff]
    %v442 = vld [vmem:[#allocation7 + $0x880] sm:$0xff]
    %v443 = vld [vmem:[#allocation7 + $0x888] sm:$0xff]
    %v444 = vld [vmem:[#allocation7 + $0x890] sm:$0xff]
    %v445 = vld [vmem:[#allocation7 + $0x898] sm:$0xff]
    %v446 = vld [vmem:[#allocation7 + $0x8a0] sm:$0xff]
    %v447 = vld [vmem:[#allocation7 + $0x8a8] sm:$0xff]
    %v448 = vld [vmem:[#allocation7 + $0x8b0] sm:$0xff]
    %v449 = vld [vmem:[#allocation7 + $0x8b8] sm:$0xff]
    %v450 = vld [vmem:[#allocation7 + $0x8c0] sm:$0xff]
    %v451 = vld [vmem:[#allocation7 + $0x8c8] sm:$0xff]
    %v452 = vld [vmem:[#allocation7 + $0x8d0] sm:$0xff]
    %v453 = vld [vmem:[#allocation7 + $0x8d8] sm:$0xff]
    %v454 = vld [vmem:[#allocation7 + $0x8e0] sm:$0xff]
    %v455 = vld [vmem:[#allocation7 + $0x8e8] sm:$0xff]
    %v456 = vld [vmem:[#allocation7 + $0x8f0] sm:$0xff]
    %v457 = vld [vmem:[#allocation7 + $0x8f8] sm:$0xff]
    %v458 = vld [vmem:[#allocation7 + $0x900] sm:$0xff]
    %v459 = vld [vmem:[#allocation7 + $0x908] sm:$0xff]
    %v460 = vld [vmem:[#allocation7 + $0x910] sm:$0xff]
    %v461 = vld [vmem:[#allocation7 + $0x918] sm:$0xff]
    %v462 = vld [vmem:[#allocation7 + $0x920] sm:$0xff]
    %v463 = vld [vmem:[#allocation7 + $0x928] sm:$0xff]
    %v464 = vld [vmem:[#allocation7 + $0x930] sm:$0xff]
    %v465 = vld [vmem:[#allocation7 + $0x938] sm:$0xff]
    %v466 = vld [vmem:[#allocation7 + $0x940] sm:$0xff]
    %v467 = vld [vmem:[#allocation7 + $0x948] sm:$0xff]
    %v468 = vld [vmem:[#allocation7 + $0x950] sm:$0xff]
    %v469 = vld [vmem:[#allocation7 + $0x958] sm:$0xff]
    %v470 = vld [vmem:[#allocation7 + $0x960] sm:$0xff]
    %v471 = vld [vmem:[#allocation7 + $0x968] sm:$0xff]
    %v472 = vld [vmem:[#allocation7 + $0x970] sm:$0xff]
    %v473 = vld [vmem:[#allocation7 + $0x978] sm:$0xff]
    %v474 = vld [vmem:[#allocation7 + $0x980] sm:$0xff]
    %v475 = vld [vmem:[#allocation7 + $0x988] sm:$0xff]
    %v476 = vld [vmem:[#allocation7 + $0x990] sm:$0xff]
    %v477 = vld [vmem:[#allocation7 + $0x998] sm:$0xff]
    %v478 = vld [vmem:[#allocation7 + $0x9a0] sm:$0xff]
    %v479 = vld [vmem:[#allocation7 + $0x9a8] sm:$0xff]
    %v480 = vld [vmem:[#allocation7 + $0x9b0] sm:$0xff]
    %v481 = vld [vmem:[#allocation7 + $0x9b8] sm:$0xff]
    %v482 = vld [vmem:[#allocation7 + $0x9c0] sm:$0xff]
    %v483 = vld [vmem:[#allocation7 + $0x9c8] sm:$0xff]
    %v484 = vld [vmem:[#allocation7 + $0x9d0] sm:$0xff]
    %v485 = vld [vmem:[#allocation7 + $0x9d8] sm:$0xff]
    %v486 = vld [vmem:[#allocation7 + $0x9e0] sm:$0xff]
    %v487 = vld [vmem:[#allocation7 + $0x9e8] sm:$0xff]
    %v488 = vld [vmem:[#allocation7 + $0x9f0] sm:$0xff]
    %v489 = vld [vmem:[#allocation7 + $0x9f8] sm:$0xff]
    %v490 = vld [vmem:[#allocation7 + $0xa00] sm:$0xff]
    %v491 = vld [vmem:[#allocation7 + $0xa08] sm:$0xff]
    %v492 = vld [vmem:[#allocation7 + $0xa10] sm:$0xff]
    %v493 = vld [vmem:[#allocation7 + $0xa18] sm:$0xff]
    %v494 = vld [vmem:[#allocation7 + $0xa20] sm:$0xff]
    %v495 = vld [vmem:[#allocation7 + $0xa28] sm:$0xff]
    %v496 = vld [vmem:[#allocation7 + $0xa30] sm:$0xff]
    %v497 = vld [vmem:[#allocation7 + $0xa38] sm:$0xff]
    %v498 = vld [vmem:[#allocation7 + $0xa40] sm:$0xff]
    %v499 = vld [vmem:[#allocation7 + $0xa48] sm:$0xff]
    %v500 = vld [vmem:[#allocation7 + $0xa50] sm:$0xff]
    %v501 = vld [vmem:[#allocation7 + $0xa58] sm:$0xff]
    %v502 = vld [vmem:[#allocation7 + $0xa60] sm:$0xff]
    %v503 = vld [vmem:[#allocation7 + $0xa68] sm:$0xff]
    %v504 = vld [vmem:[#allocation7 + $0xa70] sm:$0xff]
    %v505 = vld [vmem:[#allocation7 + $0xa78] sm:$0xff]
    %v506 = vld [vmem:[#allocation7 + $0xa80] sm:$0xff]
    %v507 = vld [vmem:[#allocation7 + $0xa88] sm:$0xff]
    %v508 = vld [vmem:[#allocation7 + $0xa90] sm:$0xff]
    %v509 = vld [vmem:[#allocation7 + $0xa98] sm:$0xff]
    %v510 = vld [vmem:[#allocation7 + $0xaa0] sm:$0xff]
    %v511 = vld [vmem:[#allocation7 + $0xaa8] sm:$0xff]
    %v512 = vld [vmem:[#allocation7 + $0xab0] sm:$0xff]
    %v513 = vld [vmem:[#allocation7 + $0xab8] sm:$0xff]
    %v514 = vld [vmem:[#allocation7 + $0xac0] sm:$0xff]
    %v515 = vld [vmem:[#allocation7 + $0xac8] sm:$0xff]
    %v516 = vld [vmem:[#allocation7 + $0xad0] sm:$0xff]
    %v517 = vld [vmem:[#allocation7 + $0xad8] sm:$0xff]
    %v518 = vld [vmem:[#allocation7 + $0xae0] sm:$0xff]
    %v519 = vld [vmem:[#allocation7 + $0xae8] sm:$0xff]
    %v520 = vld [vmem:[#allocation7 + $0xaf0] sm:$0xff]
    %v521 = vld [vmem:[#allocation7 + $0xaf8] sm:$0xff]
    %v522 = vld [vmem:[#allocation7 + $0xb00] sm:$0xff]
    %v523 = vld [vmem:[#allocation7 + $0xb08] sm:$0xff]
    %v524 = vld [vmem:[#allocation7 + $0xb10] sm:$0xff]
    %v525 = vld [vmem:[#allocation7 + $0xb18] sm:$0xff]
    %v526 = vld [vmem:[#allocation7 + $0xb20] sm:$0xff]
    %v527 = vld [vmem:[#allocation7 + $0xb28] sm:$0xff]
    %v528 = vld [vmem:[#allocation7 + $0xb30] sm:$0xff]
    %v529 = vld [vmem:[#allocation7 + $0xb38] sm:$0xff]
    %v530 = vld [vmem:[#allocation7 + $0xb40] sm:$0xff]
    %v531 = vld [vmem:[#allocation7 + $0xb48] sm:$0xff]
    %v532 = vld [vmem:[#allocation7 + $0xb50] sm:$0xff]
    %v533 = vld [vmem:[#allocation7 + $0xb58] sm:$0xff]
    %v534 = vld [vmem:[#allocation7 + $0xb60] sm:$0xff]
    %v535 = vld [vmem:[#allocation7 + $0xb68] sm:$0xff]
    %v536 = vld [vmem:[#allocation7 + $0xb70] sm:$0xff]
    %v537 = vld [vmem:[#allocation7 + $0xb78] sm:$0xff]
    %v538 = vld [vmem:[#allocation7 + $0xb80] sm:$0xff]
    %v539 = vld [vmem:[#allocation7 + $0xb88] sm:$0xff]
    %v540 = vld [vmem:[#allocation7 + $0xb90] sm:$0xff]
    %v541 = vld [vmem:[#allocation7 + $0xb98] sm:$0xff]
    %v542 = vld [vmem:[#allocation7 + $0xba0] sm:$0xff]
    %v543 = vld [vmem:[#allocation7 + $0xba8] sm:$0xff]
    %v544 = vld [vmem:[#allocation7 + $0xbb0] sm:$0xff]
    %v545 = vld [vmem:[#allocation7 + $0xbb8] sm:$0xff]
    %v546 = vld [vmem:[#allocation7 + $0xbc0] sm:$0xff]
    %v547 = vld [vmem:[#allocation7 + $0xbc8] sm:$0xff]
    %v548 = vld [vmem:[#allocation7 + $0xbd0] sm:$0xff]
    %v549 = vld [vmem:[#allocation7 + $0xbd8] sm:$0xff]
    %v550 = vld [vmem:[#allocation7 + $0xbe0] sm:$0xff]
    %v551 = vld [vmem:[#allocation7 + $0xbe8] sm:$0xff]
    %v552 = vld [vmem:[#allocation7 + $0xbf0] sm:$0xff]
    %v553 = vld [vmem:[#allocation7 + $0xbf8] sm:$0xff]
    %v554 = vld [vmem:[#allocation7 + $0xc00] sm:$0xff]
    %v555 = vld [vmem:[#allocation7 + $0xc08] sm:$0xff]
    %v556 = vld [vmem:[#allocation7 + $0xc10] sm:$0xff]
    %v557 = vld [vmem:[#allocation7 + $0xc18] sm:$0xff]
    %v558 = vld [vmem:[#allocation7 + $0xc20] sm:$0xff]
    %v559 = vld [vmem:[#allocation7 + $0xc28] sm:$0xff]
    %v560 = vld [vmem:[#allocation7 + $0xc30] sm:$0xff]
    %v561 = vld [vmem:[#allocation7 + $0xc38] sm:$0xff]
    %v562 = vld [vmem:[#allocation8] sm:$0xf]
    %v564 = vlaneseq
    %v565 = vshrl.u32 %v564, 7
    %v566 = vsub.s32 0, %v565
    %v567 = vrot.slane %v562, %v566
    %v568 = vlaneseq
    %v569 = vshrl.u32 %v568, 7
    %v570 = vsub.s32 1, %v569
    %v571 = vrot.slane %v562, %v570
    %v572 = vlaneseq
    %v573 = vshrl.u32 %v572, 7
    %v574 = vsub.s32 2, %v573
    %v575 = vrot.slane %v562, %v574
    %v576 = vlaneseq
    %v577 = vshrl.u32 %v576, 7
    %v578 = vsub.s32 3, %v577
    %v579 = vrot.slane %v562, %v578
    %vm584 = vcmask 130048
    %v586 = vsel %vm584, %v169, 0
    %588 = vmatprep.subr.mxu0 %v171
    %589 = vmatpush1.msra.mxu0 %v170
    %590 = vmatprep.subr.mxu0 %v175
    %591 = vmatpush1.msra.mxu0 %v174
    %592 = vmatprep.subr.mxu0 %v179
    %593 = vmatpush1.msra.mxu0 %v178
    %594 = vmatprep.subr.mxu0 %v183
    %595 = vmatpush1.msra.mxu0 %v182
    %596 = vmatprep.subr.mxu0 %v187
    %597 = vmatpush1.msra.mxu0 %v186
    %598 = vmatprep.subr.mxu0 %v191
    %599 = vmatpush1.msra.mxu0 %v190
    %600 = vmatprep.subr.mxu0 %v195
    %601 = vmatpush1.msra.mxu0 %v194
    %602 = vmatprep.subr.mxu0 %v199
    %603 = vmatpush1.msra.mxu0 %v198
    %604 = vmatprep.subr.mxu0 %v203
    %605 = vmatpush1.msra.mxu0 %v202
    %606 = vmatprep.subr.mxu0 %v207
    %607 = vmatpush1.msra.mxu0 %v206
    %608 = vmatprep.subr.mxu0 %v211
    %609 = vmatpush1.msra.mxu0 %v210
    %610 = vmatprep.subr.mxu0 %v215
    %611 = vmatpush1.msra.mxu0 %v214
    %612 = vmatprep.subr.mxu0 %v219
    %613 = vmatpush1.msra.mxu0 %v218
    %614 = vmatprep.subr.mxu0 %v223
    %615 = vmatpush1.msra.mxu0 %v222
    %616 = vmatprep.subr.mxu0 %v227
    %617 = vmatpush1.msra.mxu0 %v226
    %618 = vmatprep.subr.mxu0 %v231
    %619 = vmatpush1.msra.mxu0 %v230
    %620 = vmatprep.subr.mxu0 %v235
    %621 = vmatpush1.msra.mxu0 %v234
    %622 = vmatprep.subr.mxu0 %v239
    %623 = vmatpush1.msra.mxu0 %v238
    %624 = vmatprep.subr.mxu0 %v243
    %625 = vmatpush1.msra.mxu0 %v242
    %626 = vmatprep.subr.mxu0 %v247
    %627 = vmatpush1.msra.mxu0 %v246
    %628 = vmatprep.subr.mxu0 %v251
    %629 = vmatpush1.msra.mxu0 %v250
    %630 = vmatprep.subr.mxu0 %v255
    %631 = vmatpush1.msra.mxu0 %v254
    %632 = vmatprep.subr.mxu0 %v259
    %633 = vmatpush1.msra.mxu0 %v258
    %634 = vmatprep.subr.mxu0 %v263
    %635 = vmatpush1.msra.mxu0 %v262
    %636 = vmatprep.subr.mxu0 %v267
    %637 = vmatpush1.msra.mxu0 %v266
    %638 = vmatprep.subr.mxu0 %v271
    %639 = vmatpush1.msra.mxu0 %v270
    %640 = vmatprep.subr.mxu0 %v275
    %641 = vmatpush1.msra.mxu0 %v274
    %642 = vmatprep.subr.mxu0 %v279
    %643 = vmatpush1.msra.mxu0 %v278
    %644 = vmatprep.subr.mxu0 %v283
    %645 = vmatpush1.msra.mxu0 %v282
    %646 = vmatprep.subr.mxu0 %v287
    %647 = vmatpush1.msra.mxu0 %v286
    %648 = vmatprep.subr.mxu0 %v291
    %649 = vmatpush1.msra.mxu0 %v290
    %650 = vmatprep.subr.mxu0 %v295
    %651 = vmatpush1.msra.mxu0 %v294
    %652 = vmatprep.mubr.f32.mxu0 %v164
    %653 = vmatmul.mubr.f32.gmra.mrb[0].mxu0 %v163
    %v654 = vpop.f32.mrb[0].mxu0
    %v655 = vadd.f32 %v567, %v654
    %v656 = vpop.f32.mrb[0].mxu0
    %v657 = vadd.f32 %v571, %v656
    %658 = vdwg.mxu0
    %659 = vmatprep.subr.mxu0 %v299
    %660 = vmatpush1.msra.mxu0 %v298
    %661 = vmatprep.subr.mxu0 %v303
    %662 = vmatpush1.msra.mxu0 %v302
    %663 = vmatprep.subr.mxu0 %v307
    %664 = vmatpush1.msra.mxu0 %v306
    %665 = vmatprep.subr.mxu0 %v311
    %666 = vmatpush1.msra.mxu0 %v310
    %667 = vmatprep.subr.mxu0 %v315
    %668 = vmatpush1.msra.mxu0 %v314
    %669 = vmatprep.subr.mxu0 %v319
    %670 = vmatpush1.msra.mxu0 %v318
    %671 = vmatprep.subr.mxu0 %v323
    %672 = vmatpush1.msra.mxu0 %v322
    %673 = vmatprep.subr.mxu0 %v327
    %674 = vmatpush1.msra.mxu0 %v326
    %675 = vmatprep.subr.mxu0 %v331
    %676 = vmatpush1.msra.mxu0 %v330
    %677 = vmatprep.subr.mxu0 %v335
    %678 = vmatpush1.msra.mxu0 %v334
    %679 = vmatprep.subr.mxu0 %v339
    %680 = vmatpush1.msra.mxu0 %v338
    %681 = vmatprep.subr.mxu0 %v343
    %682 = vmatpush1.msra.mxu0 %v342
    %683 = vmatprep.subr.mxu0 %v347
    %684 = vmatpush1.msra.mxu0 %v346
    %685 = vmatprep.subr.mxu0 %v351
    %686 = vmatpush1.msra.mxu0 %v350
    %687 = vmatprep.subr.mxu0 %v355
    %688 = vmatpush1.msra.mxu0 %v354
    %689 = vmatprep.subr.mxu0 %v359
    %690 = vmatpush1.msra.mxu0 %v358
    %691 = vmatprep.subr.mxu0 %v363
    %692 = vmatpush1.msra.mxu0 %v362
    %693 = vmatprep.subr.mxu0 %v367
    %694 = vmatpush1.msra.mxu0 %v366
    %695 = vmatprep.subr.mxu0 %v371
    %696 = vmatpush1.msra.mxu0 %v370
    %697 = vmatprep.subr.mxu0 %v375
    %698 = vmatpush1.msra.mxu0 %v374
    %699 = vmatprep.subr.mxu0 %v379
    %700 = vmatpush1.msra.mxu0 %v378
    %701 = vmatprep.subr.mxu0 %v383
    %702 = vmatpush1.msra.mxu0 %v382
    %703 = vmatprep.subr.mxu0 %v387
    %704 = vmatpush1.msra.mxu0 %v386
    %705 = vmatprep.subr.mxu0 %v391
    %706 = vmatpush1.msra.mxu0 %v390
    %707 = vmatprep.subr.mxu0 %v395
    %708 = vmatpush1.msra.mxu0 %v394
    %709 = vmatprep.subr.mxu0 %v399
    %710 = vmatpush1.msra.mxu0 %v398
    %711 = vmatprep.subr.mxu0 %v403
    %712 = vmatpush1.msra.mxu0 %v402
    %713 = vmatprep.subr.mxu0 %v407
    %714 = vmatpush1.msra.mxu0 %v406
    %715 = vmatprep.subr.mxu0 %v411
    %716 = vmatpush1.msra.mxu0 %v410
    %717 = vmatprep.subr.mxu0 %v415
    %718 = vmatpush1.msra.mxu0 %v414
    %719 = vmatprep.subr.mxu0 %v419
    %720 = vmatpush1.msra.mxu0 %v418
    %721 = vmatprep.subr.mxu0 %v423
    %722 = vmatpush1.msra.mxu0 %v422
    %723 = vmatprep.mubr.f32.mxu0 %v166
    %724 = vmatmul.mubr.f32.gmra.mrb[0].mxu0 %v165
    %v725 = vpop.f32.mrb[0].mxu0
    %v726 = vadd.f32 %v655, %v725
    %v727 = vpop.f32.mrb[0].mxu0
    %v728 = vadd.f32 %v657, %v727
    %729 = vdwg.mxu0
    %730 = vmatprep.subr.mxu0 %v427
    %731 = vmatpush1.msra.mxu0 %v426
    %732 = vmatprep.subr.mxu0 %v431
    %733 = vmatpush1.msra.mxu0 %v430
    %734 = vmatprep.subr.mxu0 %v435
    %735 = vmatpush1.msra.mxu0 %v434
    %736 = vmatprep.subr.mxu0 %v439
    %737 = vmatpush1.msra.mxu0 %v438
    %738 = vmatprep.subr.mxu0 %v443
    %739 = vmatpush1.msra.mxu0 %v442
    %740 = vmatprep.subr.mxu0 %v447
    %741 = vmatpush1.msra.mxu0 %v446
    %742 = vmatprep.subr.mxu0 %v451
    %743 = vmatpush1.msra.mxu0 %v450
    %744 = vmatprep.subr.mxu0 %v455
    %745 = vmatpush1.msra.mxu0 %v454
    %746 = vmatprep.subr.mxu0 %v459
    %747 = vmatpush1.msra.mxu0 %v458
    %748 = vmatprep.subr.mxu0 %v463
    %749 = vmatpush1.msra.mxu0 %v462
    %750 = vmatprep.subr.mxu0 %v467
    %751 = vmatpush1.msra.mxu0 %v466
    %752 = vmatprep.subr.mxu0 %v471
    %753 = vmatpush1.msra.mxu0 %v470
    %754 = vmatprep.subr.mxu0 %v475
    %755 = vmatpush1.msra.mxu0 %v474
    %756 = vmatprep.subr.mxu0 %v479
    %757 = vmatpush1.msra.mxu0 %v478
    %758 = vmatprep.subr.mxu0 %v483
    %759 = vmatpush1.msra.mxu0 %v482
    %760 = vmatprep.subr.mxu0 %v487
    %761 = vmatpush1.msra.mxu0 %v486
    %762 = vmatprep.subr.mxu0 %v491
    %763 = vmatpush1.msra.mxu0 %v490
    %764 = vmatprep.subr.mxu0 %v495
    %765 = vmatpush1.msra.mxu0 %v494
    %766 = vmatprep.subr.mxu0 %v499
    %767 = vmatpush1.msra.mxu0 %v498
    %768 = vmatprep.subr.mxu0 %v503
    %769 = vmatpush1.msra.mxu0 %v502
    %770 = vmatprep.subr.mxu0 %v507
    %771 = vmatpush1.msra.mxu0 %v506
    %772 = vmatprep.subr.mxu0 %v511
    %773 = vmatpush1.msra.mxu0 %v510
    %774 = vmatprep.subr.mxu0 %v515
    %775 = vmatpush1.msra.mxu0 %v514
    %776 = vmatprep.subr.mxu0 %v519
    %777 = vmatpush1.msra.mxu0 %v518
    %778 = vmatprep.subr.mxu0 %v523
    %779 = vmatpush1.msra.mxu0 %v522
    %780 = vmatprep.subr.mxu0 %v527
    %781 = vmatpush1.msra.mxu0 %v526
    %782 = vmatprep.subr.mxu0 %v531
    %783 = vmatpush1.msra.mxu0 %v530
    %784 = vmatprep.subr.mxu0 %v535
    %785 = vmatpush1.msra.mxu0 %v534
    %786 = vmatprep.subr.mxu0 %v539
    %787 = vmatpush1.msra.mxu0 %v538
    %788 = vmatprep.subr.mxu0 %v543
    %789 = vmatpush1.msra.mxu0 %v542
    %790 = vmatprep.subr.mxu0 %v547
    %791 = vmatpush1.msra.mxu0 %v546
    %792 = vmatprep.subr.mxu0 %v551
    %793 = vmatpush1.msra.mxu0 %v550
    %794 = vmatprep.mubr.f32.mxu0 %v168
    %795 = vmatmul.mubr.f32.gmra.mrb[0].mxu0 %v167
    %v796 = vpop.f32.mrb[0].mxu0
    %v797 = vadd.f32 %v726, %v796
    %v798 = vpop.f32.mrb[0].mxu0
    %v799 = vadd.f32 %v728, %v798
    %800 = vdwg.mxu0
    %801 = vmatprep.subr.mxu0 %v555
    %802 = vmatpush1.msra.mxu0 %v554
    %803 = vmatprep.subr.mxu0 %v559
    %804 = vmatpush1.msra.mxu0 %v558
    %805 = vmatprep.subr.mxu0 0.0
    %806 = vmatpush1.msra.mxu0 0.0
    %807 = vmatprep.subr.mxu0 0.0
    %808 = vmatpush1.msra.mxu0 0.0
    %809 = vmatprep.subr.mxu0 0.0
    %810 = vmatpush1.msra.mxu0 0.0
    %811 = vmatprep.subr.mxu0 0.0
    %812 = vmatpush1.msra.mxu0 0.0
    %813 = vmatprep.subr.mxu0 0.0
    %814 = vmatpush1.msra.mxu0 0.0
    %815 = vmatprep.subr.mxu0 0.0
    %816 = vmatpush1.msra.mxu0 0.0
    %817 = vmatprep.subr.mxu0 0.0
    %818 = vmatpush1.msra.mxu0 0.0
    %819 = vmatprep.subr.mxu0 0.0
    %820 = vmatpush1.msra.mxu0 0.0
    %821 = vmatprep.subr.mxu0 0.0
    %822 = vmatpush1.msra.mxu0 0.0
    %823 = vmatprep.subr.mxu0 0.0
    %824 = vmatpush1.msra.mxu0 0.0
    %825 = vmatprep.subr.mxu0 0.0
    %826 = vmatpush1.msra.mxu0 0.0
    %827 = vmatprep.subr.mxu0 0.0
    %828 = vmatpush1.msra.mxu0 0.0
    %829 = vmatprep.subr.mxu0 0.0
    %830 = vmatpush1.msra.mxu0 0.0
    %831 = vmatprep.subr.mxu0 0.0
    %832 = vmatpush1.msra.mxu0 0.0
    %833 = vmatprep.subr.mxu0 0.0
    %834 = vmatpush1.msra.mxu0 0.0
    %835 = vmatprep.subr.mxu0 0.0
    %836 = vmatpush1.msra.mxu0 0.0
    %837 = vmatprep.subr.mxu0 0.0
    %838 = vmatpush1.msra.mxu0 0.0
    %839 = vmatprep.subr.mxu0 0.0
    %840 = vmatpush1.msra.mxu0 0.0
    %841 = vmatprep.subr.mxu0 0.0
    %842 = vmatpush1.msra.mxu0 0.0
    %843 = vmatprep.subr.mxu0 0.0
    %844 = vmatpush1.msra.mxu0 0.0
    %845 = vmatprep.subr.mxu0 0.0
    %846 = vmatpush1.msra.mxu0 0.0
    %847 = vmatprep.subr.mxu0 0.0
    %848 = vmatpush1.msra.mxu0 0.0
    %849 = vmatprep.subr.mxu0 0.0
    %850 = vmatpush1.msra.mxu0 0.0
    %851 = vmatprep.subr.mxu0 0.0
    %852 = vmatpush1.msra.mxu0 0.0
    %853 = vmatprep.subr.mxu0 0.0
    %854 = vmatpush1.msra.mxu0 0.0
    %855 = vmatprep.subr.mxu0 0.0
    %856 = vmatpush1.msra.mxu0 0.0
    %857 = vmatprep.subr.mxu0 0.0
    %858 = vmatpush1.msra.mxu0 0.0
    %859 = vmatprep.subr.mxu0 0.0
    %860 = vmatpush1.msra.mxu0 0.0
    %861 = vmatprep.subr.mxu0 0.0
    %862 = vmatpush1.msra.mxu0 0.0
    %863 = vmatprep.subr.mxu0 0.0
    %864 = vmatpush1.msra.mxu0 0.0
    %865 = vmatprep.mubr.f32.mxu0 0.0
    %866 = vmatmul.mubr.f32.gmra.mrb[0].mxu0 %v586
    %v867 = vpop.f32.mrb[0].mxu0
    %v868 = vadd.f32 %v797, %v867
    %v869 = vpop.f32.mrb[0].mxu0
    %v870 = vadd.f32 %v799, %v869
    %871 = vdwg.mxu0
    %872 = vmatprep.subr.mxu0 %v173
    %873 = vmatpush1.msra.mxu0 %v172
    %874 = vmatprep.subr.mxu0 %v177
    %875 = vmatpush1.msra.mxu0 %v176
    %876 = vmatprep.subr.mxu0 %v181
    %877 = vmatpush1.msra.mxu0 %v180
    %878 = vmatprep.subr.mxu0 %v185
    %879 = vmatpush1.msra.mxu0 %v184
    %880 = vmatprep.subr.mxu0 %v189
    %881 = vmatpush1.msra.mxu0 %v188
    %882 = vmatprep.subr.mxu0 %v193
    %883 = vmatpush1.msra.mxu0 %v192
    %884 = vmatprep.subr.mxu0 %v197
    %885 = vmatpush1.msra.mxu0 %v196
    %886 = vmatprep.subr.mxu0 %v201
    %887 = vmatpush1.msra.mxu0 %v200
    %888 = vmatprep.subr.mxu0 %v205
    %889 = vmatpush1.msra.mxu0 %v204
    %890 = vmatprep.subr.mxu0 %v209
    %891 = vmatpush1.msra.mxu0 %v208
    %892 = vmatprep.subr.mxu0 %v213
    %893 = vmatpush1.msra.mxu0 %v212
    %894 = vmatprep.subr.mxu0 %v217
    %895 = vmatpush1.msra.mxu0 %v216
    %896 = vmatprep.subr.mxu0 %v221
    %897 = vmatpush1.msra.mxu0 %v220
    %898 = vmatprep.subr.mxu0 %v225
    %899 = vmatpush1.msra.mxu0 %v224
    %900 = vmatprep.subr.mxu0 %v229
    %901 = vmatpush1.msra.mxu0 %v228
    %902 = vmatprep.subr.mxu0 %v233
    %903 = vmatpush1.msra.mxu0 %v232
    %904 = vmatprep.subr.mxu0 %v237
    %905 = vmatpush1.msra.mxu0 %v236
    %906 = vmatprep.subr.mxu0 %v241
    %907 = vmatpush1.msra.mxu0 %v240
    %908 = vmatprep.subr.mxu0 %v245
    %909 = vmatpush1.msra.mxu0 %v244
    %910 = vmatprep.subr.mxu0 %v249
    %911 = vmatpush1.msra.mxu0 %v248
    %912 = vmatprep.subr.mxu0 %v253
    %913 = vmatpush1.msra.mxu0 %v252
    %914 = vmatprep.subr.mxu0 %v257
    %915 = vmatpush1.msra.mxu0 %v256
    %916 = vmatprep.subr.mxu0 %v261
    %917 = vmatpush1.msra.mxu0 %v260
    %918 = vmatprep.subr.mxu0 %v265
    %919 = vmatpush1.msra.mxu0 %v264
    %920 = vmatprep.subr.mxu0 %v269
    %921 = vmatpush1.msra.mxu0 %v268
    %922 = vmatprep.subr.mxu0 %v273
    %923 = vmatpush1.msra.mxu0 %v272
    %924 = vmatprep.subr.mxu0 %v277
    %925 = vmatpush1.msra.mxu0 %v276
    %926 = vmatprep.subr.mxu0 %v281
    %927 = vmatpush1.msra.mxu0 %v280
    %928 = vmatprep.subr.mxu0 %v285
    %929 = vmatpush1.msra.mxu0 %v284
    %930 = vmatprep.subr.mxu0 %v289
    %931 = vmatpush1.msra.mxu0 %v288
    %932 = vmatprep.subr.mxu0 %v293
    %933 = vmatpush1.msra.mxu0 %v292
    %934 = vmatprep.subr.mxu0 %v297
    %935 = vmatpush1.msra.mxu0 %v296
    %936 = vmatprep.mubr.f32.mxu0 %v164
    %937 = vmatmul.mubr.f32.gmra.mrb[0].mxu0 %v163
    %v938 = vpop.f32.mrb[0].mxu0
    %v939 = vadd.f32 %v575, %v938
    %v940 = vpop.f32.mrb[0].mxu0
    %v941 = vadd.f32 %v579, %v940
    %942 = vdwg.mxu0
    %943 = vmatprep.subr.mxu0 %v301
    %944 = vmatpush1.msra.mxu0 %v300
    %945 = vmatprep.subr.mxu0 %v305
    %946 = vmatpush1.msra.mxu0 %v304
    %947 = vmatprep.subr.mxu0 %v309
    %948 = vmatpush1.msra.mxu0 %v308
    %949 = vmatprep.subr.mxu0 %v313
    %950 = vmatpush1.msra.mxu0 %v312
    %951 = vmatprep.subr.mxu0 %v317
    %952 = vmatpush1.msra.mxu0 %v316
    %953 = vmatprep.subr.mxu0 %v321
    %954 = vmatpush1.msra.mxu0 %v320
    %955 = vmatprep.subr.mxu0 %v325
    %956 = vmatpush1.msra.mxu0 %v324
    %957 = vmatprep.subr.mxu0 %v329
    %958 = vmatpush1.msra.mxu0 %v328
    %959 = vmatprep.subr.mxu0 %v333
    %960 = vmatpush1.msra.mxu0 %v332
    %961 = vmatprep.subr.mxu0 %v337
    %962 = vmatpush1.msra.mxu0 %v336
    %963 = vmatprep.subr.mxu0 %v341
    %964 = vmatpush1.msra.mxu0 %v340
    %965 = vmatprep.subr.mxu0 %v345
    %966 = vmatpush1.msra.mxu0 %v344
    %967 = vmatprep.subr.mxu0 %v349
    %968 = vmatpush1.msra.mxu0 %v348
    %969 = vmatprep.subr.mxu0 %v353
    %970 = vmatpush1.msra.mxu0 %v352
    %971 = vmatprep.subr.mxu0 %v357
    %972 = vmatpush1.msra.mxu0 %v356
    %973 = vmatprep.subr.mxu0 %v361
    %974 = vmatpush1.msra.mxu0 %v360
    %975 = vmatprep.subr.mxu0 %v365
    %976 = vmatpush1.msra.mxu0 %v364
    %977 = vmatprep.subr.mxu0 %v369
    %978 = vmatpush1.msra.mxu0 %v368
    %979 = vmatprep.subr.mxu0 %v373
    %980 = vmatpush1.msra.mxu0 %v372
    %981 = vmatprep.subr.mxu0 %v377
    %982 = vmatpush1.msra.mxu0 %v376
    %983 = vmatprep.subr.mxu0 %v381
    %984 = vmatpush1.msra.mxu0 %v380
    %985 = vmatprep.subr.mxu0 %v385
    %986 = vmatpush1.msra.mxu0 %v384
    %987 = vmatprep.subr.mxu0 %v389
    %988 = vmatpush1.msra.mxu0 %v388
    %989 = vmatprep.subr.mxu0 %v393
    %990 = vmatpush1.msra.mxu0 %v392
    %991 = vmatprep.subr.mxu0 %v397
    %992 = vmatpush1.msra.mxu0 %v396
    %993 = vmatprep.subr.mxu0 %v401
    %994 = vmatpush1.msra.mxu0 %v400
    %995 = vmatprep.subr.mxu0 %v405
    %996 = vmatpush1.msra.mxu0 %v404
    %997 = vmatprep.subr.mxu0 %v409
    %998 = vmatpush1.msra.mxu0 %v408
    %999 = vmatprep.subr.mxu0 %v413
    %1000 = vmatpush1.msra.mxu0 %v412
    %1001 = vmatprep.subr.mxu0 %v417
    %1002 = vmatpush1.msra.mxu0 %v416
    %1003 = vmatprep.subr.mxu0 %v421
    %1004 = vmatpush1.msra.mxu0 %v420
    %1005 = vmatprep.subr.mxu0 %v425
    %1006 = vmatpush1.msra.mxu0 %v424
    %1007 = vmatprep.mubr.f32.mxu0 %v166
    %1008 = vmatmul.mubr.f32.gmra.mrb[0].mxu0 %v165
    %v1009 = vpop.f32.mrb[0].mxu0
    %v1010 = vadd.f32 %v939, %v1009
    %v1011 = vpop.f32.mrb[0].mxu0
    %v1012 = vadd.f32 %v941, %v1011
    %1013 = vdwg.mxu0
    %1014 = vmatprep.subr.mxu0 %v429
    %1015 = vmatpush1.msra.mxu0 %v428
    %1016 = vmatprep.subr.mxu0 %v433
    %1017 = vmatpush1.msra.mxu0 %v432
    %1018 = vmatprep.subr.mxu0 %v437
    %1019 = vmatpush1.msra.mxu0 %v436
    %1020 = vmatprep.subr.mxu0 %v441
    %1021 = vmatpush1.msra.mxu0 %v440
    %1022 = vmatprep.subr.mxu0 %v445
    %1023 = vmatpush1.msra.mxu0 %v444
    %1024 = vmatprep.subr.mxu0 %v449
    %1025 = vmatpush1.msra.mxu0 %v448
    %1026 = vmatprep.subr.mxu0 %v453
    %1027 = vmatpush1.msra.mxu0 %v452
    %1028 = vmatprep.subr.mxu0 %v457
    %1029 = vmatpush1.msra.mxu0 %v456
    %1030 = vmatprep.subr.mxu0 %v461
    %1031 = vmatpush1.msra.mxu0 %v460
    %1032 = vmatprep.subr.mxu0 %v465
    %1033 = vmatpush1.msra.mxu0 %v464
    %1034 = vmatprep.subr.mxu0 %v469
    %1035 = vmatpush1.msra.mxu0 %v468
    %1036 = vmatprep.subr.mxu0 %v473
    %1037 = vmatpush1.msra.mxu0 %v472
    %1038 = vmatprep.subr.mxu0 %v477
    %1039 = vmatpush1.msra.mxu0 %v476
    %1040 = vmatprep.subr.mxu0 %v481
    %1041 = vmatpush1.msra.mxu0 %v480
    %1042 = vmatprep.subr.mxu0 %v485
    %1043 = vmatpush1.msra.mxu0 %v484
    %1044 = vmatprep.subr.mxu0 %v489
    %1045 = vmatpush1.msra.mxu0 %v488
    %1046 = vmatprep.subr.mxu0 %v493
    %1047 = vmatpush1.msra.mxu0 %v492
    %1048 = vmatprep.subr.mxu0 %v497
    %1049 = vmatpush1.msra.mxu0 %v496
    %1050 = vmatprep.subr.mxu0 %v501
    %1051 = vmatpush1.msra.mxu0 %v500
    %1052 = vmatprep.subr.mxu0 %v505
    %1053 = vmatpush1.msra.mxu0 %v504
    %1054 = vmatprep.subr.mxu0 %v509
    %1055 = vmatpush1.msra.mxu0 %v508
    %1056 = vmatprep.subr.mxu0 %v513
    %1057 = vmatpush1.msra.mxu0 %v512
    %1058 = vmatprep.subr.mxu0 %v517
    %1059 = vmatpush1.msra.mxu0 %v516
    %1060 = vmatprep.subr.mxu0 %v521
    %1061 = vmatpush1.msra.mxu0 %v520
    %1062 = vmatprep.subr.mxu0 %v525
    %1063 = vmatpush1.msra.mxu0 %v524
    %1064 = vmatprep.subr.mxu0 %v529
    %1065 = vmatpush1.msra.mxu0 %v528
    %1066 = vmatprep.subr.mxu0 %v533
    %1067 = vmatpush1.msra.mxu0 %v532
    %1068 = vmatprep.subr.mxu0 %v537
    %1069 = vmatpush1.msra.mxu0 %v536
    %1070 = vmatprep.subr.mxu0 %v541
    %1071 = vmatpush1.msra.mxu0 %v540
    %1072 = vmatprep.subr.mxu0 %v545
    %1073 = vmatpush1.msra.mxu0 %v544
    %1074 = vmatprep.subr.mxu0 %v549
    %1075 = vmatpush1.msra.mxu0 %v548
    %1076 = vmatprep.subr.mxu0 %v553
    %1077 = vmatpush1.msra.mxu0 %v552
    %1078 = vmatprep.mubr.f32.mxu0 %v168
    %1079 = vmatmul.mubr.f32.gmra.mrb[0].mxu0 %v167
    %v1080 = vpop.f32.mrb[0].mxu0
    %v1081 = vadd.f32 %v1010, %v1080
    %v1082 = vpop.f32.mrb[0].mxu0
    %v1083 = vadd.f32 %v1012, %v1082
    %1084 = vdwg.mxu0
    %1085 = vmatprep.subr.mxu0 %v557
    %1086 = vmatpush1.msra.mxu0 %v556
    %1087 = vmatprep.subr.mxu0 %v561
    %1088 = vmatpush1.msra.mxu0 %v560
    %1089 = vmatprep.subr.mxu0 0.0
    %1090 = vmatpush1.msra.mxu0 0.0
    %1091 = vmatprep.subr.mxu0 0.0
    %1092 = vmatpush1.msra.mxu0 0.0
    %1093 = vmatprep.subr.mxu0 0.0
    %1094 = vmatpush1.msra.mxu0 0.0
    %1095 = vmatprep.subr.mxu0 0.0
    %1096 = vmatpush1.msra.mxu0 0.0
    %1097 = vmatprep.subr.mxu0 0.0
    %1098 = vmatpush1.msra.mxu0 0.0
    %1099 = vmatprep.subr.mxu0 0.0
    %1100 = vmatpush1.msra.mxu0 0.0
    %1101 = vmatprep.subr.mxu0 0.0
    %1102 = vmatpush1.msra.mxu0 0.0
    %1103 = vmatprep.subr.mxu0 0.0
    %1104 = vmatpush1.msra.mxu0 0.0
    %1105 = vmatprep.subr.mxu0 0.0
    %1106 = vmatpush1.msra.mxu0 0.0
    %1107 = vmatprep.subr.mxu0 0.0
    %1108 = vmatpush1.msra.mxu0 0.0
    %1109 = vmatprep.subr.mxu0 0.0
    %1110 = vmatpush1.msra.mxu0 0.0
    %1111 = vmatprep.subr.mxu0 0.0
    %1112 = vmatpush1.msra.mxu0 0.0
    %1113 = vmatprep.subr.mxu0 0.0
    %1114 = vmatpush1.msra.mxu0 0.0
    %1115 = vmatprep.subr.mxu0 0.0
    %1116 = vmatpush1.msra.mxu0 0.0
    %1117 = vmatprep.subr.mxu0 0.0
    %1118 = vmatpush1.msra.mxu0 0.0
    %1119 = vmatprep.subr.mxu0 0.0
    %1120 = vmatpush1.msra.mxu0 0.0
    %1121 = vmatprep.subr.mxu0 0.0
    %1122 = vmatpush1.msra.mxu0 0.0
    %1123 = vmatprep.subr.mxu0 0.0
    %1124 = vmatpush1.msra.mxu0 0.0
    %1125 = vmatprep.subr.mxu0 0.0
    %1126 = vmatpush1.msra.mxu0 0.0
    %1127 = vmatprep.subr.mxu0 0.0
    %1128 = vmatpush1.msra.mxu0 0.0
    %1129 = vmatprep.subr.mxu0 0.0
    %1130 = vmatpush1.msra.mxu0 0.0
    %1131 = vmatprep.subr.mxu0 0.0
    %1132 = vmatpush1.msra.mxu0 0.0
    %1133 = vmatprep.subr.mxu0 0.0
    %1134 = vmatpush1.msra.mxu0 0.0
    %1135 = vmatprep.subr.mxu0 0.0
    %1136 = vmatpush1.msra.mxu0 0.0
    %1137 = vmatprep.subr.mxu0 0.0
    %1138 = vmatpush1.msra.mxu0 0.0
    %1139 = vmatprep.subr.mxu0 0.0
    %1140 = vmatpush1.msra.mxu0 0.0
    %1141 = vmatprep.subr.mxu0 0.0
    %1142 = vmatpush1.msra.mxu0 0.0
    %1143 = vmatprep.subr.mxu0 0.0
    %1144 = vmatpush1.msra.mxu0 0.0
    %1145 = vmatprep.subr.mxu0 0.0
    %1146 = vmatpush1.msra.mxu0 0.0
    %1147 = vmatprep.subr.mxu0 0.0
    %1148 = vmatpush1.msra.mxu0 0.0
    %1149 = vmatprep.mubr.f32.mxu0 0.0
    %1150 = vmatmul.mubr.f32.gmra.mrb[0].mxu0 %v586
    %v1151 = vpop.f32.mrb[0].mxu0
    %v1152 = vadd.f32 %v1081, %v1151
    %v1153 = vpop.f32.mrb[0].mxu0
    %v1154 = vadd.f32 %v1083, %v1153
    %1155 = vdwg.mxu0
    %v1156 = vmax.f32 %v868, 0.0
    %v1157 = vmax.f32 %v870, 0.0
    %v1158 = vmax.f32 %v1152, 0.0
    %v1159 = vmax.f32 %v1154, 0.0
    %v1160 = vld [vmem:[#allocation10] sm:$0xff]
    %v1161 = vld [vmem:[#allocation10 + $0x8] sm:$0xff]
    %v1162 = vld [vmem:[#allocation10 + $0x10] sm:$0xff]
    %v1163 = vld [vmem:[#allocation10 + $0x18] sm:$0xff]
    %v1164 = vld [vmem:[#allocation10 + $0x20] sm:$0xff]
    %v1165 = vld [vmem:[#allocation10 + $0x28] sm:$0xff]
    %v1166 = vld [vmem:[#allocation10 + $0x30] sm:$0xff]
    %v1167 = vld [vmem:[#allocation10 + $0x38] sm:$0xff]
    %v1168 = vld [vmem:[#allocation10 + $0x40] sm:$0xff]
    %v1169 = vld [vmem:[#allocation10 + $0x48] sm:$0xff]
    %v1170 = vld [vmem:[#allocation10 + $0x50] sm:$0xff]
    %v1171 = vld [vmem:[#allocation10 + $0x58] sm:$0xff]
    %v1172 = vld [vmem:[#allocation10 + $0x60] sm:$0xff]
    %v1173 = vld [vmem:[#allocation10 + $0x68] sm:$0xff]
    %v1174 = vld [vmem:[#allocation10 + $0x70] sm:$0xff]
    %v1175 = vld [vmem:[#allocation10 + $0x78] sm:$0xff]
    %v1176 = vld [vmem:[#allocation10 + $0x80] sm:$0xff]
    %v1177 = vld [vmem:[#allocation10 + $0x88] sm:$0xff]
    %v1178 = vld [vmem:[#allocation10 + $0x90] sm:$0xff]
    %v1179 = vld [vmem:[#allocation10 + $0x98] sm:$0xff]
    %v1180 = vld [vmem:[#allocation10 + $0xa0] sm:$0xff]
    %v1181 = vld [vmem:[#allocation10 + $0xa8] sm:$0xff]
    %v1182 = vld [vmem:[#allocation10 + $0xb0] sm:$0xff]
    %v1183 = vld [vmem:[#allocation10 + $0xb8] sm:$0xff]
    %v1184 = vld [vmem:[#allocation10 + $0xc0] sm:$0xff]
    %v1185 = vld [vmem:[#allocation10 + $0xc8] sm:$0xff]
    %v1186 = vld [vmem:[#allocation10 + $0xd0] sm:$0xff]
    %v1187 = vld [vmem:[#allocation10 + $0xd8] sm:$0xff]
    %v1188 = vld [vmem:[#allocation10 + $0xe0] sm:$0xff]
    %v1189 = vld [vmem:[#allocation10 + $0xe8] sm:$0xff]
    %v1190 = vld [vmem:[#allocation10 + $0xf0] sm:$0xff]
    %v1191 = vld [vmem:[#allocation10 + $0xf8] sm:$0xff]
    %v1192 = vld [vmem:[#allocation10 + $0x100] sm:$0xff]
    %v1193 = vld [vmem:[#allocation10 + $0x108] sm:$0xff]
    %v1194 = vld [vmem:[#allocation10 + $0x110] sm:$0xff]
    %v1195 = vld [vmem:[#allocation10 + $0x118] sm:$0xff]
    %v1196 = vld [vmem:[#allocation10 + $0x120] sm:$0xff]
    %v1197 = vld [vmem:[#allocation10 + $0x128] sm:$0xff]
    %v1198 = vld [vmem:[#allocation10 + $0x130] sm:$0xff]
    %v1199 = vld [vmem:[#allocation10 + $0x138] sm:$0xff]
    %v1200 = vld [vmem:[#allocation10 + $0x140] sm:$0xff]
    %v1201 = vld [vmem:[#allocation10 + $0x148] sm:$0xff]
    %v1202 = vld [vmem:[#allocation10 + $0x150] sm:$0xff]
    %v1203 = vld [vmem:[#allocation10 + $0x158] sm:$0xff]
    %v1204 = vld [vmem:[#allocation10 + $0x160] sm:$0xff]
    %v1205 = vld [vmem:[#allocation10 + $0x168] sm:$0xff]
    %v1206 = vld [vmem:[#allocation10 + $0x170] sm:$0xff]
    %v1207 = vld [vmem:[#allocation10 + $0x178] sm:$0xff]
    %v1208 = vld [vmem:[#allocation10 + $0x180] sm:$0xff]
    %v1209 = vld [vmem:[#allocation10 + $0x188] sm:$0xff]
    %v1210 = vld [vmem:[#allocation10 + $0x190] sm:$0xff]
    %v1211 = vld [vmem:[#allocation10 + $0x198] sm:$0xff]
    %v1212 = vld [vmem:[#allocation10 + $0x1a0] sm:$0xff]
    %v1213 = vld [vmem:[#allocation10 + $0x1a8] sm:$0xff]
    %v1214 = vld [vmem:[#allocation10 + $0x1b0] sm:$0xff]
    %v1215 = vld [vmem:[#allocation10 + $0x1b8] sm:$0xff]
    %v1216 = vld [vmem:[#allocation10 + $0x1c0] sm:$0xff]
    %v1217 = vld [vmem:[#allocation10 + $0x1c8] sm:$0xff]
    %v1218 = vld [vmem:[#allocation10 + $0x1d0] sm:$0xff]
    %v1219 = vld [vmem:[#allocation10 + $0x1d8] sm:$0xff]
    %v1220 = vld [vmem:[#allocation10 + $0x1e0] sm:$0xff]
    %v1221 = vld [vmem:[#allocation10 + $0x1e8] sm:$0xff]
    %v1222 = vld [vmem:[#allocation10 + $0x1f0] sm:$0xff]
    %v1223 = vld [vmem:[#allocation10 + $0x1f8] sm:$0xff]
    %v1224 = vld [vmem:[#allocation10 + $0x200] sm:$0xff]
    %v1225 = vld [vmem:[#allocation10 + $0x208] sm:$0xff]
    %v1226 = vld [vmem:[#allocation10 + $0x210] sm:$0xff]
    %v1227 = vld [vmem:[#allocation10 + $0x218] sm:$0xff]
    %v1228 = vld [vmem:[#allocation10 + $0x220] sm:$0xff]
    %v1229 = vld [vmem:[#allocation10 + $0x228] sm:$0xff]
    %v1230 = vld [vmem:[#allocation10 + $0x230] sm:$0xff]
    %v1231 = vld [vmem:[#allocation10 + $0x238] sm:$0xff]
    %v1232 = vld [vmem:[#allocation10 + $0x240] sm:$0xff]
    %v1233 = vld [vmem:[#allocation10 + $0x248] sm:$0xff]
    %v1234 = vld [vmem:[#allocation10 + $0x250] sm:$0xff]
    %v1235 = vld [vmem:[#allocation10 + $0x258] sm:$0xff]
    %v1236 = vld [vmem:[#allocation10 + $0x260] sm:$0xff]
    %v1237 = vld [vmem:[#allocation10 + $0x268] sm:$0xff]
    %v1238 = vld [vmem:[#allocation10 + $0x270] sm:$0xff]
    %v1239 = vld [vmem:[#allocation10 + $0x278] sm:$0xff]
    %v1240 = vld [vmem:[#allocation10 + $0x280] sm:$0xff]
    %v1241 = vld [vmem:[#allocation10 + $0x288] sm:$0xff]
    %v1242 = vld [vmem:[#allocation10 + $0x290] sm:$0xff]
    %v1243 = vld [vmem:[#allocation10 + $0x298] sm:$0xff]
    %v1244 = vld [vmem:[#allocation10 + $0x2a0] sm:$0xff]
    %v1245 = vld [vmem:[#allocation10 + $0x2a8] sm:$0xff]
    %v1246 = vld [vmem:[#allocation10 + $0x2b0] sm:$0xff]
    %v1247 = vld [vmem:[#allocation10 + $0x2b8] sm:$0xff]
    %v1248 = vld [vmem:[#allocation10 + $0x2c0] sm:$0xff]
    %v1249 = vld [vmem:[#allocation10 + $0x2c8] sm:$0xff]
    %v1250 = vld [vmem:[#allocation10 + $0x2d0] sm:$0xff]
    %v1251 = vld [vmem:[#allocation10 + $0x2d8] sm:$0xff]
    %v1252 = vld [vmem:[#allocation10 + $0x2e0] sm:$0xff]
    %v1253 = vld [vmem:[#allocation10 + $0x2e8] sm:$0xff]
    %v1254 = vld [vmem:[#allocation10 + $0x2f0] sm:$0xff]
    %v1255 = vld [vmem:[#allocation10 + $0x2f8] sm:$0xff]
    %v1256 = vld [vmem:[#allocation10 + $0x300] sm:$0xff]
    %v1257 = vld [vmem:[#allocation10 + $0x308] sm:$0xff]
    %v1258 = vld [vmem:[#allocation10 + $0x310] sm:$0xff]
    %v1259 = vld [vmem:[#allocation10 + $0x318] sm:$0xff]
    %v1260 = vld [vmem:[#allocation10 + $0x320] sm:$0xff]
    %v1261 = vld [vmem:[#allocation10 + $0x328] sm:$0xff]
    %v1262 = vld [vmem:[#allocation10 + $0x330] sm:$0xff]
    %v1263 = vld [vmem:[#allocation10 + $0x338] sm:$0xff]
    %v1264 = vld [vmem:[#allocation10 + $0x340] sm:$0xff]
    %v1265 = vld [vmem:[#allocation10 + $0x348] sm:$0xff]
    %v1266 = vld [vmem:[#allocation10 + $0x350] sm:$0xff]
    %v1267 = vld [vmem:[#allocation10 + $0x358] sm:$0xff]
    %v1268 = vld [vmem:[#allocation10 + $0x360] sm:$0xff]
    %v1269 = vld [vmem:[#allocation10 + $0x368] sm:$0xff]
    %v1270 = vld [vmem:[#allocation10 + $0x370] sm:$0xff]
    %v1271 = vld [vmem:[#allocation10 + $0x378] sm:$0xff]
    %v1272 = vld [vmem:[#allocation10 + $0x380] sm:$0xff]
    %v1273 = vld [vmem:[#allocation10 + $0x388] sm:$0xff]
    %v1274 = vld [vmem:[#allocation10 + $0x390] sm:$0xff]
    %v1275 = vld [vmem:[#allocation10 + $0x398] sm:$0xff]
    %v1276 = vld [vmem:[#allocation10 + $0x3a0] sm:$0xff]
    %v1277 = vld [vmem:[#allocation10 + $0x3a8] sm:$0xff]
    %v1278 = vld [vmem:[#allocation10 + $0x3b0] sm:$0xff]
    %v1279 = vld [vmem:[#allocation10 + $0x3b8] sm:$0xff]
    %v1280 = vld [vmem:[#allocation10 + $0x3c0] sm:$0xff]
    %v1281 = vld [vmem:[#allocation10 + $0x3c8] sm:$0xff]
    %v1282 = vld [vmem:[#allocation10 + $0x3d0] sm:$0xff]
    %v1283 = vld [vmem:[#allocation10 + $0x3d8] sm:$0xff]
    %v1284 = vld [vmem:[#allocation10 + $0x3e0] sm:$0xff]
    %v1285 = vld [vmem:[#allocation10 + $0x3e8] sm:$0xff]
    %v1286 = vld [vmem:[#allocation10 + $0x3f0] sm:$0xff]
    %v1287 = vld [vmem:[#allocation10 + $0x3f8] sm:$0xff]
    %v1288 = vld [vmem:[#allocation11] sm:$0x3]
    %v1290 = vlaneseq
    %v1291 = vshrl.u32 %v1290, 7
    %v1292 = vsub.s32 0, %v1291
    %v1293 = vrot.slane %v1288, %v1292
    %v1294 = vlaneseq
    %v1295 = vshrl.u32 %v1294, 7
    %v1296 = vsub.s32 1, %v1295
    %v1297 = vrot.slane %v1288, %v1296
    %1300 = vmatprep.subr.mxu0 %v1161
    %1301 = vmatpush1.msra.mxu0 %v1160
    %1302 = vmatprep.subr.mxu0 %v1163
    %1303 = vmatpush1.msra.mxu0 %v1162
    %1304 = vmatprep.subr.mxu0 %v1165
    %1305 = vmatpush1.msra.mxu0 %v1164
    %1306 = vmatprep.subr.mxu0 %v1167
    %1307 = vmatpush1.msra.mxu0 %v1166
    %1308 = vmatprep.subr.mxu0 %v1169
    %1309 = vmatpush1.msra.mxu0 %v1168
    %1310 = vmatprep.subr.mxu0 %v1171
    %1311 = vmatpush1.msra.mxu0 %v1170
    %1312 = vmatprep.subr.mxu0 %v1173
    %1313 = vmatpush1.msra.mxu0 %v1172
    %1314 = vmatprep.subr.mxu0 %v1175
    %1315 = vmatpush1.msra.mxu0 %v1174
    %1316 = vmatprep.subr.mxu0 %v1177
    %1317 = vmatpush1.msra.mxu0 %v1176
    %1318 = vmatprep.subr.mxu0 %v1179
    %1319 = vmatpush1.msra.mxu0 %v1178
    %1320 = vmatprep.subr.mxu0 %v1181
    %1321 = vmatpush1.msra.mxu0 %v1180
    %1322 = vmatprep.subr.mxu0 %v1183
    %1323 = vmatpush1.msra.mxu0 %v1182
    %1324 = vmatprep.subr.mxu0 %v1185
    %1325 = vmatpush1.msra.mxu0 %v1184
    %1326 = vmatprep.subr.mxu0 %v1187
    %1327 = vmatpush1.msra.mxu0 %v1186
    %1328 = vmatprep.subr.mxu0 %v1189
    %1329 = vmatpush1.msra.mxu0 %v1188
    %1330 = vmatprep.subr.mxu0 %v1191
    %1331 = vmatpush1.msra.mxu0 %v1190
    %1332 = vmatprep.subr.mxu0 %v1193
    %1333 = vmatpush1.msra.mxu0 %v1192
    %1334 = vmatprep.subr.mxu0 %v1195
    %1335 = vmatpush1.msra.mxu0 %v1194
    %1336 = vmatprep.subr.mxu0 %v1197
    %1337 = vmatpush1.msra.mxu0 %v1196
    %1338 = vmatprep.subr.mxu0 %v1199
    %1339 = vmatpush1.msra.mxu0 %v1198
    %1340 = vmatprep.subr.mxu0 %v1201
    %1341 = vmatpush1.msra.mxu0 %v1200
    %1342 = vmatprep.subr.mxu0 %v1203
    %1343 = vmatpush1.msra.mxu0 %v1202
    %1344 = vmatprep.subr.mxu0 %v1205
    %1345 = vmatpush1.msra.mxu0 %v1204
    %1346 = vmatprep.subr.mxu0 %v1207
    %1347 = vmatpush1.msra.mxu0 %v1206
    %1348 = vmatprep.subr.mxu0 %v1209
    %1349 = vmatpush1.msra.mxu0 %v1208
    %1350 = vmatprep.subr.mxu0 %v1211
    %1351 = vmatpush1.msra.mxu0 %v1210
    %1352 = vmatprep.subr.mxu0 %v1213
    %1353 = vmatpush1.msra.mxu0 %v1212
    %1354 = vmatprep.subr.mxu0 %v1215
    %1355 = vmatpush1.msra.mxu0 %v1214
    %1356 = vmatprep.subr.mxu0 %v1217
    %1357 = vmatpush1.msra.mxu0 %v1216
    %1358 = vmatprep.subr.mxu0 %v1219
    %1359 = vmatpush1.msra.mxu0 %v1218
    %1360 = vmatprep.subr.mxu0 %v1221
    %1361 = vmatpush1.msra.mxu0 %v1220
    %1362 = vmatprep.subr.mxu0 %v1223
    %1363 = vmatpush1.msra.mxu0 %v1222
    %1364 = vmatprep.mubr.f32.mxu0 %v1157
    %1365 = vmatmul.mubr.f32.gmra.mrb[0].mxu0 %v1156
    %v1366 = vpop.f32.mrb[0].mxu0
    %v1367 = vadd.f32 %v1293, %v1366
    %v1368 = vpop.f32.mrb[0].mxu0
    %v1369 = vadd.f32 %v1297, %v1368
    %1370 = vdwg.mxu0
    %1371 = vmatprep.subr.mxu0 %v1225
    %1372 = vmatpush1.msra.mxu0 %v1224
    %1373 = vmatprep.subr.mxu0 %v1227
    %1374 = vmatpush1.msra.mxu0 %v1226
    %1375 = vmatprep.subr.mxu0 %v1229
    %1376 = vmatpush1.msra.mxu0 %v1228
    %1377 = vmatprep.subr.mxu0 %v1231
    %1378 = vmatpush1.msra.mxu0 %v1230
    %1379 = vmatprep.subr.mxu0 %v1233
    %1380 = vmatpush1.msra.mxu0 %v1232
    %1381 = vmatprep.subr.mxu0 %v1235
    %1382 = vmatpush1.msra.mxu0 %v1234
    %1383 = vmatprep.subr.mxu0 %v1237
    %1384 = vmatpush1.msra.mxu0 %v1236
    %1385 = vmatprep.subr.mxu0 %v1239
    %1386 = vmatpush1.msra.mxu0 %v1238
    %1387 = vmatprep.subr.mxu0 %v1241
    %1388 = vmatpush1.msra.mxu0 %v1240
    %1389 = vmatprep.subr.mxu0 %v1243
    %1390 = vmatpush1.msra.mxu0 %v1242
    %1391 = vmatprep.subr.mxu0 %v1245
    %1392 = vmatpush1.msra.mxu0 %v1244
    %1393 = vmatprep.subr.mxu0 %v1247
    %1394 = vmatpush1.msra.mxu0 %v1246
    %1395 = vmatprep.subr.mxu0 %v1249
    %1396 = vmatpush1.msra.mxu0 %v1248
    %1397 = vmatprep.subr.mxu0 %v1251
    %1398 = vmatpush1.msra.mxu0 %v1250
    %1399 = vmatprep.subr.mxu0 %v1253
    %1400 = vmatpush1.msra.mxu0 %v1252
    %1401 = vmatprep.subr.mxu0 %v1255
    %1402 = vmatpush1.msra.mxu0 %v1254
    %1403 = vmatprep.subr.mxu0 %v1257
    %1404 = vmatpush1.msra.mxu0 %v1256
    %1405 = vmatprep.subr.mxu0 %v1259
    %1406 = vmatpush1.msra.mxu0 %v1258
    %1407 = vmatprep.subr.mxu0 %v1261
    %1408 = vmatpush1.msra.mxu0 %v1260
    %1409 = vmatprep.subr.mxu0 %v1263
    %1410 = vmatpush1.msra.mxu0 %v1262
    %1411 = vmatprep.subr.mxu0 %v1265
    %1412 = vmatpush1.msra.mxu0 %v1264
    %1413 = vmatprep.subr.mxu0 %v1267
    %1414 = vmatpush1.msra.mxu0 %v1266
    %1415 = vmatprep.subr.mxu0 %v1269
    %1416 = vmatpush1.msra.mxu0 %v1268
    %1417 = vmatprep.subr.mxu0 %v1271
    %1418 = vmatpush1.msra.mxu0 %v1270
    %1419 = vmatprep.subr.mxu0 %v1273
    %1420 = vmatpush1.msra.mxu0 %v1272
    %1421 = vmatprep.subr.mxu0 %v1275
    %1422 = vmatpush1.msra.mxu0 %v1274
    %1423 = vmatprep.subr.mxu0 %v1277
    %1424 = vmatpush1.msra.mxu0 %v1276
    %1425 = vmatprep.subr.mxu0 %v1279
    %1426 = vmatpush1.msra.mxu0 %v1278
    %1427 = vmatprep.subr.mxu0 %v1281
    %1428 = vmatpush1.msra.mxu0 %v1280
    %1429 = vmatprep.subr.mxu0 %v1283
    %1430 = vmatpush1.msra.mxu0 %v1282
    %1431 = vmatprep.subr.mxu0 %v1285
    %1432 = vmatpush1.msra.mxu0 %v1284
    %1433 = vmatprep.subr.mxu0 %v1287
    %1434 = vmatpush1.msra.mxu0 %v1286
    %1435 = vmatprep.mubr.f32.mxu0 %v1159
    %1436 = vmatmul.mubr.f32.gmra.mrb[0].mxu0 %v1158
    %v1437 = vpop.f32.mrb[0].mxu0
    %v1438 = vadd.f32 %v1367, %v1437
    %v1439 = vpop.f32.mrb[0].mxu0
    %v1440 = vadd.f32 %v1369, %v1439
    %1441 = vdwg.mxu0
    %1442 = vst [vmem:[#allocation20] sm:$0xff] %v1438
    %1443 = vst [vmem:[#allocation20 + $0x8] sm:$0xff] %v1440
    %v1444 = vld [vmem:[#allocation5] sm:$0xff]
    %v1445 = vmul.f32 %v1440, 0.5
    %v1446 = vmul.f32 %v1445, 1.442695
    %v1447 = vpow.pop %v1446
    %v1448 = vmul.f32 %v1444, %v1447
    %v1449 = vadd.f32 %v1448, %v1438
    %v1450 = vld [vmem:[#allocation13] sm:$0xff]
    %v1451 = vld [vmem:[#allocation13 + $0x8] sm:$0xff]
    %v1452 = vld [vmem:[#allocation13 + $0x10] sm:$0xff]
    %v1453 = vld [vmem:[#allocation13 + $0x18] sm:$0xff]
    %v1454 = vld [vmem:[#allocation13 + $0x20] sm:$0xff]
    %v1455 = vld [vmem:[#allocation13 + $0x28] sm:$0xff]
    %v1456 = vld [vmem:[#allocation13 + $0x30] sm:$0xff]
    %v1457 = vld [vmem:[#allocation13 + $0x38] sm:$0xff]
    %v1458 = vld [vmem:[#allocation13 + $0x40] sm:$0xff]
    %v1459 = vld [vmem:[#allocation13 + $0x48] sm:$0xff]
    %v1460 = vld [vmem:[#allocation13 + $0x50] sm:$0xff]
    %v1461 = vld [vmem:[#allocation13 + $0x58] sm:$0xff]
    %v1462 = vld [vmem:[#allocation13 + $0x60] sm:$0xff]
    %v1463 = vld [vmem:[#allocation13 + $0x68] sm:$0xff]
    %v1464 = vld [vmem:[#allocation13 + $0x70] sm:$0xff]
    %v1465 = vld [vmem:[#allocation13 + $0x78] sm:$0xff]
    %v1466 = vld [vmem:[#allocation13 + $0x80] sm:$0xff]
    %v1467 = vld [vmem:[#allocation13 + $0x88] sm:$0xff]
    %v1468 = vld [vmem:[#allocation13 + $0x90] sm:$0xff]
    %v1469 = vld [vmem:[#allocation13 + $0x98] sm:$0xff]
    %v1470 = vld [vmem:[#allocation13 + $0xa0] sm:$0xff]
    %v1471 = vld [vmem:[#allocation13 + $0xa8] sm:$0xff]
    %v1472 = vld [vmem:[#allocation13 + $0xb0] sm:$0xff]
    %v1473 = vld [vmem:[#allocation13 + $0xb8] sm:$0xff]
    %v1474 = vld [vmem:[#allocation13 + $0xc0] sm:$0xff]
    %v1475 = vld [vmem:[#allocation13 + $0xc8] sm:$0xff]
    %v1476 = vld [vmem:[#allocation13 + $0xd0] sm:$0xff]
    %v1477 = vld [vmem:[#allocation13 + $0xd8] sm:$0xff]
    %v1478 = vld [vmem:[#allocation13 + $0xe0] sm:$0xff]
    %v1479 = vld [vmem:[#allocation13 + $0xe8] sm:$0xff]
    %v1480 = vld [vmem:[#allocation13 + $0xf0] sm:$0xff]
    %v1481 = vld [vmem:[#allocation13 + $0xf8] sm:$0xff]
    %v1482 = vld [vmem:[#allocation13 + $0x100] sm:$0xff]
    %v1483 = vld [vmem:[#allocation13 + $0x108] sm:$0xff]
    %v1484 = vld [vmem:[#allocation13 + $0x110] sm:$0xff]
    %v1485 = vld [vmem:[#allocation13 + $0x118] sm:$0xff]
    %v1486 = vld [vmem:[#allocation13 + $0x120] sm:$0xff]
    %v1487 = vld [vmem:[#allocation13 + $0x128] sm:$0xff]
    %v1488 = vld [vmem:[#allocation13 + $0x130] sm:$0xff]
    %v1489 = vld [vmem:[#allocation13 + $0x138] sm:$0xff]
    %v1490 = vld [vmem:[#allocation13 + $0x140] sm:$0xff]
    %v1491 = vld [vmem:[#allocation13 + $0x148] sm:$0xff]
    %v1492 = vld [vmem:[#allocation13 + $0x150] sm:$0xff]
    %v1493 = vld [vmem:[#allocation13 + $0x158] sm:$0xff]
    %v1494 = vld [vmem:[#allocation13 + $0x160] sm:$0xff]
    %v1495 = vld [vmem:[#allocation13 + $0x168] sm:$0xff]
    %v1496 = vld [vmem:[#allocation13 + $0x170] sm:$0xff]
    %v1497 = vld [vmem:[#allocation13 + $0x178] sm:$0xff]
    %v1498 = vld [vmem:[#allocation13 + $0x180] sm:$0xff]
    %v1499 = vld [vmem:[#allocation13 + $0x188] sm:$0xff]
    %v1500 = vld [vmem:[#allocation13 + $0x190] sm:$0xff]
    %v1501 = vld [vmem:[#allocation13 + $0x198] sm:$0xff]
    %v1502 = vld [vmem:[#allocation13 + $0x1a0] sm:$0xff]
    %v1503 = vld [vmem:[#allocation13 + $0x1a8] sm:$0xff]
    %v1504 = vld [vmem:[#allocation13 + $0x1b0] sm:$0xff]
    %v1505 = vld [vmem:[#allocation13 + $0x1b8] sm:$0xff]
    %v1506 = vld [vmem:[#allocation13 + $0x1c0] sm:$0xff]
    %v1507 = vld [vmem:[#allocation13 + $0x1c8] sm:$0xff]
    %v1508 = vld [vmem:[#allocation13 + $0x1d0] sm:$0xff]
    %v1509 = vld [vmem:[#allocation13 + $0x1d8] sm:$0xff]
    %v1510 = vld [vmem:[#allocation13 + $0x1e0] sm:$0xff]
    %v1511 = vld [vmem:[#allocation13 + $0x1e8] sm:$0xff]
    %v1512 = vld [vmem:[#allocation13 + $0x1f0] sm:$0xff]
    %v1513 = vld [vmem:[#allocation13 + $0x1f8] sm:$0xff]
    %v1514 = vld [vmem:[#allocation14] sm:$0xf]
    %v1516 = vlaneseq
    %v1517 = vshrl.u32 %v1516, 7
    %v1518 = vsub.s32 0, %v1517
    %v1519 = vrot.slane %v1514, %v1518
    %v1520 = vlaneseq
    %v1521 = vshrl.u32 %v1520, 7
    %v1522 = vsub.s32 1, %v1521
    %v1523 = vrot.slane %v1514, %v1522
    %v1524 = vlaneseq
    %v1525 = vshrl.u32 %v1524, 7
    %v1526 = vsub.s32 2, %v1525
    %v1527 = vrot.slane %v1514, %v1526
    %v1528 = vlaneseq
    %v1529 = vshrl.u32 %v1528, 7
    %v1530 = vsub.s32 3, %v1529
    %v1531 = vrot.slane %v1514, %v1530
    %1536 = vmatprep.subr.mxu0 %v1451
    %1537 = vmatpush1.msra.mxu0 %v1450
    %1538 = vmatprep.subr.mxu0 %v1455
    %1539 = vmatpush1.msra.mxu0 %v1454
    %1540 = vmatprep.subr.mxu0 %v1459
    %1541 = vmatpush1.msra.mxu0 %v1458
    %1542 = vmatprep.subr.mxu0 %v1463
    %1543 = vmatpush1.msra.mxu0 %v1462
    %1544 = vmatprep.subr.mxu0 %v1467
    %1545 = vmatpush1.msra.mxu0 %v1466
    %1546 = vmatprep.subr.mxu0 %v1471
    %1547 = vmatpush1.msra.mxu0 %v1470
    %1548 = vmatprep.subr.mxu0 %v1475
    %1549 = vmatpush1.msra.mxu0 %v1474
    %1550 = vmatprep.subr.mxu0 %v1479
    %1551 = vmatpush1.msra.mxu0 %v1478
    %1552 = vmatprep.subr.mxu0 %v1483
    %1553 = vmatpush1.msra.mxu0 %v1482
    %1554 = vmatprep.subr.mxu0 %v1487
    %1555 = vmatpush1.msra.mxu0 %v1486
    %1556 = vmatprep.subr.mxu0 %v1491
    %1557 = vmatpush1.msra.mxu0 %v1490
    %1558 = vmatprep.subr.mxu0 %v1495
    %1559 = vmatpush1.msra.mxu0 %v1494
    %1560 = vmatprep.subr.mxu0 %v1499
    %1561 = vmatpush1.msra.mxu0 %v1498
    %1562 = vmatprep.subr.mxu0 %v1503
    %1563 = vmatpush1.msra.mxu0 %v1502
    %1564 = vmatprep.subr.mxu0 %v1507
    %1565 = vmatpush1.msra.mxu0 %v1506
    %1566 = vmatprep.subr.mxu0 %v1511
    %1567 = vmatpush1.msra.mxu0 %v1510
    %1568 = vmatprep.subr.mxu0 0.0
    %1569 = vmatpush1.msra.mxu0 0.0
    %1570 = vmatprep.subr.mxu0 0.0
    %1571 = vmatpush1.msra.mxu0 0.0
    %1572 = vmatprep.subr.mxu0 0.0
    %1573 = vmatpush1.msra.mxu0 0.0
    %1574 = vmatprep.subr.mxu0 0.0
    %1575 = vmatpush1.msra.mxu0 0.0
    %1576 = vmatprep.subr.mxu0 0.0
    %1577 = vmatpush1.msra.mxu0 0.0
    %1578 = vmatprep.subr.mxu0 0.0
    %1579 = vmatpush1.msra.mxu0 0.0
    %1580 = vmatprep.subr.mxu0 0.0
    %1581 = vmatpush1.msra.mxu0 0.0
    %1582 = vmatprep.subr.mxu0 0.0
    %1583 = vmatpush1.msra.mxu0 0.0
    %1584 = vmatprep.subr.mxu0 0.0
    %1585 = vmatpush1.msra.mxu0 0.0
    %1586 = vmatprep.subr.mxu0 0.0
    %1587 = vmatpush1.msra.mxu0 0.0
    %1588 = vmatprep.subr.mxu0 0.0
    %1589 = vmatpush1.msra.mxu0 0.0
    %1590 = vmatprep.subr.mxu0 0.0
    %1591 = vmatpush1.msra.mxu0 0.0
    %1592 = vmatprep.subr.mxu0 0.0
    %1593 = vmatpush1.msra.mxu0 0.0
    %1594 = vmatprep.subr.mxu0 0.0
    %1595 = vmatpush1.msra.mxu0 0.0
    %1596 = vmatprep.subr.mxu0 0.0
    %1597 = vmatpush1.msra.mxu0 0.0
    %1598 = vmatprep.subr.mxu0 0.0
    %1599 = vmatpush1.msra.mxu0 0.0
    %1600 = vmatprep.mubr.f32.mxu0 0.0
    %1601 = vmatmul.mubr.f32.gmra.mrb[0].mxu0 %v1449
    %v1602 = vpop.f32.mrb[0].mxu0
    %v1603 = vadd.f32 %v1519, %v1602
    %v1604 = vpop.f32.mrb[0].mxu0
    %v1605 = vadd.f32 %v1523, %v1604
    %1606 = vdwg.mxu0
    %1607 = vmatprep.subr.mxu0 %v1453
    %1608 = vmatpush1.msra.mxu0 %v1452
    %1609 = vmatprep.subr.mxu0 %v1457
    %1610 = vmatpush1.msra.mxu0 %v1456
    %1611 = vmatprep.subr.mxu0 %v1461
    %1612 = vmatpush1.msra.mxu0 %v1460
    %1613 = vmatprep.subr.mxu0 %v1465
    %1614 = vmatpush1.msra.mxu0 %v1464
    %1615 = vmatprep.subr.mxu0 %v1469
    %1616 = vmatpush1.msra.mxu0 %v1468
    %1617 = vmatprep.subr.mxu0 %v1473
    %1618 = vmatpush1.msra.mxu0 %v1472
    %1619 = vmatprep.subr.mxu0 %v1477
    %1620 = vmatpush1.msra.mxu0 %v1476
    %1621 = vmatprep.subr.mxu0 %v1481
    %1622 = vmatpush1.msra.mxu0 %v1480
    %1623 = vmatprep.subr.mxu0 %v1485
    %1624 = vmatpush1.msra.mxu0 %v1484
    %1625 = vmatprep.subr.mxu0 %v1489
    %1626 = vmatpush1.msra.mxu0 %v1488
    %1627 = vmatprep.subr.mxu0 %v1493
    %1628 = vmatpush1.msra.mxu0 %v1492
    %1629 = vmatprep.subr.mxu0 %v1497
    %1630 = vmatpush1.msra.mxu0 %v1496
    %1631 = vmatprep.subr.mxu0 %v1501
    %1632 = vmatpush1.msra.mxu0 %v1500
    %1633 = vmatprep.subr.mxu0 %v1505
    %1634 = vmatpush1.msra.mxu0 %v1504
    %1635 = vmatprep.subr.mxu0 %v1509
    %1636 = vmatpush1.msra.mxu0 %v1508
    %1637 = vmatprep.subr.mxu0 %v1513
    %1638 = vmatpush1.msra.mxu0 %v1512
    %1639 = vmatprep.subr.mxu0 0.0
    %1640 = vmatpush1.msra.mxu0 0.0
    %1641 = vmatprep.subr.mxu0 0.0
    %1642 = vmatpush1.msra.mxu0 0.0
    %1643 = vmatprep.subr.mxu0 0.0
    %1644 = vmatpush1.msra.mxu0 0.0
    %1645 = vmatprep.subr.mxu0 0.0
    %1646 = vmatpush1.msra.mxu0 0.0
    %1647 = vmatprep.subr.mxu0 0.0
    %1648 = vmatpush1.msra.mxu0 0.0
    %1649 = vmatprep.subr.mxu0 0.0
    %1650 = vmatpush1.msra.mxu0 0.0
    %1651 = vmatprep.subr.mxu0 0.0
    %1652 = vmatpush1.msra.mxu0 0.0
    %1653 = vmatprep.subr.mxu0 0.0
    %1654 = vmatpush1.msra.mxu0 0.0
    %1655 = vmatprep.subr.mxu0 0.0
    %1656 = vmatpush1.msra.mxu0 0.0
    %1657 = vmatprep.subr.mxu0 0.0
    %1658 = vmatpush1.msra.mxu0 0.0
    %1659 = vmatprep.subr.mxu0 0.0
    %1660 = vmatpush1.msra.mxu0 0.0
    %1661 = vmatprep.subr.mxu0 0.0
    %1662 = vmatpush1.msra.mxu0 0.0
    %1663 = vmatprep.subr.mxu0 0.0
    %1664 = vmatpush1.msra.mxu0 0.0
    %1665 = vmatprep.subr.mxu0 0.0
    %1666 = vmatpush1.msra.mxu0 0.0
    %1667 = vmatprep.subr.mxu0 0.0
    %1668 = vmatpush1.msra.mxu0 0.0
    %1669 = vmatprep.subr.mxu0 0.0
    %1670 = vmatpush1.msra.mxu0 0.0
    %1671 = vmatprep.mubr.f32.mxu0 0.0
    %1672 = vmatmul.mubr.f32.gmra.mrb[0].mxu0 %v1449
    %v1673 = vpop.f32.mrb[0].mxu0
    %v1674 = vadd.f32 %v1527, %v1673
    %v1675 = vpop.f32.mrb[0].mxu0
    %v1676 = vadd.f32 %v1531, %v1675
    %1677 = vdwg.mxu0
    %v1678 = vmax.f32 %v1603, 0.0
    %v1679 = vmax.f32 %v1605, 0.0
    %v1680 = vmax.f32 %v1674, 0.0
    %v1681 = vmax.f32 %v1676, 0.0
    %v1682 = vld [vmem:[#allocation16] sm:$0xff]
    %v1683 = vld [vmem:[#allocation16 + $0x8] sm:$0xff]
    %v1684 = vld [vmem:[#allocation16 + $0x10] sm:$0xff]
    %v1685 = vld [vmem:[#allocation16 + $0x18] sm:$0xff]
    %v1686 = vld [vmem:[#allocation16 + $0x20] sm:$0xff]
    %v1687 = vld [vmem:[#allocation16 + $0x28] sm:$0xff]
    %v1688 = vld [vmem:[#allocation16 + $0x30] sm:$0xff]
    %v1689 = vld [vmem:[#allocation16 + $0x38] sm:$0xff]
    %v1690 = vld [vmem:[#allocation16 + $0x40] sm:$0xff]
    %v1691 = vld [vmem:[#allocation16 + $0x48] sm:$0xff]
    %v1692 = vld [vmem:[#allocation16 + $0x50] sm:$0xff]
    %v1693 = vld [vmem:[#allocation16 + $0x58] sm:$0xff]
    %v1694 = vld [vmem:[#allocation16 + $0x60] sm:$0xff]
    %v1695 = vld [vmem:[#allocation16 + $0x68] sm:$0xff]
    %v1696 = vld [vmem:[#allocation16 + $0x70] sm:$0xff]
    %v1697 = vld [vmem:[#allocation16 + $0x78] sm:$0xff]
    %v1698 = vld [vmem:[#allocation16 + $0x80] sm:$0xff]
    %v1699 = vld [vmem:[#allocation16 + $0x88] sm:$0xff]
    %v1700 = vld [vmem:[#allocation16 + $0x90] sm:$0xff]
    %v1701 = vld [vmem:[#allocation16 + $0x98] sm:$0xff]
    %v1702 = vld [vmem:[#allocation16 + $0xa0] sm:$0xff]
    %v1703 = vld [vmem:[#allocation16 + $0xa8] sm:$0xff]
    %v1704 = vld [vmem:[#allocation16 + $0xb0] sm:$0xff]
    %v1705 = vld [vmem:[#allocation16 + $0xb8] sm:$0xff]
    %v1706 = vld [vmem:[#allocation16 + $0xc0] sm:$0xff]
    %v1707 = vld [vmem:[#allocation16 + $0xc8] sm:$0xff]
    %v1708 = vld [vmem:[#allocation16 + $0xd0] sm:$0xff]
    %v1709 = vld [vmem:[#allocation16 + $0xd8] sm:$0xff]
    %v1710 = vld [vmem:[#allocation16 + $0xe0] sm:$0xff]
    %v1711 = vld [vmem:[#allocation16 + $0xe8] sm:$0xff]
    %v1712 = vld [vmem:[#allocation16 + $0xf0] sm:$0xff]
    %v1713 = vld [vmem:[#allocation16 + $0xf8] sm:$0xff]
    %v1714 = vld [vmem:[#allocation16 + $0x100] sm:$0xff]
    %v1715 = vld [vmem:[#allocation16 + $0x108] sm:$0xff]
    %v1716 = vld [vmem:[#allocation16 + $0x110] sm:$0xff]
    %v1717 = vld [vmem:[#allocation16 + $0x118] sm:$0xff]
    %v1718 = vld [vmem:[#allocation16 + $0x120] sm:$0xff]
    %v1719 = vld [vmem:[#allocation16 + $0x128] sm:$0xff]
    %v1720 = vld [vmem:[#allocation16 + $0x130] sm:$0xff]
    %v1721 = vld [vmem:[#allocation16 + $0x138] sm:$0xff]
    %v1722 = vld [vmem:[#allocation16 + $0x140] sm:$0xff]
    %v1723 = vld [vmem:[#allocation16 + $0x148] sm:$0xff]
    %v1724 = vld [vmem:[#allocation16 + $0x150] sm:$0xff]
    %v1725 = vld [vmem:[#allocation16 + $0x158] sm:$0xff]
    %v1726 = vld [vmem:[#allocation16 + $0x160] sm:$0xff]
    %v1727 = vld [vmem:[#allocation16 + $0x168] sm:$0xff]
    %v1728 = vld [vmem:[#allocation16 + $0x170] sm:$0xff]
    %v1729 = vld [vmem:[#allocation16 + $0x178] sm:$0xff]
    %v1730 = vld [vmem:[#allocation16 + $0x180] sm:$0xff]
    %v1731 = vld [vmem:[#allocation16 + $0x188] sm:$0xff]
    %v1732 = vld [vmem:[#allocation16 + $0x190] sm:$0xff]
    %v1733 = vld [vmem:[#allocation16 + $0x198] sm:$0xff]
    %v1734 = vld [vmem:[#allocation16 + $0x1a0] sm:$0xff]
    %v1735 = vld [vmem:[#allocation16 + $0x1a8] sm:$0xff]
    %v1736 = vld [vmem:[#allocation16 + $0x1b0] sm:$0xff]
    %v1737 = vld [vmem:[#allocation16 + $0x1b8] sm:$0xff]
    %v1738 = vld [vmem:[#allocation16 + $0x1c0] sm:$0xff]
    %v1739 = vld [vmem:[#allocation16 + $0x1c8] sm:$0xff]
    %v1740 = vld [vmem:[#allocation16 + $0x1d0] sm:$0xff]
    %v1741 = vld [vmem:[#allocation16 + $0x1d8] sm:$0xff]
    %v1742 = vld [vmem:[#allocation16 + $0x1e0] sm:$0xff]
    %v1743 = vld [vmem:[#allocation16 + $0x1e8] sm:$0xff]
    %v1744 = vld [vmem:[#allocation16 + $0x1f0] sm:$0xff]
    %v1745 = vld [vmem:[#allocation16 + $0x1f8] sm:$0xff]
    %v1746 = vld [vmem:[#allocation16 + $0x200] sm:$0xff]
    %v1747 = vld [vmem:[#allocation16 + $0x208] sm:$0xff]
    %v1748 = vld [vmem:[#allocation16 + $0x210] sm:$0xff]
    %v1749 = vld [vmem:[#allocation16 + $0x218] sm:$0xff]
    %v1750 = vld [vmem:[#allocation16 + $0x220] sm:$0xff]
    %v1751 = vld [vmem:[#allocation16 + $0x228] sm:$0xff]
    %v1752 = vld [vmem:[#allocation16 + $0x230] sm:$0xff]
    %v1753 = vld [vmem:[#allocation16 + $0x238] sm:$0xff]
    %v1754 = vld [vmem:[#allocation16 + $0x240] sm:$0xff]
    %v1755 = vld [vmem:[#allocation16 + $0x248] sm:$0xff]
    %v1756 = vld [vmem:[#allocation16 + $0x250] sm:$0xff]
    %v1757 = vld [vmem:[#allocation16 + $0x258] sm:$0xff]
    %v1758 = vld [vmem:[#allocation16 + $0x260] sm:$0xff]
    %v1759 = vld [vmem:[#allocation16 + $0x268] sm:$0xff]
    %v1760 = vld [vmem:[#allocation16 + $0x270] sm:$0xff]
    %v1761 = vld [vmem:[#allocation16 + $0x278] sm:$0xff]
    %v1762 = vld [vmem:[#allocation16 + $0x280] sm:$0xff]
    %v1763 = vld [vmem:[#allocation16 + $0x288] sm:$0xff]
    %v1764 = vld [vmem:[#allocation16 + $0x290] sm:$0xff]
    %v1765 = vld [vmem:[#allocation16 + $0x298] sm:$0xff]
    %v1766 = vld [vmem:[#allocation16 + $0x2a0] sm:$0xff]
    %v1767 = vld [vmem:[#allocation16 + $0x2a8] sm:$0xff]
    %v1768 = vld [vmem:[#allocation16 + $0x2b0] sm:$0xff]
    %v1769 = vld [vmem:[#allocation16 + $0x2b8] sm:$0xff]
    %v1770 = vld [vmem:[#allocation16 + $0x2c0] sm:$0xff]
    %v1771 = vld [vmem:[#allocation16 + $0x2c8] sm:$0xff]
    %v1772 = vld [vmem:[#allocation16 + $0x2d0] sm:$0xff]
    %v1773 = vld [vmem:[#allocation16 + $0x2d8] sm:$0xff]
    %v1774 = vld [vmem:[#allocation16 + $0x2e0] sm:$0xff]
    %v1775 = vld [vmem:[#allocation16 + $0x2e8] sm:$0xff]
    %v1776 = vld [vmem:[#allocation16 + $0x2f0] sm:$0xff]
    %v1777 = vld [vmem:[#allocation16 + $0x2f8] sm:$0xff]
    %v1778 = vld [vmem:[#allocation16 + $0x300] sm:$0xff]
    %v1779 = vld [vmem:[#allocation16 + $0x308] sm:$0xff]
    %v1780 = vld [vmem:[#allocation16 + $0x310] sm:$0xff]
    %v1781 = vld [vmem:[#allocation16 + $0x318] sm:$0xff]
    %v1782 = vld [vmem:[#allocation16 + $0x320] sm:$0xff]
    %v1783 = vld [vmem:[#allocation16 + $0x328] sm:$0xff]
    %v1784 = vld [vmem:[#allocation16 + $0x330] sm:$0xff]
    %v1785 = vld [vmem:[#allocation16 + $0x338] sm:$0xff]
    %v1786 = vld [vmem:[#allocation16 + $0x340] sm:$0xff]
    %v1787 = vld [vmem:[#allocation16 + $0x348] sm:$0xff]
    %v1788 = vld [vmem:[#allocation16 + $0x350] sm:$0xff]
    %v1789 = vld [vmem:[#allocation16 + $0x358] sm:$0xff]
    %v1790 = vld [vmem:[#allocation16 + $0x360] sm:$0xff]
    %v1791 = vld [vmem:[#allocation16 + $0x368] sm:$0xff]
    %v1792 = vld [vmem:[#allocation16 + $0x370] sm:$0xff]
    %v1793 = vld [vmem:[#allocation16 + $0x378] sm:$0xff]
    %v1794 = vld [vmem:[#allocation16 + $0x380] sm:$0xff]
    %v1795 = vld [vmem:[#allocation16 + $0x388] sm:$0xff]
    %v1796 = vld [vmem:[#allocation16 + $0x390] sm:$0xff]
    %v1797 = vld [vmem:[#allocation16 + $0x398] sm:$0xff]
    %v1798 = vld [vmem:[#allocation16 + $0x3a0] sm:$0xff]
    %v1799 = vld [vmem:[#allocation16 + $0x3a8] sm:$0xff]
    %v1800 = vld [vmem:[#allocation16 + $0x3b0] sm:$0xff]
    %v1801 = vld [vmem:[#allocation16 + $0x3b8] sm:$0xff]
    %v1802 = vld [vmem:[#allocation16 + $0x3c0] sm:$0xff]
    %v1803 = vld [vmem:[#allocation16 + $0x3c8] sm:$0xff]
    %v1804 = vld [vmem:[#allocation16 + $0x3d0] sm:$0xff]
    %v1805 = vld [vmem:[#allocation16 + $0x3d8] sm:$0xff]
    %v1806 = vld [vmem:[#allocation16 + $0x3e0] sm:$0xff]
    %v1807 = vld [vmem:[#allocation16 + $0x3e8] sm:$0xff]
    %v1808 = vld [vmem:[#allocation16 + $0x3f0] sm:$0xff]
    %v1809 = vld [vmem:[#allocation16 + $0x3f8] sm:$0xff]
    %v1810 = vld [vmem:[#allocation16 + $0x400] sm:$0xff]
    %v1811 = vld [vmem:[#allocation16 + $0x408] sm:$0xff]
    %v1812 = vld [vmem:[#allocation16 + $0x410] sm:$0xff]
    %v1813 = vld [vmem:[#allocation16 + $0x418] sm:$0xff]
    %v1814 = vld [vmem:[#allocation16 + $0x420] sm:$0xff]
    %v1815 = vld [vmem:[#allocation16 + $0x428] sm:$0xff]
    %v1816 = vld [vmem:[#allocation16 + $0x430] sm:$0xff]
    %v1817 = vld [vmem:[#allocation16 + $0x438] sm:$0xff]
    %v1818 = vld [vmem:[#allocation16 + $0x440] sm:$0xff]
    %v1819 = vld [vmem:[#allocation16 + $0x448] sm:$0xff]
    %v1820 = vld [vmem:[#allocation16 + $0x450] sm:$0xff]
    %v1821 = vld [vmem:[#allocation16 + $0x458] sm:$0xff]
    %v1822 = vld [vmem:[#allocation16 + $0x460] sm:$0xff]
    %v1823 = vld [vmem:[#allocation16 + $0x468] sm:$0xff]
    %v1824 = vld [vmem:[#allocation16 + $0x470] sm:$0xff]
    %v1825 = vld [vmem:[#allocation16 + $0x478] sm:$0xff]
    %v1826 = vld [vmem:[#allocation16 + $0x480] sm:$0xff]
    %v1827 = vld [vmem:[#allocation16 + $0x488] sm:$0xff]
    %v1828 = vld [vmem:[#allocation16 + $0x490] sm:$0xff]
    %v1829 = vld [vmem:[#allocation16 + $0x498] sm:$0xff]
    %v1830 = vld [vmem:[#allocation16 + $0x4a0] sm:$0xff]
    %v1831 = vld [vmem:[#allocation16 + $0x4a8] sm:$0xff]
    %v1832 = vld [vmem:[#allocation16 + $0x4b0] sm:$0xff]
    %v1833 = vld [vmem:[#allocation16 + $0x4b8] sm:$0xff]
    %v1834 = vld [vmem:[#allocation16 + $0x4c0] sm:$0xff]
    %v1835 = vld [vmem:[#allocation16 + $0x4c8] sm:$0xff]
    %v1836 = vld [vmem:[#allocation16 + $0x4d0] sm:$0xff]
    %v1837 = vld [vmem:[#allocation16 + $0x4d8] sm:$0xff]
    %v1838 = vld [vmem:[#allocation16 + $0x4e0] sm:$0xff]
    %v1839 = vld [vmem:[#allocation16 + $0x4e8] sm:$0xff]
    %v1840 = vld [vmem:[#allocation16 + $0x4f0] sm:$0xff]
    %v1841 = vld [vmem:[#allocation16 + $0x4f8] sm:$0xff]
    %v1842 = vld [vmem:[#allocation16 + $0x500] sm:$0xff]
    %v1843 = vld [vmem:[#allocation16 + $0x508] sm:$0xff]
    %v1844 = vld [vmem:[#allocation16 + $0x510] sm:$0xff]
    %v1845 = vld [vmem:[#allocation16 + $0x518] sm:$0xff]
    %v1846 = vld [vmem:[#allocation16 + $0x520] sm:$0xff]
    %v1847 = vld [vmem:[#allocation16 + $0x528] sm:$0xff]
    %v1848 = vld [vmem:[#allocation16 + $0x530] sm:$0xff]
    %v1849 = vld [vmem:[#allocation16 + $0x538] sm:$0xff]
    %v1850 = vld [vmem:[#allocation16 + $0x540] sm:$0xff]
    %v1851 = vld [vmem:[#allocation16 + $0x548] sm:$0xff]
    %v1852 = vld [vmem:[#allocation16 + $0x550] sm:$0xff]
    %v1853 = vld [vmem:[#allocation16 + $0x558] sm:$0xff]
    %v1854 = vld [vmem:[#allocation16 + $0x560] sm:$0xff]
    %v1855 = vld [vmem:[#allocation16 + $0x568] sm:$0xff]
    %v1856 = vld [vmem:[#allocation16 + $0x570] sm:$0xff]
    %v1857 = vld [vmem:[#allocation16 + $0x578] sm:$0xff]
    %v1858 = vld [vmem:[#allocation16 + $0x580] sm:$0xff]
    %v1859 = vld [vmem:[#allocation16 + $0x588] sm:$0xff]
    %v1860 = vld [vmem:[#allocation16 + $0x590] sm:$0xff]
    %v1861 = vld [vmem:[#allocation16 + $0x598] sm:$0xff]
    %v1862 = vld [vmem:[#allocation16 + $0x5a0] sm:$0xff]
    %v1863 = vld [vmem:[#allocation16 + $0x5a8] sm:$0xff]
    %v1864 = vld [vmem:[#allocation16 + $0x5b0] sm:$0xff]
    %v1865 = vld [vmem:[#allocation16 + $0x5b8] sm:$0xff]
    %v1866 = vld [vmem:[#allocation16 + $0x5c0] sm:$0xff]
    %v1867 = vld [vmem:[#allocation16 + $0x5c8] sm:$0xff]
    %v1868 = vld [vmem:[#allocation16 + $0x5d0] sm:$0xff]
    %v1869 = vld [vmem:[#allocation16 + $0x5d8] sm:$0xff]
    %v1870 = vld [vmem:[#allocation16 + $0x5e0] sm:$0xff]
    %v1871 = vld [vmem:[#allocation16 + $0x5e8] sm:$0xff]
    %v1872 = vld [vmem:[#allocation16 + $0x5f0] sm:$0xff]
    %v1873 = vld [vmem:[#allocation16 + $0x5f8] sm:$0xff]
    %v1874 = vld [vmem:[#allocation16 + $0x600] sm:$0xff]
    %v1875 = vld [vmem:[#allocation16 + $0x608] sm:$0xff]
    %v1876 = vld [vmem:[#allocation16 + $0x610] sm:$0xff]
    %v1877 = vld [vmem:[#allocation16 + $0x618] sm:$0xff]
    %v1878 = vld [vmem:[#allocation16 + $0x620] sm:$0xff]
    %v1879 = vld [vmem:[#allocation16 + $0x628] sm:$0xff]
    %v1880 = vld [vmem:[#allocation16 + $0x630] sm:$0xff]
    %v1881 = vld [vmem:[#allocation16 + $0x638] sm:$0xff]
    %v1882 = vld [vmem:[#allocation16 + $0x640] sm:$0xff]
    %v1883 = vld [vmem:[#allocation16 + $0x648] sm:$0xff]
    %v1884 = vld [vmem:[#allocation16 + $0x650] sm:$0xff]
    %v1885 = vld [vmem:[#allocation16 + $0x658] sm:$0xff]
    %v1886 = vld [vmem:[#allocation16 + $0x660] sm:$0xff]
    %v1887 = vld [vmem:[#allocation16 + $0x668] sm:$0xff]
    %v1888 = vld [vmem:[#allocation16 + $0x670] sm:$0xff]
    %v1889 = vld [vmem:[#allocation16 + $0x678] sm:$0xff]
    %v1890 = vld [vmem:[#allocation16 + $0x680] sm:$0xff]
    %v1891 = vld [vmem:[#allocation16 + $0x688] sm:$0xff]
    %v1892 = vld [vmem:[#allocation16 + $0x690] sm:$0xff]
    %v1893 = vld [vmem:[#allocation16 + $0x698] sm:$0xff]
    %v1894 = vld [vmem:[#allocation16 + $0x6a0] sm:$0xff]
    %v1895 = vld [vmem:[#allocation16 + $0x6a8] sm:$0xff]
    %v1896 = vld [vmem:[#allocation16 + $0x6b0] sm:$0xff]
    %v1897 = vld [vmem:[#allocation16 + $0x6b8] sm:$0xff]
    %v1898 = vld [vmem:[#allocation16 + $0x6c0] sm:$0xff]
    %v1899 = vld [vmem:[#allocation16 + $0x6c8] sm:$0xff]
    %v1900 = vld [vmem:[#allocation16 + $0x6d0] sm:$0xff]
    %v1901 = vld [vmem:[#allocation16 + $0x6d8] sm:$0xff]
    %v1902 = vld [vmem:[#allocation16 + $0x6e0] sm:$0xff]
    %v1903 = vld [vmem:[#allocation16 + $0x6e8] sm:$0xff]
    %v1904 = vld [vmem:[#allocation16 + $0x6f0] sm:$0xff]
    %v1905 = vld [vmem:[#allocation16 + $0x6f8] sm:$0xff]
    %v1906 = vld [vmem:[#allocation16 + $0x700] sm:$0xff]
    %v1907 = vld [vmem:[#allocation16 + $0x708] sm:$0xff]
    %v1908 = vld [vmem:[#allocation16 + $0x710] sm:$0xff]
    %v1909 = vld [vmem:[#allocation16 + $0x718] sm:$0xff]
    %v1910 = vld [vmem:[#allocation16 + $0x720] sm:$0xff]
    %v1911 = vld [vmem:[#allocation16 + $0x728] sm:$0xff]
    %v1912 = vld [vmem:[#allocation16 + $0x730] sm:$0xff]
    %v1913 = vld [vmem:[#allocation16 + $0x738] sm:$0xff]
    %v1914 = vld [vmem:[#allocation16 + $0x740] sm:$0xff]
    %v1915 = vld [vmem:[#allocation16 + $0x748] sm:$0xff]
    %v1916 = vld [vmem:[#allocation16 + $0x750] sm:$0xff]
    %v1917 = vld [vmem:[#allocation16 + $0x758] sm:$0xff]
    %v1918 = vld [vmem:[#allocation16 + $0x760] sm:$0xff]
    %v1919 = vld [vmem:[#allocation16 + $0x768] sm:$0xff]
    %v1920 = vld [vmem:[#allocation16 + $0x770] sm:$0xff]
    %v1921 = vld [vmem:[#allocation16 + $0x778] sm:$0xff]
    %v1922 = vld [vmem:[#allocation16 + $0x780] sm:$0xff]
    %v1923 = vld [vmem:[#allocation16 + $0x788] sm:$0xff]
    %v1924 = vld [vmem:[#allocation16 + $0x790] sm:$0xff]
    %v1925 = vld [vmem:[#allocation16 + $0x798] sm:$0xff]
    %v1926 = vld [vmem:[#allocation16 + $0x7a0] sm:$0xff]
    %v1927 = vld [vmem:[#allocation16 + $0x7a8] sm:$0xff]
    %v1928 = vld [vmem:[#allocation16 + $0x7b0] sm:$0xff]
    %v1929 = vld [vmem:[#allocation16 + $0x7b8] sm:$0xff]
    %v1930 = vld [vmem:[#allocation16 + $0x7c0] sm:$0xff]
    %v1931 = vld [vmem:[#allocation16 + $0x7c8] sm:$0xff]
    %v1932 = vld [vmem:[#allocation16 + $0x7d0] sm:$0xff]
    %v1933 = vld [vmem:[#allocation16 + $0x7d8] sm:$0xff]
    %v1934 = vld [vmem:[#allocation16 + $0x7e0] sm:$0xff]
    %v1935 = vld [vmem:[#allocation16 + $0x7e8] sm:$0xff]
    %v1936 = vld [vmem:[#allocation16 + $0x7f0] sm:$0xff]
    %v1937 = vld [vmem:[#allocation16 + $0x7f8] sm:$0xff]
    %v1938 = vld [vmem:[#allocation16 + $0x800] sm:$0xff]
    %v1939 = vld [vmem:[#allocation16 + $0x808] sm:$0xff]
    %v1940 = vld [vmem:[#allocation16 + $0x810] sm:$0xff]
    %v1941 = vld [vmem:[#allocation16 + $0x818] sm:$0xff]
    %v1942 = vld [vmem:[#allocation16 + $0x820] sm:$0xff]
    %v1943 = vld [vmem:[#allocation16 + $0x828] sm:$0xff]
    %v1944 = vld [vmem:[#allocation16 + $0x830] sm:$0xff]
    %v1945 = vld [vmem:[#allocation16 + $0x838] sm:$0xff]
    %v1946 = vld [vmem:[#allocation16 + $0x840] sm:$0xff]
    %v1947 = vld [vmem:[#allocation16 + $0x848] sm:$0xff]
    %v1948 = vld [vmem:[#allocation16 + $0x850] sm:$0xff]
    %v1949 = vld [vmem:[#allocation16 + $0x858] sm:$0xff]
    %v1950 = vld [vmem:[#allocation16 + $0x860] sm:$0xff]
    %v1951 = vld [vmem:[#allocation16 + $0x868] sm:$0xff]
    %v1952 = vld [vmem:[#allocation16 + $0x870] sm:$0xff]
    %v1953 = vld [vmem:[#allocation16 + $0x878] sm:$0xff]
    %v1954 = vld [vmem:[#allocation16 + $0x880] sm:$0xff]
    %v1955 = vld [vmem:[#allocation16 + $0x888] sm:$0xff]
    %v1956 = vld [vmem:[#allocation16 + $0x890] sm:$0xff]
    %v1957 = vld [vmem:[#allocation16 + $0x898] sm:$0xff]
    %v1958 = vld [vmem:[#allocation16 + $0x8a0] sm:$0xff]
    %v1959 = vld [vmem:[#allocation16 + $0x8a8] sm:$0xff]
    %v1960 = vld [vmem:[#allocation16 + $0x8b0] sm:$0xff]
    %v1961 = vld [vmem:[#allocation16 + $0x8b8] sm:$0xff]
    %v1962 = vld [vmem:[#allocation16 + $0x8c0] sm:$0xff]
    %v1963 = vld [vmem:[#allocation16 + $0x8c8] sm:$0xff]
    %v1964 = vld [vmem:[#allocation16 + $0x8d0] sm:$0xff]
    %v1965 = vld [vmem:[#allocation16 + $0x8d8] sm:$0xff]
    %v1966 = vld [vmem:[#allocation16 + $0x8e0] sm:$0xff]
    %v1967 = vld [vmem:[#allocation16 + $0x8e8] sm:$0xff]
    %v1968 = vld [vmem:[#allocation16 + $0x8f0] sm:$0xff]
    %v1969 = vld [vmem:[#allocation16 + $0x8f8] sm:$0xff]
    %v1970 = vld [vmem:[#allocation16 + $0x900] sm:$0xff]
    %v1971 = vld [vmem:[#allocation16 + $0x908] sm:$0xff]
    %v1972 = vld [vmem:[#allocation16 + $0x910] sm:$0xff]
    %v1973 = vld [vmem:[#allocation16 + $0x918] sm:$0xff]
    %v1974 = vld [vmem:[#allocation16 + $0x920] sm:$0xff]
    %v1975 = vld [vmem:[#allocation16 + $0x928] sm:$0xff]
    %v1976 = vld [vmem:[#allocation16 + $0x930] sm:$0xff]
    %v1977 = vld [vmem:[#allocation16 + $0x938] sm:$0xff]
    %v1978 = vld [vmem:[#allocation16 + $0x940] sm:$0xff]
    %v1979 = vld [vmem:[#allocation16 + $0x948] sm:$0xff]
    %v1980 = vld [vmem:[#allocation16 + $0x950] sm:$0xff]
    %v1981 = vld [vmem:[#allocation16 + $0x958] sm:$0xff]
    %v1982 = vld [vmem:[#allocation16 + $0x960] sm:$0xff]
    %v1983 = vld [vmem:[#allocation16 + $0x968] sm:$0xff]
    %v1984 = vld [vmem:[#allocation16 + $0x970] sm:$0xff]
    %v1985 = vld [vmem:[#allocation16 + $0x978] sm:$0xff]
    %v1986 = vld [vmem:[#allocation16 + $0x980] sm:$0xff]
    %v1987 = vld [vmem:[#allocation16 + $0x988] sm:$0xff]
    %v1988 = vld [vmem:[#allocation16 + $0x990] sm:$0xff]
    %v1989 = vld [vmem:[#allocation16 + $0x998] sm:$0xff]
    %v1990 = vld [vmem:[#allocation16 + $0x9a0] sm:$0xff]
    %v1991 = vld [vmem:[#allocation16 + $0x9a8] sm:$0xff]
    %v1992 = vld [vmem:[#allocation16 + $0x9b0] sm:$0xff]
    %v1993 = vld [vmem:[#allocation16 + $0x9b8] sm:$0xff]
    %v1994 = vld [vmem:[#allocation16 + $0x9c0] sm:$0xff]
    %v1995 = vld [vmem:[#allocation16 + $0x9c8] sm:$0xff]
    %v1996 = vld [vmem:[#allocation16 + $0x9d0] sm:$0xff]
    %v1997 = vld [vmem:[#allocation16 + $0x9d8] sm:$0xff]
    %v1998 = vld [vmem:[#allocation16 + $0x9e0] sm:$0xff]
    %v1999 = vld [vmem:[#allocation16 + $0x9e8] sm:$0xff]
    %v2000 = vld [vmem:[#allocation16 + $0x9f0] sm:$0xff]
    %v2001 = vld [vmem:[#allocation16 + $0x9f8] sm:$0xff]
    %v2002 = vld [vmem:[#allocation16 + $0xa00] sm:$0xff]
    %v2003 = vld [vmem:[#allocation16 + $0xa08] sm:$0xff]
    %v2004 = vld [vmem:[#allocation16 + $0xa10] sm:$0xff]
    %v2005 = vld [vmem:[#allocation16 + $0xa18] sm:$0xff]
    %v2006 = vld [vmem:[#allocation16 + $0xa20] sm:$0xff]
    %v2007 = vld [vmem:[#allocation16 + $0xa28] sm:$0xff]
    %v2008 = vld [vmem:[#allocation16 + $0xa30] sm:$0xff]
    %v2009 = vld [vmem:[#allocation16 + $0xa38] sm:$0xff]
    %v2010 = vld [vmem:[#allocation16 + $0xa40] sm:$0xff]
    %v2011 = vld [vmem:[#allocation16 + $0xa48] sm:$0xff]
    %v2012 = vld [vmem:[#allocation16 + $0xa50] sm:$0xff]
    %v2013 = vld [vmem:[#allocation16 + $0xa58] sm:$0xff]
    %v2014 = vld [vmem:[#allocation16 + $0xa60] sm:$0xff]
    %v2015 = vld [vmem:[#allocation16 + $0xa68] sm:$0xff]
    %v2016 = vld [vmem:[#allocation16 + $0xa70] sm:$0xff]
    %v2017 = vld [vmem:[#allocation16 + $0xa78] sm:$0xff]
    %v2018 = vld [vmem:[#allocation16 + $0xa80] sm:$0xff]
    %v2019 = vld [vmem:[#allocation16 + $0xa88] sm:$0xff]
    %v2020 = vld [vmem:[#allocation16 + $0xa90] sm:$0xff]
    %v2021 = vld [vmem:[#allocation16 + $0xa98] sm:$0xff]
    %v2022 = vld [vmem:[#allocation16 + $0xaa0] sm:$0xff]
    %v2023 = vld [vmem:[#allocation16 + $0xaa8] sm:$0xff]
    %v2024 = vld [vmem:[#allocation16 + $0xab0] sm:$0xff]
    %v2025 = vld [vmem:[#allocation16 + $0xab8] sm:$0xff]
    %v2026 = vld [vmem:[#allocation16 + $0xac0] sm:$0xff]
    %v2027 = vld [vmem:[#allocation16 + $0xac8] sm:$0xff]
    %v2028 = vld [vmem:[#allocation16 + $0xad0] sm:$0xff]
    %v2029 = vld [vmem:[#allocation16 + $0xad8] sm:$0xff]
    %v2030 = vld [vmem:[#allocation16 + $0xae0] sm:$0xff]
    %v2031 = vld [vmem:[#allocation16 + $0xae8] sm:$0xff]
    %v2032 = vld [vmem:[#allocation16 + $0xaf0] sm:$0xff]
    %v2033 = vld [vmem:[#allocation16 + $0xaf8] sm:$0xff]
    %v2034 = vld [vmem:[#allocation16 + $0xb00] sm:$0xff]
    %v2035 = vld [vmem:[#allocation16 + $0xb08] sm:$0xff]
    %v2036 = vld [vmem:[#allocation16 + $0xb10] sm:$0xff]
    %v2037 = vld [vmem:[#allocation16 + $0xb18] sm:$0xff]
    %v2038 = vld [vmem:[#allocation16 + $0xb20] sm:$0xff]
    %v2039 = vld [vmem:[#allocation16 + $0xb28] sm:$0xff]
    %v2040 = vld [vmem:[#allocation16 + $0xb30] sm:$0xff]
    %v2041 = vld [vmem:[#allocation16 + $0xb38] sm:$0xff]
    %v2042 = vld [vmem:[#allocation16 + $0xb40] sm:$0xff]
    %v2043 = vld [vmem:[#allocation16 + $0xb48] sm:$0xff]
    %v2044 = vld [vmem:[#allocation16 + $0xb50] sm:$0xff]
    %v2045 = vld [vmem:[#allocation16 + $0xb58] sm:$0xff]
    %v2046 = vld [vmem:[#allocation16 + $0xb60] sm:$0xff]
    %v2047 = vld [vmem:[#allocation16 + $0xb68] sm:$0xff]
    %v2048 = vld [vmem:[#allocation16 + $0xb70] sm:$0xff]
    %v2049 = vld [vmem:[#allocation16 + $0xb78] sm:$0xff]
    %v2050 = vld [vmem:[#allocation16 + $0xb80] sm:$0xff]
    %v2051 = vld [vmem:[#allocation16 + $0xb88] sm:$0xff]
    %v2052 = vld [vmem:[#allocation16 + $0xb90] sm:$0xff]
    %v2053 = vld [vmem:[#allocation16 + $0xb98] sm:$0xff]
    %v2054 = vld [vmem:[#allocation16 + $0xba0] sm:$0xff]
    %v2055 = vld [vmem:[#allocation16 + $0xba8] sm:$0xff]
    %v2056 = vld [vmem:[#allocation16 + $0xbb0] sm:$0xff]
    %v2057 = vld [vmem:[#allocation16 + $0xbb8] sm:$0xff]
    %v2058 = vld [vmem:[#allocation16 + $0xbc0] sm:$0xff]
    %v2059 = vld [vmem:[#allocation16 + $0xbc8] sm:$0xff]
    %v2060 = vld [vmem:[#allocation16 + $0xbd0] sm:$0xff]
    %v2061 = vld [vmem:[#allocation16 + $0xbd8] sm:$0xff]
    %v2062 = vld [vmem:[#allocation16 + $0xbe0] sm:$0xff]
    %v2063 = vld [vmem:[#allocation16 + $0xbe8] sm:$0xff]
    %v2064 = vld [vmem:[#allocation16 + $0xbf0] sm:$0xff]
    %v2065 = vld [vmem:[#allocation16 + $0xbf8] sm:$0xff]
    %v2066 = vld [vmem:[#allocation16 + $0xc00] sm:$0xff]
    %v2067 = vld [vmem:[#allocation16 + $0xc08] sm:$0xff]
    %v2068 = vld [vmem:[#allocation16 + $0xc10] sm:$0xff]
    %v2069 = vld [vmem:[#allocation16 + $0xc18] sm:$0xff]
    %v2070 = vld [vmem:[#allocation16 + $0xc20] sm:$0xff]
    %v2071 = vld [vmem:[#allocation16 + $0xc28] sm:$0xff]
    %v2072 = vld [vmem:[#allocation16 + $0xc30] sm:$0xff]
    %v2073 = vld [vmem:[#allocation16 + $0xc38] sm:$0xff]
    %v2074 = vld [vmem:[#allocation16 + $0xc40] sm:$0xff]
    %v2075 = vld [vmem:[#allocation16 + $0xc48] sm:$0xff]
    %v2076 = vld [vmem:[#allocation16 + $0xc50] sm:$0xff]
    %v2077 = vld [vmem:[#allocation16 + $0xc58] sm:$0xff]
    %v2078 = vld [vmem:[#allocation16 + $0xc60] sm:$0xff]
    %v2079 = vld [vmem:[#allocation16 + $0xc68] sm:$0xff]
    %v2080 = vld [vmem:[#allocation16 + $0xc70] sm:$0xff]
    %v2081 = vld [vmem:[#allocation16 + $0xc78] sm:$0xff]
    %v2082 = vld [vmem:[#allocation16 + $0xc80] sm:$0xff]
    %v2083 = vld [vmem:[#allocation16 + $0xc88] sm:$0xff]
    %v2084 = vld [vmem:[#allocation16 + $0xc90] sm:$0xff]
    %v2085 = vld [vmem:[#allocation16 + $0xc98] sm:$0xff]
    %v2086 = vld [vmem:[#allocation16 + $0xca0] sm:$0xff]
    %v2087 = vld [vmem:[#allocation16 + $0xca8] sm:$0xff]
    %v2088 = vld [vmem:[#allocation16 + $0xcb0] sm:$0xff]
    %v2089 = vld [vmem:[#allocation16 + $0xcb8] sm:$0xff]
    %v2090 = vld [vmem:[#allocation16 + $0xcc0] sm:$0xff]
    %v2091 = vld [vmem:[#allocation16 + $0xcc8] sm:$0xff]
    %v2092 = vld [vmem:[#allocation16 + $0xcd0] sm:$0xff]
    %v2093 = vld [vmem:[#allocation16 + $0xcd8] sm:$0xff]
    %v2094 = vld [vmem:[#allocation16 + $0xce0] sm:$0xff]
    %v2095 = vld [vmem:[#allocation16 + $0xce8] sm:$0xff]
    %v2096 = vld [vmem:[#allocation16 + $0xcf0] sm:$0xff]
    %v2097 = vld [vmem:[#allocation16 + $0xcf8] sm:$0xff]
    %v2098 = vld [vmem:[#allocation16 + $0xd00] sm:$0xff]
    %v2099 = vld [vmem:[#allocation16 + $0xd08] sm:$0xff]
    %v2100 = vld [vmem:[#allocation16 + $0xd10] sm:$0xff]
    %v2101 = vld [vmem:[#allocation16 + $0xd18] sm:$0xff]
    %v2102 = vld [vmem:[#allocation16 + $0xd20] sm:$0xff]
    %v2103 = vld [vmem:[#allocation16 + $0xd28] sm:$0xff]
    %v2104 = vld [vmem:[#allocation16 + $0xd30] sm:$0xff]
    %v2105 = vld [vmem:[#allocation16 + $0xd38] sm:$0xff]
    %v2106 = vld [vmem:[#allocation16 + $0xd40] sm:$0xff]
    %v2107 = vld [vmem:[#allocation16 + $0xd48] sm:$0xff]
    %v2108 = vld [vmem:[#allocation16 + $0xd50] sm:$0xff]
    %v2109 = vld [vmem:[#allocation16 + $0xd58] sm:$0xff]
    %v2110 = vld [vmem:[#allocation16 + $0xd60] sm:$0xff]
    %v2111 = vld [vmem:[#allocation16 + $0xd68] sm:$0xff]
    %v2112 = vld [vmem:[#allocation16 + $0xd70] sm:$0xff]
    %v2113 = vld [vmem:[#allocation16 + $0xd78] sm:$0xff]
    %v2114 = vld [vmem:[#allocation16 + $0xd80] sm:$0xff]
    %v2115 = vld [vmem:[#allocation16 + $0xd88] sm:$0xff]
    %v2116 = vld [vmem:[#allocation16 + $0xd90] sm:$0xff]
    %v2117 = vld [vmem:[#allocation16 + $0xd98] sm:$0xff]
    %v2118 = vld [vmem:[#allocation16 + $0xda0] sm:$0xff]
    %v2119 = vld [vmem:[#allocation16 + $0xda8] sm:$0xff]
    %v2120 = vld [vmem:[#allocation16 + $0xdb0] sm:$0xff]
    %v2121 = vld [vmem:[#allocation16 + $0xdb8] sm:$0xff]
    %v2122 = vld [vmem:[#allocation16 + $0xdc0] sm:$0xff]
    %v2123 = vld [vmem:[#allocation16 + $0xdc8] sm:$0xff]
    %v2124 = vld [vmem:[#allocation16 + $0xdd0] sm:$0xff]
    %v2125 = vld [vmem:[#allocation16 + $0xdd8] sm:$0xff]
    %v2126 = vld [vmem:[#allocation16 + $0xde0] sm:$0xff]
    %v2127 = vld [vmem:[#allocation16 + $0xde8] sm:$0xff]
    %v2128 = vld [vmem:[#allocation16 + $0xdf0] sm:$0xff]
    %v2129 = vld [vmem:[#allocation16 + $0xdf8] sm:$0xff]
    %v2130 = vld [vmem:[#allocation17] sm:$0xff]
    %v2132 = vlaneseq
    %v2133 = vshrl.u32 %v2132, 7
    %v2134 = vsub.s32 0, %v2133
    %v2135 = vrot.slane %v2130, %v2134
    %v2136 = vlaneseq
    %v2137 = vshrl.u32 %v2136, 7
    %v2138 = vsub.s32 1, %v2137
    %v2139 = vrot.slane %v2130, %v2138
    %v2140 = vlaneseq
    %v2141 = vshrl.u32 %v2140, 7
    %v2142 = vsub.s32 2, %v2141
    %v2143 = vrot.slane %v2130, %v2142
    %v2144 = vlaneseq
    %v2145 = vshrl.u32 %v2144, 7
    %v2146 = vsub.s32 3, %v2145
    %v2147 = vrot.slane %v2130, %v2146
    %v2148 = vlaneseq
    %v2149 = vshrl.u32 %v2148, 7
    %v2150 = vsub.s32 4, %v2149
    %v2151 = vrot.slane %v2130, %v2150
    %v2152 = vlaneseq
    %v2153 = vshrl.u32 %v2152, 7
    %v2154 = vsub.s32 5, %v2153
    %v2155 = vrot.slane %v2130, %v2154
    %v2156 = vlaneseq
    %v2157 = vshrl.u32 %v2156, 7
    %v2158 = vsub.s32 6, %v2157
    %v2159 = vrot.slane %v2130, %v2158
    %2167 = vmatprep.subr.mxu0 %v1683
    %2168 = vmatpush1.msra.mxu0 %v1682
    %2169 = vmatprep.subr.mxu0 %v1690
    %2170 = vmatpush1.msra.mxu0 %v1689
    %2171 = vmatprep.subr.mxu0 %v1697
    %2172 = vmatpush1.msra.mxu0 %v1696
    %2173 = vmatprep.subr.mxu0 %v1704
    %2174 = vmatpush1.msra.mxu0 %v1703
    %2175 = vmatprep.subr.mxu0 %v1711
    %2176 = vmatpush1.msra.mxu0 %v1710
    %2177 = vmatprep.subr.mxu0 %v1718
    %2178 = vmatpush1.msra.mxu0 %v1717
    %2179 = vmatprep.subr.mxu0 %v1725
    %2180 = vmatpush1.msra.mxu0 %v1724
    %2181 = vmatprep.subr.mxu0 %v1732
    %2182 = vmatpush1.msra.mxu0 %v1731
    %2183 = vmatprep.subr.mxu0 %v1739
    %2184 = vmatpush1.msra.mxu0 %v1738
    %2185 = vmatprep.subr.mxu0 %v1746
    %2186 = vmatpush1.msra.mxu0 %v1745
    %2187 = vmatprep.subr.mxu0 %v1753
    %2188 = vmatpush1.msra.mxu0 %v1752
    %2189 = vmatprep.subr.mxu0 %v1760
    %2190 = vmatpush1.msra.mxu0 %v1759
    %2191 = vmatprep.subr.mxu0 %v1767
    %2192 = vmatpush1.msra.mxu0 %v1766
    %2193 = vmatprep.subr.mxu0 %v1774
    %2194 = vmatpush1.msra.mxu0 %v1773
    %2195 = vmatprep.subr.mxu0 %v1781
    %2196 = vmatpush1.msra.mxu0 %v1780
    %2197 = vmatprep.subr.mxu0 %v1788
    %2198 = vmatpush1.msra.mxu0 %v1787
    %2199 = vmatprep.subr.mxu0 %v1795
    %2200 = vmatpush1.msra.mxu0 %v1794
    %2201 = vmatprep.subr.mxu0 %v1802
    %2202 = vmatpush1.msra.mxu0 %v1801
    %2203 = vmatprep.subr.mxu0 %v1809
    %2204 = vmatpush1.msra.mxu0 %v1808
    %2205 = vmatprep.subr.mxu0 %v1816
    %2206 = vmatpush1.msra.mxu0 %v1815
    %2207 = vmatprep.subr.mxu0 %v1823
    %2208 = vmatpush1.msra.mxu0 %v1822
    %2209 = vmatprep.subr.mxu0 %v1830
    %2210 = vmatpush1.msra.mxu0 %v1829
    %2211 = vmatprep.subr.mxu0 %v1837
    %2212 = vmatpush1.msra.mxu0 %v1836
    %2213 = vmatprep.subr.mxu0 %v1844
    %2214 = vmatpush1.msra.mxu0 %v1843
    %2215 = vmatprep.subr.mxu0 %v1851
    %2216 = vmatpush1.msra.mxu0 %v1850
    %2217 = vmatprep.subr.mxu0 %v1858
    %2218 = vmatpush1.msra.mxu0 %v1857
    %2219 = vmatprep.subr.mxu0 %v1865
    %2220 = vmatpush1.msra.mxu0 %v1864
    %2221 = vmatprep.subr.mxu0 %v1872
    %2222 = vmatpush1.msra.mxu0 %v1871
    %2223 = vmatprep.subr.mxu0 %v1879
    %2224 = vmatpush1.msra.mxu0 %v1878
    %2225 = vmatprep.subr.mxu0 %v1886
    %2226 = vmatpush1.msra.mxu0 %v1885
    %2227 = vmatprep.subr.mxu0 %v1893
    %2228 = vmatpush1.msra.mxu0 %v1892
    %2229 = vmatprep.subr.mxu0 %v1900
    %2230 = vmatpush1.msra.mxu0 %v1899
    %2231 = vmatprep.mubr.f32.mxu0 %v1679
    %2232 = vmatmul.mubr.f32.gmra.mrb[0].mxu0 %v1678
    %v2233 = vpop.f32.mrb[0].mxu0
    %v2234 = vadd.f32 %v2135, %v2233
    %v2235 = vpop.f32.mrb[0].mxu0
    %v2236 = vadd.f32 %v2139, %v2235
    %2237 = vdwg.mxu0
    %2238 = vmatprep.subr.mxu0 %v1907
    %2239 = vmatpush1.msra.mxu0 %v1906
    %2240 = vmatprep.subr.mxu0 %v1914
    %2241 = vmatpush1.msra.mxu0 %v1913
    %2242 = vmatprep.subr.mxu0 %v1921
    %2243 = vmatpush1.msra.mxu0 %v1920
    %2244 = vmatprep.subr.mxu0 %v1928
    %2245 = vmatpush1.msra.mxu0 %v1927
    %2246 = vmatprep.subr.mxu0 %v1935
    %2247 = vmatpush1.msra.mxu0 %v1934
    %2248 = vmatprep.subr.mxu0 %v1942
    %2249 = vmatpush1.msra.mxu0 %v1941
    %2250 = vmatprep.subr.mxu0 %v1949
    %2251 = vmatpush1.msra.mxu0 %v1948
    %2252 = vmatprep.subr.mxu0 %v1956
    %2253 = vmatpush1.msra.mxu0 %v1955
    %2254 = vmatprep.subr.mxu0 %v1963
    %2255 = vmatpush1.msra.mxu0 %v1962
    %2256 = vmatprep.subr.mxu0 %v1970
    %2257 = vmatpush1.msra.mxu0 %v1969
    %2258 = vmatprep.subr.mxu0 %v1977
    %2259 = vmatpush1.msra.mxu0 %v1976
    %2260 = vmatprep.subr.mxu0 %v1984
    %2261 = vmatpush1.msra.mxu0 %v1983
    %2262 = vmatprep.subr.mxu0 %v1991
    %2263 = vmatpush1.msra.mxu0 %v1990
    %2264 = vmatprep.subr.mxu0 %v1998
    %2265 = vmatpush1.msra.mxu0 %v1997
    %2266 = vmatprep.subr.mxu0 %v2005
    %2267 = vmatpush1.msra.mxu0 %v2004
    %2268 = vmatprep.subr.mxu0 %v2012
    %2269 = vmatpush1.msra.mxu0 %v2011
    %2270 = vmatprep.subr.mxu0 %v2019
    %2271 = vmatpush1.msra.mxu0 %v2018
    %2272 = vmatprep.subr.mxu0 %v2026
    %2273 = vmatpush1.msra.mxu0 %v2025
    %2274 = vmatprep.subr.mxu0 %v2033
    %2275 = vmatpush1.msra.mxu0 %v2032
    %2276 = vmatprep.subr.mxu0 %v2040
    %2277 = vmatpush1.msra.mxu0 %v2039
    %2278 = vmatprep.subr.mxu0 %v2047
    %2279 = vmatpush1.msra.mxu0 %v2046
    %2280 = vmatprep.subr.mxu0 %v2054
    %2281 = vmatpush1.msra.mxu0 %v2053
    %2282 = vmatprep.subr.mxu0 %v2061
    %2283 = vmatpush1.msra.mxu0 %v2060
    %2284 = vmatprep.subr.mxu0 %v2068
    %2285 = vmatpush1.msra.mxu0 %v2067
    %2286 = vmatprep.subr.mxu0 %v2075
    %2287 = vmatpush1.msra.mxu0 %v2074
    %2288 = vmatprep.subr.mxu0 %v2082
    %2289 = vmatpush1.msra.mxu0 %v2081
    %2290 = vmatprep.subr.mxu0 %v2089
    %2291 = vmatpush1.msra.mxu0 %v2088
    %2292 = vmatprep.subr.mxu0 %v2096
    %2293 = vmatpush1.msra.mxu0 %v2095
    %2294 = vmatprep.subr.mxu0 %v2103
    %2295 = vmatpush1.msra.mxu0 %v2102
    %2296 = vmatprep.subr.mxu0 %v2110
    %2297 = vmatpush1.msra.mxu0 %v2109
    %2298 = vmatprep.subr.mxu0 %v2117
    %2299 = vmatpush1.msra.mxu0 %v2116
    %2300 = vmatprep.subr.mxu0 %v2124
    %2301 = vmatpush1.msra.mxu0 %v2123
    %2302 = vmatprep.mubr.f32.mxu0 %v1681
    %2303 = vmatmul.mubr.f32.gmra.mrb[0].mxu0 %v1680
    %v2304 = vpop.f32.mrb[0].mxu0
    %v2305 = vadd.f32 %v2234, %v2304
    %v2306 = vpop.f32.mrb[0].mxu0
    %v2307 = vadd.f32 %v2236, %v2306
    %2308 = vdwg.mxu0
    %2309 = vmatprep.subr.mxu0 %v1685
    %2310 = vmatpush1.msra.mxu0 %v1684
    %2311 = vmatprep.subr.mxu0 %v1692
    %2312 = vmatpush1.msra.mxu0 %v1691
    %2313 = vmatprep.subr.mxu0 %v1699
    %2314 = vmatpush1.msra.mxu0 %v1698
    %2315 = vmatprep.subr.mxu0 %v1706
    %2316 = vmatpush1.msra.mxu0 %v1705
    %2317 = vmatprep.subr.mxu0 %v1713
    %2318 = vmatpush1.msra.mxu0 %v1712
    %2319 = vmatprep.subr.mxu0 %v1720
    %2320 = vmatpush1.msra.mxu0 %v1719
    %2321 = vmatprep.subr.mxu0 %v1727
    %2322 = vmatpush1.msra.mxu0 %v1726
    %2323 = vmatprep.subr.mxu0 %v1734
    %2324 = vmatpush1.msra.mxu0 %v1733
    %2325 = vmatprep.subr.mxu0 %v1741
    %2326 = vmatpush1.msra.mxu0 %v1740
    %2327 = vmatprep.subr.mxu0 %v1748
    %2328 = vmatpush1.msra.mxu0 %v1747
    %2329 = vmatprep.subr.mxu0 %v1755
    %2330 = vmatpush1.msra.mxu0 %v1754
    %2331 = vmatprep.subr.mxu0 %v1762
    %2332 = vmatpush1.msra.mxu0 %v1761
    %2333 = vmatprep.subr.mxu0 %v1769
    %2334 = vmatpush1.msra.mxu0 %v1768
    %2335 = vmatprep.subr.mxu0 %v1776
    %2336 = vmatpush1.msra.mxu0 %v1775
    %2337 = vmatprep.subr.mxu0 %v1783
    %2338 = vmatpush1.msra.mxu0 %v1782
    %2339 = vmatprep.subr.mxu0 %v1790
    %2340 = vmatpush1.msra.mxu0 %v1789
    %2341 = vmatprep.subr.mxu0 %v1797
    %2342 = vmatpush1.msra.mxu0 %v1796
    %2343 = vmatprep.subr.mxu0 %v1804
    %2344 = vmatpush1.msra.mxu0 %v1803
    %2345 = vmatprep.subr.mxu0 %v1811
    %2346 = vmatpush1.msra.mxu0 %v1810
    %2347 = vmatprep.subr.mxu0 %v1818
    %2348 = vmatpush1.msra.mxu0 %v1817
    %2349 = vmatprep.subr.mxu0 %v1825
    %2350 = vmatpush1.msra.mxu0 %v1824
    %2351 = vmatprep.subr.mxu0 %v1832
    %2352 = vmatpush1.msra.mxu0 %v1831
    %2353 = vmatprep.subr.mxu0 %v1839
    %2354 = vmatpush1.msra.mxu0 %v1838
    %2355 = vmatprep.subr.mxu0 %v1846
    %2356 = vmatpush1.msra.mxu0 %v1845
    %2357 = vmatprep.subr.mxu0 %v1853
    %2358 = vmatpush1.msra.mxu0 %v1852
    %2359 = vmatprep.subr.mxu0 %v1860
    %2360 = vmatpush1.msra.mxu0 %v1859
    %2361 = vmatprep.subr.mxu0 %v1867
    %2362 = vmatpush1.msra.mxu0 %v1866
    %2363 = vmatprep.subr.mxu0 %v1874
    %2364 = vmatpush1.msra.mxu0 %v1873
    %2365 = vmatprep.subr.mxu0 %v1881
    %2366 = vmatpush1.msra.mxu0 %v1880
    %2367 = vmatprep.subr.mxu0 %v1888
    %2368 = vmatpush1.msra.mxu0 %v1887
    %2369 = vmatprep.subr.mxu0 %v1895
    %2370 = vmatpush1.msra.mxu0 %v1894
    %2371 = vmatprep.subr.mxu0 %v1902
    %2372 = vmatpush1.msra.mxu0 %v1901
    %2373 = vmatprep.mubr.f32.mxu0 %v1679
    %2374 = vmatmul.mubr.f32.gmra.mrb[0].mxu0 %v1678
    %v2375 = vpop.f32.mrb[0].mxu0
    %v2376 = vadd.f32 %v2143, %v2375
    %v2377 = vpop.f32.mrb[0].mxu0
    %v2378 = vadd.f32 %v2147, %v2377
    %2379 = vdwg.mxu0
    %2380 = vmatprep.subr.mxu0 %v1909
    %2381 = vmatpush1.msra.mxu0 %v1908
    %2382 = vmatprep.subr.mxu0 %v1916
    %2383 = vmatpush1.msra.mxu0 %v1915
    %2384 = vmatprep.subr.mxu0 %v1923
    %2385 = vmatpush1.msra.mxu0 %v1922
    %2386 = vmatprep.subr.mxu0 %v1930
    %2387 = vmatpush1.msra.mxu0 %v1929
    %2388 = vmatprep.subr.mxu0 %v1937
    %2389 = vmatpush1.msra.mxu0 %v1936
    %2390 = vmatprep.subr.mxu0 %v1944
    %2391 = vmatpush1.msra.mxu0 %v1943
    %2392 = vmatprep.subr.mxu0 %v1951
    %2393 = vmatpush1.msra.mxu0 %v1950
    %2394 = vmatprep.subr.mxu0 %v1958
    %2395 = vmatpush1.msra.mxu0 %v1957
    %2396 = vmatprep.subr.mxu0 %v1965
    %2397 = vmatpush1.msra.mxu0 %v1964
    %2398 = vmatprep.subr.mxu0 %v1972
    %2399 = vmatpush1.msra.mxu0 %v1971
    %2400 = vmatprep.subr.mxu0 %v1979
    %2401 = vmatpush1.msra.mxu0 %v1978
    %2402 = vmatprep.subr.mxu0 %v1986
    %2403 = vmatpush1.msra.mxu0 %v1985
    %2404 = vmatprep.subr.mxu0 %v1993
    %2405 = vmatpush1.msra.mxu0 %v1992
    %2406 = vmatprep.subr.mxu0 %v2000
    %2407 = vmatpush1.msra.mxu0 %v1999
    %2408 = vmatprep.subr.mxu0 %v2007
    %2409 = vmatpush1.msra.mxu0 %v2006
    %2410 = vmatprep.subr.mxu0 %v2014
    %2411 = vmatpush1.msra.mxu0 %v2013
    %2412 = vmatprep.subr.mxu0 %v2021
    %2413 = vmatpush1.msra.mxu0 %v2020
    %2414 = vmatprep.subr.mxu0 %v2028
    %2415 = vmatpush1.msra.mxu0 %v2027
    %2416 = vmatprep.subr.mxu0 %v2035
    %2417 = vmatpush1.msra.mxu0 %v2034
    %2418 = vmatprep.subr.mxu0 %v2042
    %2419 = vmatpush1.msra.mxu0 %v2041
    %2420 = vmatprep.subr.mxu0 %v2049
    %2421 = vmatpush1.msra.mxu0 %v2048
    %2422 = vmatprep.subr.mxu0 %v2056
    %2423 = vmatpush1.msra.mxu0 %v2055
    %2424 = vmatprep.subr.mxu0 %v2063
    %2425 = vmatpush1.msra.mxu0 %v2062
    %2426 = vmatprep.subr.mxu0 %v2070
    %2427 = vmatpush1.msra.mxu0 %v2069
    %2428 = vmatprep.subr.mxu0 %v2077
    %2429 = vmatpush1.msra.mxu0 %v2076
    %2430 = vmatprep.subr.mxu0 %v2084
    %2431 = vmatpush1.msra.mxu0 %v2083
    %2432 = vmatprep.subr.mxu0 %v2091
    %2433 = vmatpush1.msra.mxu0 %v2090
    %2434 = vmatprep.subr.mxu0 %v2098
    %2435 = vmatpush1.msra.mxu0 %v2097
    %2436 = vmatprep.subr.mxu0 %v2105
    %2437 = vmatpush1.msra.mxu0 %v2104
    %2438 = vmatprep.subr.mxu0 %v2112
    %2439 = vmatpush1.msra.mxu0 %v2111
    %2440 = vmatprep.subr.mxu0 %v2119
    %2441 = vmatpush1.msra.mxu0 %v2118
    %2442 = vmatprep.subr.mxu0 %v2126
    %2443 = vmatpush1.msra.mxu0 %v2125
    %2444 = vmatprep.mubr.f32.mxu0 %v1681
    %2445 = vmatmul.mubr.f32.gmra.mrb[0].mxu0 %v1680
    %v2446 = vpop.f32.mrb[0].mxu0
    %v2447 = vadd.f32 %v2376, %v2446
    %v2448 = vpop.f32.mrb[0].mxu0
    %v2449 = vadd.f32 %v2378, %v2448
    %2450 = vdwg.mxu0
    %2451 = vmatprep.subr.mxu0 %v1687
    %2452 = vmatpush1.msra.mxu0 %v1686
    %2453 = vmatprep.subr.mxu0 %v1694
    %2454 = vmatpush1.msra.mxu0 %v1693
    %2455 = vmatprep.subr.mxu0 %v1701
    %2456 = vmatpush1.msra.mxu0 %v1700
    %2457 = vmatprep.subr.mxu0 %v1708
    %2458 = vmatpush1.msra.mxu0 %v1707
    %2459 = vmatprep.subr.mxu0 %v1715
    %2460 = vmatpush1.msra.mxu0 %v1714
    %2461 = vmatprep.subr.mxu0 %v1722
    %2462 = vmatpush1.msra.mxu0 %v1721
    %2463 = vmatprep.subr.mxu0 %v1729
    %2464 = vmatpush1.msra.mxu0 %v1728
    %2465 = vmatprep.subr.mxu0 %v1736
    %2466 = vmatpush1.msra.mxu0 %v1735
    %2467 = vmatprep.subr.mxu0 %v1743
    %2468 = vmatpush1.msra.mxu0 %v1742
    %2469 = vmatprep.subr.mxu0 %v1750
    %2470 = vmatpush1.msra.mxu0 %v1749
    %2471 = vmatprep.subr.mxu0 %v1757
    %2472 = vmatpush1.msra.mxu0 %v1756
    %2473 = vmatprep.subr.mxu0 %v1764
    %2474 = vmatpush1.msra.mxu0 %v1763
    %2475 = vmatprep.subr.mxu0 %v1771
    %2476 = vmatpush1.msra.mxu0 %v1770
    %2477 = vmatprep.subr.mxu0 %v1778
    %2478 = vmatpush1.msra.mxu0 %v1777
    %2479 = vmatprep.subr.mxu0 %v1785
    %2480 = vmatpush1.msra.mxu0 %v1784
    %2481 = vmatprep.subr.mxu0 %v1792
    %2482 = vmatpush1.msra.mxu0 %v1791
    %2483 = vmatprep.subr.mxu0 %v1799
    %2484 = vmatpush1.msra.mxu0 %v1798
    %2485 = vmatprep.subr.mxu0 %v1806
    %2486 = vmatpush1.msra.mxu0 %v1805
    %2487 = vmatprep.subr.mxu0 %v1813
    %2488 = vmatpush1.msra.mxu0 %v1812
    %2489 = vmatprep.subr.mxu0 %v1820
    %2490 = vmatpush1.msra.mxu0 %v1819
    %2491 = vmatprep.subr.mxu0 %v1827
    %2492 = vmatpush1.msra.mxu0 %v1826
    %2493 = vmatprep.subr.mxu0 %v1834
    %2494 = vmatpush1.msra.mxu0 %v1833
    %2495 = vmatprep.subr.mxu0 %v1841
    %2496 = vmatpush1.msra.mxu0 %v1840
    %2497 = vmatprep.subr.mxu0 %v1848
    %2498 = vmatpush1.msra.mxu0 %v1847
    %2499 = vmatprep.subr.mxu0 %v1855
    %2500 = vmatpush1.msra.mxu0 %v1854
    %2501 = vmatprep.subr.mxu0 %v1862
    %2502 = vmatpush1.msra.mxu0 %v1861
    %2503 = vmatprep.subr.mxu0 %v1869
    %2504 = vmatpush1.msra.mxu0 %v1868
    %2505 = vmatprep.subr.mxu0 %v1876
    %2506 = vmatpush1.msra.mxu0 %v1875
    %2507 = vmatprep.subr.mxu0 %v1883
    %2508 = vmatpush1.msra.mxu0 %v1882
    %2509 = vmatprep.subr.mxu0 %v1890
    %2510 = vmatpush1.msra.mxu0 %v1889
    %2511 = vmatprep.subr.mxu0 %v1897
    %2512 = vmatpush1.msra.mxu0 %v1896
    %2513 = vmatprep.subr.mxu0 %v1904
    %2514 = vmatpush1.msra.mxu0 %v1903
    %2515 = vmatprep.mubr.f32.mxu0 %v1679
    %2516 = vmatmul.mubr.f32.gmra.mrb[0].mxu0 %v1678
    %v2517 = vpop.f32.mrb[0].mxu0
    %v2518 = vadd.f32 %v2151, %v2517
    %v2519 = vpop.f32.mrb[0].mxu0
    %v2520 = vadd.f32 %v2155, %v2519
    %2521 = vdwg.mxu0
    %2522 = vmatprep.subr.mxu0 %v1911
    %2523 = vmatpush1.msra.mxu0 %v1910
    %2524 = vmatprep.subr.mxu0 %v1918
    %2525 = vmatpush1.msra.mxu0 %v1917
    %2526 = vmatprep.subr.mxu0 %v1925
    %2527 = vmatpush1.msra.mxu0 %v1924
    %2528 = vmatprep.subr.mxu0 %v1932
    %2529 = vmatpush1.msra.mxu0 %v1931
    %2530 = vmatprep.subr.mxu0 %v1939
    %2531 = vmatpush1.msra.mxu0 %v1938
    %2532 = vmatprep.subr.mxu0 %v1946
    %2533 = vmatpush1.msra.mxu0 %v1945
    %2534 = vmatprep.subr.mxu0 %v1953
    %2535 = vmatpush1.msra.mxu0 %v1952
    %2536 = vmatprep.subr.mxu0 %v1960
    %2537 = vmatpush1.msra.mxu0 %v1959
    %2538 = vmatprep.subr.mxu0 %v1967
    %2539 = vmatpush1.msra.mxu0 %v1966
    %2540 = vmatprep.subr.mxu0 %v1974
    %2541 = vmatpush1.msra.mxu0 %v1973
    %2542 = vmatprep.subr.mxu0 %v1981
    %2543 = vmatpush1.msra.mxu0 %v1980
    %2544 = vmatprep.subr.mxu0 %v1988
    %2545 = vmatpush1.msra.mxu0 %v1987
    %2546 = vmatprep.subr.mxu0 %v1995
    %2547 = vmatpush1.msra.mxu0 %v1994
    %2548 = vmatprep.subr.mxu0 %v2002
    %2549 = vmatpush1.msra.mxu0 %v2001
    %2550 = vmatprep.subr.mxu0 %v2009
    %2551 = vmatpush1.msra.mxu0 %v2008
    %2552 = vmatprep.subr.mxu0 %v2016
    %2553 = vmatpush1.msra.mxu0 %v2015
    %2554 = vmatprep.subr.mxu0 %v2023
    %2555 = vmatpush1.msra.mxu0 %v2022
    %2556 = vmatprep.subr.mxu0 %v2030
    %2557 = vmatpush1.msra.mxu0 %v2029
    %2558 = vmatprep.subr.mxu0 %v2037
    %2559 = vmatpush1.msra.mxu0 %v2036
    %2560 = vmatprep.subr.mxu0 %v2044
    %2561 = vmatpush1.msra.mxu0 %v2043
    %2562 = vmatprep.subr.mxu0 %v2051
    %2563 = vmatpush1.msra.mxu0 %v2050
    %2564 = vmatprep.subr.mxu0 %v2058
    %2565 = vmatpush1.msra.mxu0 %v2057
    %2566 = vmatprep.subr.mxu0 %v2065
    %2567 = vmatpush1.msra.mxu0 %v2064
    %2568 = vmatprep.subr.mxu0 %v2072
    %2569 = vmatpush1.msra.mxu0 %v2071
    %2570 = vmatprep.subr.mxu0 %v2079
    %2571 = vmatpush1.msra.mxu0 %v2078
    %2572 = vmatprep.subr.mxu0 %v2086
    %2573 = vmatpush1.msra.mxu0 %v2085
    %2574 = vmatprep.subr.mxu0 %v2093
    %2575 = vmatpush1.msra.mxu0 %v2092
    %2576 = vmatprep.subr.mxu0 %v2100
    %2577 = vmatpush1.msra.mxu0 %v2099
    %2578 = vmatprep.subr.mxu0 %v2107
    %2579 = vmatpush1.msra.mxu0 %v2106
    %2580 = vmatprep.subr.mxu0 %v2114
    %2581 = vmatpush1.msra.mxu0 %v2113
    %2582 = vmatprep.subr.mxu0 %v2121
    %2583 = vmatpush1.msra.mxu0 %v2120
    %2584 = vmatprep.subr.mxu0 %v2128
    %2585 = vmatpush1.msra.mxu0 %v2127
    %2586 = vmatprep.mubr.f32.mxu0 %v1681
    %2587 = vmatmul.mubr.f32.gmra.mrb[0].mxu0 %v1680
    %v2588 = vpop.f32.mrb[0].mxu0
    %v2589 = vadd.f32 %v2518, %v2588
    %v2590 = vpop.f32.mrb[0].mxu0
    %v2591 = vadd.f32 %v2520, %v2590
    %2592 = vdwg.mxu0
    %2593 = vmatprep.subr.mxu0 0.0
    %2594 = vmatpush1.msra.mxu0 %v1688
    %2595 = vmatprep.subr.mxu0 0.0
    %2596 = vmatpush1.msra.mxu0 %v1695
    %2597 = vmatprep.subr.mxu0 0.0
    %2598 = vmatpush1.msra.mxu0 %v1702
    %2599 = vmatprep.subr.mxu0 0.0
    %2600 = vmatpush1.msra.mxu0 %v1709
    %2601 = vmatprep.subr.mxu0 0.0
    %2602 = vmatpush1.msra.mxu0 %v1716
    %2603 = vmatprep.subr.mxu0 0.0
    %2604 = vmatpush1.msra.mxu0 %v1723
    %2605 = vmatprep.subr.mxu0 0.0
    %2606 = vmatpush1.msra.mxu0 %v1730
    %2607 = vmatprep.subr.mxu0 0.0
    %2608 = vmatpush1.msra.mxu0 %v1737
    %2609 = vmatprep.subr.mxu0 0.0
    %2610 = vmatpush1.msra.mxu0 %v1744
    %2611 = vmatprep.subr.mxu0 0.0
    %2612 = vmatpush1.msra.mxu0 %v1751
    %2613 = vmatprep.subr.mxu0 0.0
    %2614 = vmatpush1.msra.mxu0 %v1758
    %2615 = vmatprep.subr.mxu0 0.0
    %2616 = vmatpush1.msra.mxu0 %v1765
    %2617 = vmatprep.subr.mxu0 0.0
    %2618 = vmatpush1.msra.mxu0 %v1772
    %2619 = vmatprep.subr.mxu0 0.0
    %2620 = vmatpush1.msra.mxu0 %v1779
    %2621 = vmatprep.subr.mxu0 0.0
    %2622 = vmatpush1.msra.mxu0 %v1786
    %2623 = vmatprep.subr.mxu0 0.0
    %2624 = vmatpush1.msra.mxu0 %v1793
    %2625 = vmatprep.subr.mxu0 0.0
    %2626 = vmatpush1.msra.mxu0 %v1800
    %2627 = vmatprep.subr.mxu0 0.0
    %2628 = vmatpush1.msra.mxu0 %v1807
    %2629 = vmatprep.subr.mxu0 0.0
    %2630 = vmatpush1.msra.mxu0 %v1814
    %2631 = vmatprep.subr.mxu0 0.0
    %2632 = vmatpush1.msra.mxu0 %v1821
    %2633 = vmatprep.subr.mxu0 0.0
    %2634 = vmatpush1.msra.mxu0 %v1828
    %2635 = vmatprep.subr.mxu0 0.0
    %2636 = vmatpush1.msra.mxu0 %v1835
    %2637 = vmatprep.subr.mxu0 0.0
    %2638 = vmatpush1.msra.mxu0 %v1842
    %2639 = vmatprep.subr.mxu0 0.0
    %2640 = vmatpush1.msra.mxu0 %v1849
    %2641 = vmatprep.subr.mxu0 0.0
    %2642 = vmatpush1.msra.mxu0 %v1856
    %2643 = vmatprep.subr.mxu0 0.0
    %2644 = vmatpush1.msra.mxu0 %v1863
    %2645 = vmatprep.subr.mxu0 0.0
    %2646 = vmatpush1.msra.mxu0 %v1870
    %2647 = vmatprep.subr.mxu0 0.0
    %2648 = vmatpush1.msra.mxu0 %v1877
    %2649 = vmatprep.subr.mxu0 0.0
    %2650 = vmatpush1.msra.mxu0 %v1884
    %2651 = vmatprep.subr.mxu0 0.0
    %2652 = vmatpush1.msra.mxu0 %v1891
    %2653 = vmatprep.subr.mxu0 0.0
    %2654 = vmatpush1.msra.mxu0 %v1898
    %2655 = vmatprep.subr.mxu0 0.0
    %2656 = vmatpush1.msra.mxu0 %v1905
    %2657 = vmatprep.mubr.f32.mxu0 %v1679
    %2658 = vmatmul.mubr.f32.gmra.mrb[0].mxu0 %v1678
    %v2659 = vpop.f32.mrb[0].mxu0
    %v2660 = vadd.f32 %v2159, %v2659
    %v2661 = vpop.f32.mrb[0].mxu0
    %2662 = vdwg.mxu0
    %2663 = vmatprep.subr.mxu0 0.0
    %2664 = vmatpush1.msra.mxu0 %v1912
    %2665 = vmatprep.subr.mxu0 0.0
    %2666 = vmatpush1.msra.mxu0 %v1919
    %2667 = vmatprep.subr.mxu0 0.0
    %2668 = vmatpush1.msra.mxu0 %v1926
    %2669 = vmatprep.subr.mxu0 0.0
    %2670 = vmatpush1.msra.mxu0 %v1933
    %2671 = vmatprep.subr.mxu0 0.0
    %2672 = vmatpush1.msra.mxu0 %v1940
    %2673 = vmatprep.subr.mxu0 0.0
    %2674 = vmatpush1.msra.mxu0 %v1947
    %2675 = vmatprep.subr.mxu0 0.0
    %2676 = vmatpush1.msra.mxu0 %v1954
    %2677 = vmatprep.subr.mxu0 0.0
    %2678 = vmatpush1.msra.mxu0 %v1961
    %2679 = vmatprep.subr.mxu0 0.0
    %2680 = vmatpush1.msra.mxu0 %v1968
    %2681 = vmatprep.subr.mxu0 0.0
    %2682 = vmatpush1.msra.mxu0 %v1975
    %2683 = vmatprep.subr.mxu0 0.0
    %2684 = vmatpush1.msra.mxu0 %v1982
    %2685 = vmatprep.subr.mxu0 0.0
    %2686 = vmatpush1.msra.mxu0 %v1989
    %2687 = vmatprep.subr.mxu0 0.0
    %2688 = vmatpush1.msra.mxu0 %v1996
    %2689 = vmatprep.subr.mxu0 0.0
    %2690 = vmatpush1.msra.mxu0 %v2003
    %2691 = vmatprep.subr.mxu0 0.0
    %2692 = vmatpush1.msra.mxu0 %v2010
    %2693 = vmatprep.subr.mxu0 0.0
    %2694 = vmatpush1.msra.mxu0 %v2017
    %2695 = vmatprep.subr.mxu0 0.0
    %2696 = vmatpush1.msra.mxu0 %v2024
    %2697 = vmatprep.subr.mxu0 0.0
    %2698 = vmatpush1.msra.mxu0 %v2031
    %2699 = vmatprep.subr.mxu0 0.0
    %2700 = vmatpush1.msra.mxu0 %v2038
    %2701 = vmatprep.subr.mxu0 0.0
    %2702 = vmatpush1.msra.mxu0 %v2045
    %2703 = vmatprep.subr.mxu0 0.0
    %2704 = vmatpush1.msra.mxu0 %v2052
    %2705 = vmatprep.subr.mxu0 0.0
    %2706 = vmatpush1.msra.mxu0 %v2059
    %2707 = vmatprep.subr.mxu0 0.0
    %2708 = vmatpush1.msra.mxu0 %v2066
    %2709 = vmatprep.subr.mxu0 0.0
    %2710 = vmatpush1.msra.mxu0 %v2073
    %2711 = vmatprep.subr.mxu0 0.0
    %2712 = vmatpush1.msra.mxu0 %v2080
    %2713 = vmatprep.subr.mxu0 0.0
    %2714 = vmatpush1.msra.mxu0 %v2087
    %2715 = vmatprep.subr.mxu0 0.0
    %2716 = vmatpush1.msra.mxu0 %v2094
    %2717 = vmatprep.subr.mxu0 0.0
    %2718 = vmatpush1.msra.mxu0 %v2101
    %2719 = vmatprep.subr.mxu0 0.0
    %2720 = vmatpush1.msra.mxu0 %v2108
    %2721 = vmatprep.subr.mxu0 0.0
    %2722 = vmatpush1.msra.mxu0 %v2115
    %2723 = vmatprep.subr.mxu0 0.0
    %2724 = vmatpush1.msra.mxu0 %v2122
    %2725 = vmatprep.subr.mxu0 0.0
    %2726 = vmatpush1.msra.mxu0 %v2129
    %2727 = vmatprep.mubr.f32.mxu0 %v1681
    %2728 = vmatmul.mubr.f32.gmra.mrb[0].mxu0 %v1680
    %v2729 = vpop.f32.mrb[0].mxu0
    %v2730 = vadd.f32 %v2660, %v2729
    %v2731 = vpop.f32.mrb[0].mxu0
    %2732 = vdwg.mxu0
    %v2733 = vtanh.pop %v2305
    %v2734 = vtanh.pop %v2307
    %v2735 = vtanh.pop %v2447
    %v2736 = vtanh.pop %v2449
    %v2737 = vtanh.pop %v2589
    %v2738 = vtanh.pop %v2591
    %v2739 = vtanh.pop %v2730
    %2740 = vst [vmem:[#allocation19] sm:$0xff] %v2733
    %2741 = vst [vmem:[#allocation19 + $0x8] sm:$0xff] %v2734
    %2742 = vst [vmem:[#allocation19 + $0x10] sm:$0xff] %v2735
    %2743 = vst [vmem:[#allocation19 + $0x18] sm:$0xff] %v2736
    %2744 = vst [vmem:[#allocation19 + $0x20] sm:$0xff] %v2737
    %2745 = vst [vmem:[#allocation19 + $0x28] sm:$0xff] %v2738
    %2746 = vst [vmem:[#allocation19 + $0x30] sm:$0xff] %v2739
    // Predicated region
    $region82: #{tpu_custom_call.1} parent=1 // pred_check
      _
    $region83: #{tpu_custom_call.1} parent=1 // pred_check_branch
      %2748 = sbr.rel (0) target = $region85
    $region84: #{tpu_custom_call.1} parent=1 // pred_region
      %s2750 = ssub.s32 896, 896
      %2751 = vsyncadd [#allocation4], %s2750
      %s2753 = sshll.u32 [#allocation19], 4
      %s2754 = int_to_ptr.vmem [resolvable:$true] %s2753
      %2756 = dma.vmem_to_hbm [thread:$0]  %s2754, 896, %s10, [#allocation4]
    $region85: #{tpu_custom_call.1} parent=1 // pred_fallthru
      _
    // Predicated region
    $region86: #{tpu_custom_call.1} parent=1 // pred_check
      _
    $region87: #{tpu_custom_call.1} parent=1 // pred_check_branch
      %2758 = sbr.rel (0) target = $region89
    $region88: #{tpu_custom_call.1} parent=1 // pred_region
      %s2760 = ssub.s32 256, 256
      %2761 = vsyncadd [#allocation21], %s2760
      %s2763 = sshll.u32 [#allocation20], 4
      %s2764 = int_to_ptr.vmem [resolvable:$true] %s2763
      %2766 = dma.vmem_to_hbm [thread:$0]  %s2764, 256, %s11, [#allocation21]
    $region89: #{tpu_custom_call.1} parent=1 // pred_fallthru
      _
    // Predicated region
    $region90: #{tpu_custom_call.1} parent=1 // pred_check
      _
    $region91: #{tpu_custom_call.1} parent=1 // pred_check_branch
      %2768 = sbr.rel (0) target = $region93
    $region92: #{tpu_custom_call.1} parent=1 // pred_region
      %2769 = dma.done [#allocation4], 896
    $region93: #{tpu_custom_call.1} parent=1 // pred_fallthru
      _
    // Predicated region
    $region94: #{tpu_custom_call.1} parent=1 // pred_check
      _
    $region95: #{tpu_custom_call.1} parent=1 // pred_check_branch
      %2771 = sbr.rel (0) target = $region97
    $region96: #{tpu_custom_call.1} parent=1 // pred_region
      %2772 = dma.done [#allocation21], 256
    $region97: #{tpu_custom_call.1} parent=1 // pred_fallthru
      _
    %2773 = vsyncpa [#allocation3], 1
    %2774 = vsyncpa [#allocation6], 1
    %2775 = vsyncpa [#allocation9], 1
    %2776 = vsyncpa [#allocation12], 1
    %2777 = vsyncpa [#allocation15], 1
    %2778 = vsyncpa [#allocation18], 1
    %2779 = vsyncpa [#allocation4], 1
    %2780 = vsyncpa [#allocation21], 1

</llo_original>
